<compile_context>
chip_gen: v7x
topology: tpu7x:2x2x1
jax: 0.10.0
libtpu: 0.0.40
codegen_flags: <defaults>
</compile_context>

<pallas_src>
import math

import numpy as np
import jax
import jax.numpy as jnp
from jax.experimental import pallas as pl
from jax.experimental.pallas import tpu as pltpu


# ------------------------------------------------------------------ in-kernel helpers

def _gelu_tanh(x):
    # tanh-form GELU (|err| < ~5e-4 vs torch's exact erf GELU); tanh runs on the EUP slot,
    # leaving the VALU slot free (the binding slot at these tiny channel counts).
    c = 0.7978845608028654  # sqrt(2/pi)
    return 0.5 * x * (1.0 + jnp.tanh(c * (x + 0.044715 * x * x * x)))


def _ln_gelu(y, s_ref, t_ref, gamma, beta, eps=1e-6):
    # Per-column LayerNorm over each block of C consecutive rows (== LayerNorm2d over
    # channels in the (phase, channel) row layout), fused with GELU.
    # Stats via skinny matmuls: S (nP, R) selects group means, T (R, nP) broadcasts back.
    mean = jnp.dot(t_ref[...], jnp.dot(s_ref[...], y, preferred_element_type=jnp.float32),
                   preferred_element_type=jnp.float32)
    d = y - mean
    var = jnp.dot(t_ref[...], jnp.dot(s_ref[...], d * d, preferred_element_type=jnp.float32),
                  preferred_element_type=jnp.float32)
    yn = d * jax.lax.rsqrt(var + eps)          # rsqrt -> EUP, no VALU divide
    return _gelu_tanh(gamma * yn + beta)


def _conv3x3_polyphase(act, mc_ref, bias, pad_ref, stk_ref, left_ok, right_ok):
    # 3x3 conv (padding=1) on the 2^L-upscaled grid, computed in the polyphase layout.
    #   act    : (R, 256) f32 feature map, rows = (phase, channel), cols = 16x16 base grid
    #   mc_ref : (R_out, 9*R) bf16 phase-expanded conv matrix (host precomputed)
    #   pad_ref: (R, 256 + 2*17) bf16 scratch (zero pad absorbs vertical out-of-bounds)
    #   stk_ref: (9*R, 256) bf16 scratch holding the 9 shifted copies (stacked taps)
    # Horizontal wrap of the flattened slices is killed by the left/right column masks.
    R = pad_ref.shape[0]
    W, HW = 16, 256
    pad_ref[...] = jnp.zeros(pad_ref.shape, pad_ref.dtype)
    pad_ref[:, W + 1:W + 1 + HW] = act.astype(pad_ref.dtype)
    for si, sh in enumerate((-1, 0, 1)):
        for sj, sw in enumerate((-1, 0, 1)):
            off = (W + 1) + sh * W + sw
            tap = pad_ref[:, off:off + HW]
            if sw == -1:
                tap = tap * left_ok
            elif sw == 1:
                tap = tap * right_ok
            blk = (si * 3 + sj) * R
            stk_ref[blk:blk + R, :] = tap
    # one deep-K MXU matmul (K = 9*R) instead of nine K = C_in matmuls
    return jnp.dot(mc_ref[...], stk_ref[...], preferred_element_type=jnp.float32) + bias


# ------------------------------------------------------------------ the fused kernel

def _decoder_kernel(x_ref, wl_ref, bl_ref,
                    wt1_ref, bt1_ref, g1_ref, be1_ref, s1_ref, t1_ref, mc1_ref, bc1_ref,
                    wt2_ref, bt2_ref, g2_ref, be2_ref, s2_ref, t2_ref, mc2_ref, bc2_ref,
                    wt3_ref, bt3_ref,
                    o_ref,
                    pad1_ref, stk1_ref, pad2_ref, stk2_ref):
    f32, bf16 = jnp.float32, jnp.bfloat16
    W, HW = 16, 256

    # column-wrap masks for the +/-1 horizontal taps (base grid is always 16x16)
    lane = jax.lax.broadcasted_iota(jnp.int32, (1, HW), 1)
    col = jnp.bitwise_and(lane, W - 1)
    left_ok = jnp.where(col >= 1, 1.0, 0.0).astype(bf16)        # valid for dw = -1
    right_ok = jnp.where(col <= W - 2, 1.0, 0.0).astype(bf16)   # valid for dw = +1

    # ---- Linear(257 -> 256) over the token axis; columns become the 16x16 base grid ----
    src = jnp.dot(x_ref[0].astype(bf16), wl_ref[...], preferred_element_type=f32) + bl_ref[...]

    # ---- ConvTranspose2d(D -> D/4, k2 s2) + LayerNorm2d + GELU   (phase level 1: 2x2) ----
    y = jnp.dot(wt1_ref[...], src.astype(bf16), preferred_element_type=f32) + bt1_ref[...]
    a = _ln_gelu(y, s1_ref, t1_ref, g1_ref[...], be1_ref[...])

    # ---- Conv2d 3x3 (pad 1) on the 32x32 grid + GELU ----
    a = _gelu_tanh(_conv3x3_polyphase(a, mc1_ref, bc1_ref[...], pad1_ref, stk1_ref,
                                      left_ok, right_ok))

    # ---- ConvTranspose2d(D/4 -> D/8, k2 s2) + LayerNorm2d + GELU (phase level 2: 4x4) ----
    y = jnp.dot(wt2_ref[...], a.astype(bf16), preferred_element_type=f32) + bt2_ref[...]
    a = _ln_gelu(y, s2_ref, t2_ref, g2_ref[...], be2_ref[...])

    # ---- Conv2d 3x3 (pad 1) on the 64x64 grid + GELU ----
    a = _gelu_tanh(_conv3x3_polyphase(a, mc2_ref, bc2_ref[...], pad2_ref, stk2_ref,
                                      left_ok, right_ok))

    # ---- ConvTranspose2d(D/8 -> 1, k2 s2) + sigmoid             (phase level 3: 8x8) ----
    y = jnp.dot(wt3_ref[...], a.astype(bf16), preferred_element_type=f32) + bt3_ref[...]
    o_ref[0] = 0.5 * (jnp.tanh(0.5 * y) + 1.0)                  # exact sigmoid identity


# ------------------------------------------------------------------ forward wrapper

def mask_decoder_forward(kp, image_embeddings):
    """image_embeddings: (B, 257, D) f32.  Returns sigmoid masks (B, 1, 128, 128)."""
    B, T, D = image_embeddings.shape
    C1, C2 = D // 4, D // 8

    # torch: image_embeddings.transpose(1, 2) before the Linear -> (B, D, 257)
    x_t = jnp.transpose(image_embeddings, (0, 2, 1))

    params = (kp["w_linT"], kp["b_lin"],
              kp["wt1"], kp["bt1"], kp["g1"], kp["be1"], kp["S1"], kp["T1"],
              kp["mc1"], kp["bc1"],
              kp["wt2"], kp["bt2"], kp["g2"], kp["be2"], kp["S2"], kp["T2"],
              kp["mc2"], kp["bc2"],
              kp["wt3"], kp["bt3"])

    out = pl.pallas_call(
        _decoder_kernel,
        grid=(B,),
        in_specs=[pl.BlockSpec((1, D, 257), lambda b: (b, 0, 0))] +
                 [pl.BlockSpec(p.shape, lambda b: (0, 0)) for p in params],
        out_specs=pl.BlockSpec((1, 64, 256), lambda b: (b, 0, 0)),
        out_shape=jax.ShapeDtypeStruct((B, 64, 256), jnp.float32),
        scratch_shapes=[
            pltpu.VMEM((4 * C1, 256 + 34), jnp.bfloat16),        # stage-1 conv pad buffer
            pltpu.VMEM((9 * 4 * C1, 256), jnp.bfloat16),         # stage-1 stacked taps
            pltpu.VMEM((16 * C2, 256 + 34), jnp.bfloat16),       # stage-2 conv pad buffer
            pltpu.VMEM((9 * 16 * C2, 256), jnp.bfloat16),        # stage-2 stacked taps
        ],
        compiler_params=pltpu.CompilerParams(dimension_semantics=("parallel",)),
    )(x_t, *params)

    # final 8x8 depth-to-space: out[b, PH*8+PW, h*16+w] -> masks[b, 0, 8h+PH, 8w+PW]
    out = out.reshape(B, 8, 8, 16, 16)
    out = jnp.transpose(out, (0, 3, 1, 4, 2))        # (B, h, PH, w, PW)
    return out.reshape(B, 1, 128, 128)


# ------------------------------------------------------------------ parameters (torch layouts)

def init_torch_params(key, D):
    """Parameters in the PyTorch module's native layouts."""
    C1, C2 = D // 4, D // 8
    ks = jax.random.split(key, 12)

    def nrm(k, shape, scale):
        return jax.random.normal(k, shape, jnp.float32) * scale

    p = {}
    p["w_lin"] = nrm(ks[0], (256, 257), 1.0 / math.sqrt(257))       # nn.Linear(257, 256)
    p["b_lin"] = nrm(ks[1], (256,), 0.01)
    p["wt1"] = nrm(ks[2], (D, C1, 2, 2), 1.0 / math.sqrt(4 * D))    # ConvTranspose2d(D, C1, 2, 2)
    p["bt1"] = nrm(ks[3], (C1,), 0.01)
    p["g1"] = jnp.ones((C1,), jnp.float32)                          # LayerNorm2d(C1)
    p["be1"] = jnp.zeros((C1,), jnp.float32)
    p["wc1"] = nrm(ks[4], (C1, C1, 3, 3), 1.0 / math.sqrt(9 * C1))  # Conv2d(C1, C1, 3, pad=1)
    p["bc1"] = nrm(ks[5], (C1,), 0.01)
    p["wt2"] = nrm(ks[6], (C1, C2, 2, 2), 1.0 / math.sqrt(4 * C1))  # ConvTranspose2d(C1, C2, 2, 2)
    p["bt2"] = nrm(ks[7], (C2,), 0.01)
    p["g2"] = jnp.ones((C2,), jnp.float32)                          # LayerNorm2d(C2)
    p["be2"] = jnp.zeros((C2,), jnp.float32)
    p["wc2"] = nrm(ks[8], (C2, C2, 3, 3), 1.0 / math.sqrt(9 * C2))  # Conv2d(C2, C2, 3, pad=1)
    p["bc2"] = nrm(ks[9], (C2,), 0.01)
    p["wt3"] = nrm(ks[10], (C2, 1, 2, 2), 1.0 / math.sqrt(4 * C2))  # ConvTranspose2d(C2, 1, 2, 2)
    p["bt3"] = nrm(ks[11], (1,), 0.01)
    return p


# ------------------------------------------------------------------ host-side weight rearrangement

def _convT_phase_matrix(wt, p_in):
    # wt: (Cin, Cout, 2, 2) torch ConvTranspose2d weight; input at phase level p_in.
    # Returns (4*p_in^2*Cout, p_in^2*Cin): output rows ordered (PH, PW, co) with
    # PH = 2*ph + kh, PW = 2*pw + kw  (phase-expanded k2/s2 transposed conv as one matmul).
    cin, cout = wt.shape[0], wt.shape[1]
    p_out = 2 * p_in
    m = np.zeros((p_out * p_out * cout, p_in * p_in * cin), np.float32)
    wt = np.asarray(wt)
    for ph in range(p_in):
        for pw in range(p_in):
            for a in range(2):
                for b in range(2):
                    row0 = ((2 * ph + a) * p_out + (2 * pw + b)) * cout
                    col0 = (ph * p_in + pw) * cin
                    m[row0:row0 + cout, col0:col0 + cin] = wt[:, :, a, b].T
    return m


def _conv_phase_matrix(wc, p):
    # wc: (Cout, Cin, 3, 3) torch Conv2d weight; feature map at phase level p.
    # Returns (p^2*Cout, 9*p^2*Cin): maps the stacked 9-shift phase-layout input
    # (shift-major, then (phase, channel)) to the phase-layout output of the 3x3 conv.
    cout, cin = wc.shape[0], wc.shape[1]
    rin = p * p * cin
    m = np.zeros((p * p * cout, 9 * rin), np.float32)
    wc = np.asarray(wc)
    for qh in range(p):
        for qw in range(p):
            row0 = (qh * p + qw) * cout
            for kh in (-1, 0, 1):
                for kw in (-1, 0, 1):
                    ph, sh = (qh + kh) % p, (qh + kh) // p      # python floor div/mod
                    pw, sw = (qw + kw) % p, (qw + kw) // p
                    s = (sh + 1) * 3 + (sw + 1)
                    col0 = s * rin + (ph * p + pw) * cin
                    m[row0:row0 + cout, col0:col0 + cin] += wc[:, :, kh + 1, kw + 1]
    return m


def _ln_group_matrices(n_groups, group_size):
    s = np.kron(np.eye(n_groups, dtype=np.float32),
                np.full((1, group_size), 1.0 / group_size, np.float32))
    t = np.kron(np.eye(n_groups, dtype=np.float32),
                np.ones((group_size, 1), np.float32))
    return jnp.asarray(s), jnp.asarray(t)


def prepare_kernel_params(tp):
    """Rearrange torch-layout params for the polyphase (phase, channel) x (16x16) kernels."""
    D = tp["wt1"].shape[0]
    assert D % 8 == 0, "transformer_dim must be divisible by 8"
    C1, C2 = D // 4, D // 8
    bf16, f32 = jnp.bfloat16, jnp.float32

    def tile_col(v, n):                                   # (C,) -> (n*C, 1) f32
        return jnp.asarray(np.tile(np.asarray(v), n).reshape(-1, 1), f32)

    kp = {}
    kp["w_linT"] = jnp.asarray(np.asarray(tp["w_lin"]).T, bf16)                  # (257, 256)
    kp["b_lin"] = jnp.asarray(np.asarray(tp["b_lin"]).reshape(1, 256), f32)

    kp["wt1"] = jnp.asarray(_convT_phase_matrix(tp["wt1"], 1), bf16)             # (4*C1, D)
    kp["bt1"] = tile_col(tp["bt1"], 4)
    kp["g1"] = tile_col(tp["g1"], 4)
    kp["be1"] = tile_col(tp["be1"], 4)
    kp["S1"], kp["T1"] = _ln_group_matrices(4, C1)

    kp["mc1"] = jnp.asarray(_conv_phase_matrix(tp["wc1"], 2), bf16)              # (4*C1, 36*C1)
    kp["bc1"] = tile_col(tp["bc1"], 4)

    kp["wt2"] = jnp.asarray(_convT_phase_matrix(tp["wt2"], 2), bf16)             # (16*C2, 4*C1)
    kp["bt2"] = tile_col(tp["bt2"], 16)
    kp["g2"] = tile_col(tp["g2"], 16)
    kp["be2"] = tile_col(tp["be2"], 16)
    kp["S2"], kp["T2"] = _ln_group_matrices(16, C2)

    kp["mc2"] = jnp.asarray(_conv_phase_matrix(tp["wc2"], 4), bf16)              # (16*C2, 144*C2)
    kp["bc2"] = tile_col(tp["bc2"], 16)

    kp["wt3"] = jnp.asarray(_convT_phase_matrix(tp["wt3"], 4), bf16)             # (64, 16*C2)
    kp["bt3"] = tile_col(tp["bt3"], 64)
    return kp


# ------------------------------------------------------------------ pure-JAX reference (torch semantics)

def ref_forward(tp, x):
    D = tp["wt1"].shape[0]
    B = x.shape[0]
    prec = jax.lax.Precision.HIGHEST

    proj = jnp.einsum("btd,ot->bdo", x, tp["w_lin"], precision=prec) + tp["b_lin"][None, None, :]
    src = proj.reshape(B, D, 16, 16)                               # NCHW

    def convT(xn, w, b):
        t = jnp.einsum("bihw,iokl->bohkwl", xn, w, precision=prec)
        Bn, Co = t.shape[0], t.shape[1]
        Hn, Wn = xn.shape[2], xn.shape[3]
        return t.reshape(Bn, Co, 2 * Hn, 2 * Wn) + b[None, :, None, None]

    def conv3(xn, w, b):
        out = jax.lax.conv_general_dilated(
            xn, w, window_strides=(1, 1), padding=((1, 1), (1, 1)),
            dimension_numbers=("NCHW", "OIHW", "NCHW"), precision=prec)
        return out + b[None, :, None, None]

    def ln2d(xn, g, b, eps=1e-6):
        u = xn.mean(1, keepdims=True)
        s = ((xn - u) ** 2).mean(1, keepdims=True)
        return g[None, :, None, None] * ((xn - u) / jnp.sqrt(s + eps)) + b[None, :, None, None]

    act = lambda v: jax.nn.gelu(v, approximate=False)

    y = convT(src, tp["wt1"], tp["bt1"])
    y = act(ln2d(y, tp["g1"], tp["be1"]))
    y = act(conv3(y, tp["wc1"], tp["bc1"]))
    y = convT(y, tp["wt2"], tp["bt2"])
    y = act(ln2d(y, tp["g2"], tp["be2"]))
    y = act(conv3(y, tp["wc2"], tp["bc2"]))
    y = convT(y, tp["wt3"], tp["bt3"])
    return jax.nn.sigmoid(y)


# ------------------------------------------------------------------ main

if __name__ == "__main__":
    key = jax.random.PRNGKey(0)
    k_param, k_x = jax.random.split(key)

    D = 32          # transformer_dim (must be divisible by 8)
    B = 2
    tp = init_torch_params(k_param, D)
    kp = prepare_kernel_params(tp)

    # image_embeddings: (B, 257, transformer_dim); Linear(257, 256) acts on the token axis.
    x = jax.random.normal(k_x, (B, 257, D), jnp.float32)

    masks = jax.block_until_ready(jax.jit(mask_decoder_forward)(kp, x))

    assert masks.shape == (B, 1, 128, 128), masks.shape
    assert bool(jnp.all(jnp.isfinite(masks)))
    assert bool(jnp.all((masks >= 0.0) & (masks <= 1.0)))          # sigmoid output range

    ref = jax.block_until_ready(jax.jit(ref_forward)(tp, x))
    err = float(jnp.max(jnp.abs(masks - ref)))
    assert err < 2e-2, f"kernel/reference mismatch: max abs err = {err}"

    print("KERNEL_OK")
</pallas_src>

<mosaic_0001>
module attributes {stable_mosaic.version = 11 : i64} {
  func.func @_decoder_kernel(%arg0: i32, %arg1: memref<1x32x257xf32, #tpu.memory_space<vmem>>, %arg2: memref<257x256xbf16, #tpu.memory_space<vmem>>, %arg3: memref<1x256xf32, #tpu.memory_space<vmem>>, %arg4: memref<32x32xbf16, #tpu.memory_space<vmem>>, %arg5: memref<32x1xf32, #tpu.memory_space<vmem>>, %arg6: memref<32x1xf32, #tpu.memory_space<vmem>>, %arg7: memref<32x1xf32, #tpu.memory_space<vmem>>, %arg8: memref<4x32xf32, #tpu.memory_space<vmem>>, %arg9: memref<32x4xf32, #tpu.memory_space<vmem>>, %arg10: memref<32x288xbf16, #tpu.memory_space<vmem>>, %arg11: memref<32x1xf32, #tpu.memory_space<vmem>>, %arg12: memref<64x32xbf16, #tpu.memory_space<vmem>>, %arg13: memref<64x1xf32, #tpu.memory_space<vmem>>, %arg14: memref<64x1xf32, #tpu.memory_space<vmem>>, %arg15: memref<64x1xf32, #tpu.memory_space<vmem>>, %arg16: memref<16x64xf32, #tpu.memory_space<vmem>>, %arg17: memref<64x16xf32, #tpu.memory_space<vmem>>, %arg18: memref<64x576xbf16, #tpu.memory_space<vmem>>, %arg19: memref<64x1xf32, #tpu.memory_space<vmem>>, %arg20: memref<64x64xbf16, #tpu.memory_space<vmem>>, %arg21: memref<64x1xf32, #tpu.memory_space<vmem>>, %arg22: memref<1x64x256xf32, #tpu.memory_space<vmem>>, %arg23: memref<32x290xbf16, #tpu.memory_space<vmem>>, %arg24: memref<288x256xbf16, #tpu.memory_space<vmem>>, %arg25: memref<64x290xbf16, #tpu.memory_space<vmem>>, %arg26: memref<576x256xbf16, #tpu.memory_space<vmem>>) attributes {dimension_semantics = [#tpu.dimension_semantics<parallel>], iteration_bounds = array<i64: 2>, scalar_prefetch = 0 : i64, scratch_operands = 4 : i64, tpu.core_type = #tpu.core_type<tc>, window_params = [{transform_indices = @transform_0, window_bounds = array<i64: 1, 32, 257>}, {pipeline_mode = #tpu.pipeline_mode<synchronous>, transform_indices = @transform_1, window_bounds = array<i64: 257, 256>}, {pipeline_mode = #tpu.pipeline_mode<synchronous>, transform_indices = @transform_2, window_bounds = array<i64: 1, 256>}, {pipeline_mode = #tpu.pipeline_mode<synchronous>, transform_indices = @transform_3, window_bounds = array<i64: 32, 32>}, {pipeline_mode = #tpu.pipeline_mode<synchronous>, transform_indices = @transform_4, window_bounds = array<i64: 32, 1>}, {pipeline_mode = #tpu.pipeline_mode<synchronous>, transform_indices = @transform_5, window_bounds = array<i64: 32, 1>}, {pipeline_mode = #tpu.pipeline_mode<synchronous>, transform_indices = @transform_6, window_bounds = array<i64: 32, 1>}, {pipeline_mode = #tpu.pipeline_mode<synchronous>, transform_indices = @transform_7, window_bounds = array<i64: 4, 32>}, {pipeline_mode = #tpu.pipeline_mode<synchronous>, transform_indices = @transform_8, window_bounds = array<i64: 32, 4>}, {pipeline_mode = #tpu.pipeline_mode<synchronous>, transform_indices = @transform_9, window_bounds = array<i64: 32, 288>}, {pipeline_mode = #tpu.pipeline_mode<synchronous>, transform_indices = @transform_10, window_bounds = array<i64: 32, 1>}, {pipeline_mode = #tpu.pipeline_mode<synchronous>, transform_indices = @transform_11, window_bounds = array<i64: 64, 32>}, {pipeline_mode = #tpu.pipeline_mode<synchronous>, transform_indices = @transform_12, window_bounds = array<i64: 64, 1>}, {pipeline_mode = #tpu.pipeline_mode<synchronous>, transform_indices = @transform_13, window_bounds = array<i64: 64, 1>}, {pipeline_mode = #tpu.pipeline_mode<synchronous>, transform_indices = @transform_14, window_bounds = array<i64: 64, 1>}, {pipeline_mode = #tpu.pipeline_mode<synchronous>, transform_indices = @transform_15, window_bounds = array<i64: 16, 64>}, {pipeline_mode = #tpu.pipeline_mode<synchronous>, transform_indices = @transform_16, window_bounds = array<i64: 64, 16>}, {pipeline_mode = #tpu.pipeline_mode<synchronous>, transform_indices = @transform_17, window_bounds = array<i64: 64, 576>}, {pipeline_mode = #tpu.pipeline_mode<synchronous>, transform_indices = @transform_18, window_bounds = array<i64: 64, 1>}, {pipeline_mode = #tpu.pipeline_mode<synchronous>, transform_indices = @transform_19, window_bounds = array<i64: 64, 64>}, {pipeline_mode = #tpu.pipeline_mode<synchronous>, transform_indices = @transform_20, window_bounds = array<i64: 64, 1>}, {transform_indices = @transform_21, window_bounds = array<i64: 1, 64, 256>}]} {
    %0 = tpu.iota {dimensions = array<i32: 1>} : vector<1x256xi32>
    %c15_i32 = arith.constant 15 : i32
    %1 = vector.broadcast %c15_i32 : i32 to vector<1x256xi32>
    %2 = arith.andi %0, %1 : vector<1x256xi32>
    %c1_i32 = arith.constant 1 : i32
    %3 = vector.broadcast %c1_i32 : i32 to vector<1x256xi32>
    %4 = arith.cmpi sge, %2, %3 : vector<1x256xi32>
    %cst = arith.constant 1.000000e+00 : f32
    %cst_0 = arith.constant 0.000000e+00 : f32
    %5 = vector.broadcast %cst : f32 to vector<1x256xf32>
    %6 = vector.broadcast %cst_0 : f32 to vector<1x256xf32>
    %7 = arith.select %4, %5, %6 : vector<1x256xi1>, vector<1x256xf32>
    %8 = arith.truncf %7 : vector<1x256xf32> to vector<1x256xbf16>
    %c14_i32 = arith.constant 14 : i32
    %9 = vector.broadcast %c14_i32 : i32 to vector<1x256xi32>
    %10 = arith.cmpi sle, %2, %9 : vector<1x256xi32>
    %cst_1 = arith.constant 1.000000e+00 : f32
    %cst_2 = arith.constant 0.000000e+00 : f32
    %11 = vector.broadcast %cst_1 : f32 to vector<1x256xf32>
    %12 = vector.broadcast %cst_2 : f32 to vector<1x256xf32>
    %13 = arith.select %10, %11, %12 : vector<1x256xi1>, vector<1x256xf32>
    %14 = arith.truncf %13 : vector<1x256xf32> to vector<1x256xbf16>
    %c0 = arith.constant 0 : index
    %c0_3 = arith.constant 0 : index
    %c0_4 = arith.constant 0 : index
    %15 = vector.load %arg1[%c0, %c0_3, %c0_4] : memref<1x32x257xf32, #tpu.memory_space<vmem>>, vector<1x32x257xf32>
    %16 = vector.shape_cast %15 : vector<1x32x257xf32> to vector<32x257xf32>
    %17 = arith.truncf %16 : vector<32x257xf32> to vector<32x257xbf16>
    %c0_5 = arith.constant 0 : index
    %c0_6 = arith.constant 0 : index
    %18 = vector.load %arg2[%c0_5, %c0_6] : memref<257x256xbf16, #tpu.memory_space<vmem>>, vector<257x256xbf16>
    %cst_7 = arith.constant dense<0.000000e+00> : vector<32x256xf32>
    %19 = tpu.matmul %17, %18, %cst_7 {dimension_numbers = #tpu.dot_dimension_numbers<[1], [0], [0], [1], [0, 0, 1, 1], [], []>} : vector<32x257xbf16>, vector<257x256xbf16>, vector<32x256xf32> -> vector<32x256xf32>
    %c0_8 = arith.constant 0 : index
    %c0_9 = arith.constant 0 : index
    %20 = vector.load %arg3[%c0_8, %c0_9] : memref<1x256xf32, #tpu.memory_space<vmem>>, vector<1x256xf32>
    %21 = vector.broadcast %20 : vector<1x256xf32> to vector<32x256xf32>
    %22 = arith.addf %19, %21 : vector<32x256xf32>
    %c0_10 = arith.constant 0 : index
    %c0_11 = arith.constant 0 : index
    %23 = vector.load %arg4[%c0_10, %c0_11] : memref<32x32xbf16, #tpu.memory_space<vmem>>, vector<32x32xbf16>
    %24 = arith.truncf %22 : vector<32x256xf32> to vector<32x256xbf16>
    %cst_12 = arith.constant dense<0.000000e+00> : vector<32x256xf32>
    %25 = tpu.matmul %23, %24, %cst_12 {dimension_numbers = #tpu.dot_dimension_numbers<[1], [0], [0], [1], [0, 0, 1, 1], [], []>} : vector<32x32xbf16>, vector<32x256xbf16>, vector<32x256xf32> -> vector<32x256xf32>
    %c0_13 = arith.constant 0 : index
    %c0_14 = arith.constant 0 : index
    %26 = vector.load %arg5[%c0_13, %c0_14] : memref<32x1xf32, #tpu.memory_space<vmem>>, vector<32x1xf32>
    %27 = vector.broadcast %26 : vector<32x1xf32> to vector<32x256xf32>
    %28 = arith.addf %25, %27 : vector<32x256xf32>
    %c0_15 = arith.constant 0 : index
    %c0_16 = arith.constant 0 : index
    %29 = vector.load %arg6[%c0_15, %c0_16] : memref<32x1xf32, #tpu.memory_space<vmem>>, vector<32x1xf32>
    %c0_17 = arith.constant 0 : index
    %c0_18 = arith.constant 0 : index
    %30 = vector.load %arg7[%c0_17, %c0_18] : memref<32x1xf32, #tpu.memory_space<vmem>>, vector<32x1xf32>
    %c0_19 = arith.constant 0 : index
    %c0_20 = arith.constant 0 : index
    %31 = vector.load %arg9[%c0_19, %c0_20] : memref<32x4xf32, #tpu.memory_space<vmem>>, vector<32x4xf32>
    %c0_21 = arith.constant 0 : index
    %c0_22 = arith.constant 0 : index
    %32 = vector.load %arg8[%c0_21, %c0_22] : memref<4x32xf32, #tpu.memory_space<vmem>>, vector<4x32xf32>
    %cst_23 = arith.constant dense<0.000000e+00> : vector<4x256xf32>
    %33 = tpu.matmul %32, %28, %cst_23 {dimension_numbers = #tpu.dot_dimension_numbers<[1], [0], [0], [1], [0, 0, 1, 1], [], []>} : vector<4x32xf32>, vector<32x256xf32>, vector<4x256xf32> -> vector<4x256xf32>
    %cst_24 = arith.constant dense<0.000000e+00> : vector<32x256xf32>
    %34 = tpu.matmul %31, %33, %cst_24 {dimension_numbers = #tpu.dot_dimension_numbers<[1], [0], [0], [1], [0, 0, 1, 1], [], []>} : vector<32x4xf32>, vector<4x256xf32>, vector<32x256xf32> -> vector<32x256xf32>
    %35 = arith.subf %28, %34 : vector<32x256xf32>
    %c0_25 = arith.constant 0 : index
    %c0_26 = arith.constant 0 : index
    %36 = vector.load %arg9[%c0_25, %c0_26] : memref<32x4xf32, #tpu.memory_space<vmem>>, vector<32x4xf32>
    %c0_27 = arith.constant 0 : index
    %c0_28 = arith.constant 0 : index
    %37 = vector.load %arg8[%c0_27, %c0_28] : memref<4x32xf32, #tpu.memory_space<vmem>>, vector<4x32xf32>
    %38 = arith.mulf %35, %35 : vector<32x256xf32>
    %cst_29 = arith.constant dense<0.000000e+00> : vector<4x256xf32>
    %39 = tpu.matmul %37, %38, %cst_29 {dimension_numbers = #tpu.dot_dimension_numbers<[1], [0], [0], [1], [0, 0, 1, 1], [], []>} : vector<4x32xf32>, vector<32x256xf32>, vector<4x256xf32> -> vector<4x256xf32>
    %cst_30 = arith.constant dense<0.000000e+00> : vector<32x256xf32>
    %40 = tpu.matmul %36, %39, %cst_30 {dimension_numbers = #tpu.dot_dimension_numbers<[1], [0], [0], [1], [0, 0, 1, 1], [], []>} : vector<32x4xf32>, vector<4x256xf32>, vector<32x256xf32> -> vector<32x256xf32>
    %cst_31 = arith.constant 9.99999997E-7 : f32
    %41 = vector.broadcast %cst_31 : f32 to vector<32x256xf32>
    %42 = arith.addf %40, %41 : vector<32x256xf32>
    %43 = math.rsqrt %42 : vector<32x256xf32>
    %44 = arith.mulf %35, %43 : vector<32x256xf32>
    %45 = vector.broadcast %29 : vector<32x1xf32> to vector<32x256xf32>
    %46 = arith.mulf %45, %44 : vector<32x256xf32>
    %47 = vector.broadcast %30 : vector<32x1xf32> to vector<32x256xf32>
    %48 = arith.addf %46, %47 : vector<32x256xf32>
    %cst_32 = arith.constant 5.000000e-01 : f32
    %49 = vector.broadcast %cst_32 : f32 to vector<32x256xf32>
    %50 = arith.mulf %49, %48 : vector<32x256xf32>
    %cst_33 = arith.constant 4.471500e-02 : f32
    %51 = vector.broadcast %cst_33 : f32 to vector<32x256xf32>
    %52 = arith.mulf %51, %48 : vector<32x256xf32>
    %53 = arith.mulf %52, %48 : vector<32x256xf32>
    %54 = arith.mulf %53, %48 : vector<32x256xf32>
    %55 = arith.addf %48, %54 : vector<32x256xf32>
    %cst_34 = arith.constant 0.797884583 : f32
    %56 = vector.broadcast %cst_34 : f32 to vector<32x256xf32>
    %57 = arith.mulf %56, %55 : vector<32x256xf32>
    %58 = math.tanh %57 : vector<32x256xf32>
    %cst_35 = arith.constant 1.000000e+00 : f32
    %59 = vector.broadcast %cst_35 : f32 to vector<32x256xf32>
    %60 = arith.addf %59, %58 : vector<32x256xf32>
    %61 = arith.mulf %50, %60 : vector<32x256xf32>
    %c0_36 = arith.constant 0 : index
    %c0_37 = arith.constant 0 : index
    %62 = vector.load %arg11[%c0_36, %c0_37] : memref<32x1xf32, #tpu.memory_space<vmem>>, vector<32x1xf32>
    %cst_38 = arith.constant 0.000000e+00 : bf16
    %63 = vector.broadcast %cst_38 : bf16 to vector<32x290xbf16>
    %c0_39 = arith.constant 0 : index
    %c0_40 = arith.constant 0 : index
    %64 = vector.load %arg23[%c0_39, %c0_40] : memref<32x290xbf16, #tpu.memory_space<vmem>>, vector<32x290xbf16>
    tpu.vector_store %arg23[%c0_39, %c0_40], %63 {strides = array<i32>} : memref<32x290xbf16, #tpu.memory_space<vmem>>, vector<32x290xbf16>,
    %65 = arith.truncf %61 : vector<32x256xf32> to vector<32x256xbf16>
    %c0_41 = arith.constant 0 : index
    %c17 = arith.constant 17 : index
    %66 = vector.load %arg23[%c0_41, %c17] : memref<32x290xbf16, #tpu.memory_space<vmem>>, vector<32x256xbf16>
    tpu.vector_store %arg23[%c0_41, %c17], %65 {strides = array<i32>} : memref<32x290xbf16, #tpu.memory_space<vmem>>, vector<32x256xbf16>,
    %c0_42 = arith.constant 0 : index
    %c0_43 = arith.constant 0 : index
    %67 = vector.load %arg23[%c0_42, %c0_43] : memref<32x290xbf16, #tpu.memory_space<vmem>>, vector<32x256xbf16>
    %68 = vector.broadcast %8 : vector<1x256xbf16> to vector<32x256xbf16>
    %69 = arith.mulf %67, %68 : vector<32x256xbf16>
    %c0_44 = arith.constant 0 : index
    %c0_45 = arith.constant 0 : index
    %70 = vector.load %arg24[%c0_44, %c0_45] : memref<288x256xbf16, #tpu.memory_space<vmem>>, vector<32x256xbf16>
    tpu.vector_store %arg24[%c0_44, %c0_45], %69 {strides = array<i32>} : memref<288x256xbf16, #tpu.memory_space<vmem>>, vector<32x256xbf16>,
    %c0_46 = arith.constant 0 : index
    %c1 = arith.constant 1 : index
    %71 = vector.load %arg23[%c0_46, %c1] : memref<32x290xbf16, #tpu.memory_space<vmem>>, vector<32x256xbf16>
    %c32 = arith.constant 32 : index
    %c0_47 = arith.constant 0 : index
    %72 = vector.load %arg24[%c32, %c0_47] : memref<288x256xbf16, #tpu.memory_space<vmem>>, vector<32x256xbf16>
    tpu.vector_store %arg24[%c32, %c0_47], %71 {strides = array<i32>} : memref<288x256xbf16, #tpu.memory_space<vmem>>, vector<32x256xbf16>,
    %c0_48 = arith.constant 0 : index
    %c2 = arith.constant 2 : index
    %73 = vector.load %arg23[%c0_48, %c2] : memref<32x290xbf16, #tpu.memory_space<vmem>>, vector<32x256xbf16>
    %74 = vector.broadcast %14 : vector<1x256xbf16> to vector<32x256xbf16>
    %75 = arith.mulf %73, %74 : vector<32x256xbf16>
    %c64 = arith.constant 64 : index
    %c0_49 = arith.constant 0 : index
    %76 = vector.load %arg24[%c64, %c0_49] : memref<288x256xbf16, #tpu.memory_space<vmem>>, vector<32x256xbf16>
    tpu.vector_store %arg24[%c64, %c0_49], %75 {strides = array<i32>} : memref<288x256xbf16, #tpu.memory_space<vmem>>, vector<32x256xbf16>,
    %c0_50 = arith.constant 0 : index
    %c16 = arith.constant 16 : index
    %77 = vector.load %arg23[%c0_50, %c16] : memref<32x290xbf16, #tpu.memory_space<vmem>>, vector<32x256xbf16>
    %78 = vector.broadcast %8 : vector<1x256xbf16> to vector<32x256xbf16>
    %79 = arith.mulf %77, %78 : vector<32x256xbf16>
    %c96 = arith.constant 96 : index
    %c0_51 = arith.constant 0 : index
    %80 = vector.load %arg24[%c96, %c0_51] : memref<288x256xbf16, #tpu.memory_space<vmem>>, vector<32x256xbf16>
    tpu.vector_store %arg24[%c96, %c0_51], %79 {strides = array<i32>} : memref<288x256xbf16, #tpu.memory_space<vmem>>, vector<32x256xbf16>,
    %c0_52 = arith.constant 0 : index
    %c17_53 = arith.constant 17 : index
    %81 = vector.load %arg23[%c0_52, %c17_53] : memref<32x290xbf16, #tpu.memory_space<vmem>>, vector<32x256xbf16>
    %c128 = arith.constant 128 : index
    %c0_54 = arith.constant 0 : index
    %82 = vector.load %arg24[%c128, %c0_54] : memref<288x256xbf16, #tpu.memory_space<vmem>>, vector<32x256xbf16>
    tpu.vector_store %arg24[%c128, %c0_54], %81 {strides = array<i32>} : memref<288x256xbf16, #tpu.memory_space<vmem>>, vector<32x256xbf16>,
    %c0_55 = arith.constant 0 : index
    %c18 = arith.constant 18 : index
    %83 = vector.load %arg23[%c0_55, %c18] : memref<32x290xbf16, #tpu.memory_space<vmem>>, vector<32x256xbf16>
    %84 = vector.broadcast %14 : vector<1x256xbf16> to vector<32x256xbf16>
    %85 = arith.mulf %83, %84 : vector<32x256xbf16>
    %c160 = arith.constant 160 : index
    %c0_56 = arith.constant 0 : index
    %86 = vector.load %arg24[%c160, %c0_56] : memref<288x256xbf16, #tpu.memory_space<vmem>>, vector<32x256xbf16>
    tpu.vector_store %arg24[%c160, %c0_56], %85 {strides = array<i32>} : memref<288x256xbf16, #tpu.memory_space<vmem>>, vector<32x256xbf16>,
    %c0_57 = arith.constant 0 : index
    %c32_58 = arith.constant 32 : index
    %87 = vector.load %arg23[%c0_57, %c32_58] : memref<32x290xbf16, #tpu.memory_space<vmem>>, vector<32x256xbf16>
    %88 = vector.broadcast %8 : vector<1x256xbf16> to vector<32x256xbf16>
    %89 = arith.mulf %87, %88 : vector<32x256xbf16>
    %c192 = arith.constant 192 : index
    %c0_59 = arith.constant 0 : index
    %90 = vector.load %arg24[%c192, %c0_59] : memref<288x256xbf16, #tpu.memory_space<vmem>>, vector<32x256xbf16>
    tpu.vector_store %arg24[%c192, %c0_59], %89 {strides = array<i32>} : memref<288x256xbf16, #tpu.memory_space<vmem>>, vector<32x256xbf16>,
    %c0_60 = arith.constant 0 : index
    %c33 = arith.constant 33 : index
    %91 = vector.load %arg23[%c0_60, %c33] : memref<32x290xbf16, #tpu.memory_space<vmem>>, vector<32x256xbf16>
    %c224 = arith.constant 224 : index
    %c0_61 = arith.constant 0 : index
    %92 = vector.load %arg24[%c224, %c0_61] : memref<288x256xbf16, #tpu.memory_space<vmem>>, vector<32x256xbf16>
    tpu.vector_store %arg24[%c224, %c0_61], %91 {strides = array<i32>} : memref<288x256xbf16, #tpu.memory_space<vmem>>, vector<32x256xbf16>,
    %c0_62 = arith.constant 0 : index
    %c34 = arith.constant 34 : index
    %93 = vector.load %arg23[%c0_62, %c34] : memref<32x290xbf16, #tpu.memory_space<vmem>>, vector<32x256xbf16>
    %94 = vector.broadcast %14 : vector<1x256xbf16> to vector<32x256xbf16>
    %95 = arith.mulf %93, %94 : vector<32x256xbf16>
    %c256 = arith.constant 256 : index
    %c0_63 = arith.constant 0 : index
    %96 = vector.load %arg24[%c256, %c0_63] : memref<288x256xbf16, #tpu.memory_space<vmem>>, vector<32x256xbf16>
    tpu.vector_store %arg24[%c256, %c0_63], %95 {strides = array<i32>} : memref<288x256xbf16, #tpu.memory_space<vmem>>, vector<32x256xbf16>,
    %c0_64 = arith.constant 0 : index
    %c0_65 = arith.constant 0 : index
    %97 = vector.load %arg10[%c0_64, %c0_65] : memref<32x288xbf16, #tpu.memory_space<vmem>>, vector<32x288xbf16>
    %c0_66 = arith.constant 0 : index
    %c0_67 = arith.constant 0 : index
    %98 = vector.load %arg24[%c0_66, %c0_67] : memref<288x256xbf16, #tpu.memory_space<vmem>>, vector<288x256xbf16>
    %cst_68 = arith.constant dense<0.000000e+00> : vector<32x256xf32>
    %99 = tpu.matmul %97, %98, %cst_68 {dimension_numbers = #tpu.dot_dimension_numbers<[1], [0], [0], [1], [0, 0, 1, 1], [], []>} : vector<32x288xbf16>, vector<288x256xbf16>, vector<32x256xf32> -> vector<32x256xf32>
    %100 = vector.broadcast %62 : vector<32x1xf32> to vector<32x256xf32>
    %101 = arith.addf %99, %100 : vector<32x256xf32>
    %cst_69 = arith.constant 5.000000e-01 : f32
    %102 = vector.broadcast %cst_69 : f32 to vector<32x256xf32>
    %103 = arith.mulf %102, %101 : vector<32x256xf32>
    %cst_70 = arith.constant 4.471500e-02 : f32
    %104 = vector.broadcast %cst_70 : f32 to vector<32x256xf32>
    %105 = arith.mulf %104, %101 : vector<32x256xf32>
    %106 = arith.mulf %105, %101 : vector<32x256xf32>
    %107 = arith.mulf %106, %101 : vector<32x256xf32>
    %108 = arith.addf %101, %107 : vector<32x256xf32>
    %cst_71 = arith.constant 0.797884583 : f32
    %109 = vector.broadcast %cst_71 : f32 to vector<32x256xf32>
    %110 = arith.mulf %109, %108 : vector<32x256xf32>
    %111 = math.tanh %110 : vector<32x256xf32>
    %cst_72 = arith.constant 1.000000e+00 : f32
    %112 = vector.broadcast %cst_72 : f32 to vector<32x256xf32>
    %113 = arith.addf %112, %111 : vector<32x256xf32>
    %114 = arith.mulf %103, %113 : vector<32x256xf32>
    %c0_73 = arith.constant 0 : index
    %c0_74 = arith.constant 0 : index
    %115 = vector.load %arg12[%c0_73, %c0_74] : memref<64x32xbf16, #tpu.memory_space<vmem>>, vector<64x32xbf16>
    %116 = arith.truncf %114 : vector<32x256xf32> to vector<32x256xbf16>
    %cst_75 = arith.constant dense<0.000000e+00> : vector<64x256xf32>
    %117 = tpu.matmul %115, %116, %cst_75 {dimension_numbers = #tpu.dot_dimension_numbers<[1], [0], [0], [1], [0, 0, 1, 1], [], []>} : vector<64x32xbf16>, vector<32x256xbf16>, vector<64x256xf32> -> vector<64x256xf32>
    %c0_76 = arith.constant 0 : index
    %c0_77 = arith.constant 0 : index
    %118 = vector.load %arg13[%c0_76, %c0_77] : memref<64x1xf32, #tpu.memory_space<vmem>>, vector<64x1xf32>
    %119 = vector.broadcast %118 : vector<64x1xf32> to vector<64x256xf32>
    %120 = arith.addf %117, %119 : vector<64x256xf32>
    %c0_78 = arith.constant 0 : index
    %c0_79 = arith.constant 0 : index
    %121 = vector.load %arg14[%c0_78, %c0_79] : memref<64x1xf32, #tpu.memory_space<vmem>>, vector<64x1xf32>
    %c0_80 = arith.constant 0 : index
    %c0_81 = arith.constant 0 : index
    %122 = vector.load %arg15[%c0_80, %c0_81] : memref<64x1xf32, #tpu.memory_space<vmem>>, vector<64x1xf32>
    %c0_82 = arith.constant 0 : index
    %c0_83 = arith.constant 0 : index
    %123 = vector.load %arg17[%c0_82, %c0_83] : memref<64x16xf32, #tpu.memory_space<vmem>>, vector<64x16xf32>
    %c0_84 = arith.constant 0 : index
    %c0_85 = arith.constant 0 : index
    %124 = vector.load %arg16[%c0_84, %c0_85] : memref<16x64xf32, #tpu.memory_space<vmem>>, vector<16x64xf32>
    %cst_86 = arith.constant dense<0.000000e+00> : vector<16x256xf32>
    %125 = tpu.matmul %124, %120, %cst_86 {dimension_numbers = #tpu.dot_dimension_numbers<[1], [0], [0], [1], [0, 0, 1, 1], [], []>} : vector<16x64xf32>, vector<64x256xf32>, vector<16x256xf32> -> vector<16x256xf32>
    %cst_87 = arith.constant dense<0.000000e+00> : vector<64x256xf32>
    %126 = tpu.matmul %123, %125, %cst_87 {dimension_numbers = #tpu.dot_dimension_numbers<[1], [0], [0], [1], [0, 0, 1, 1], [], []>} : vector<64x16xf32>, vector<16x256xf32>, vector<64x256xf32> -> vector<64x256xf32>
    %127 = arith.subf %120, %126 : vector<64x256xf32>
    %c0_88 = arith.constant 0 : index
    %c0_89 = arith.constant 0 : index
    %128 = vector.load %arg17[%c0_88, %c0_89] : memref<64x16xf32, #tpu.memory_space<vmem>>, vector<64x16xf32>
    %c0_90 = arith.constant 0 : index
    %c0_91 = arith.constant 0 : index
    %129 = vector.load %arg16[%c0_90, %c0_91] : memref<16x64xf32, #tpu.memory_space<vmem>>, vector<16x64xf32>
    %130 = arith.mulf %127, %127 : vector<64x256xf32>
    %cst_92 = arith.constant dense<0.000000e+00> : vector<16x256xf32>
    %131 = tpu.matmul %129, %130, %cst_92 {dimension_numbers = #tpu.dot_dimension_numbers<[1], [0], [0], [1], [0, 0, 1, 1], [], []>} : vector<16x64xf32>, vector<64x256xf32>, vector<16x256xf32> -> vector<16x256xf32>
    %cst_93 = arith.constant dense<0.000000e+00> : vector<64x256xf32>
    %132 = tpu.matmul %128, %131, %cst_93 {dimension_numbers = #tpu.dot_dimension_numbers<[1], [0], [0], [1], [0, 0, 1, 1], [], []>} : vector<64x16xf32>, vector<16x256xf32>, vector<64x256xf32> -> vector<64x256xf32>
    %cst_94 = arith.constant 9.99999997E-7 : f32
    %133 = vector.broadcast %cst_94 : f32 to vector<64x256xf32>
    %134 = arith.addf %132, %133 : vector<64x256xf32>
    %135 = math.rsqrt %134 : vector<64x256xf32>
    %136 = arith.mulf %127, %135 : vector<64x256xf32>
    %137 = vector.broadcast %121 : vector<64x1xf32> to vector<64x256xf32>
    %138 = arith.mulf %137, %136 : vector<64x256xf32>
    %139 = vector.broadcast %122 : vector<64x1xf32> to vector<64x256xf32>
    %140 = arith.addf %138, %139 : vector<64x256xf32>
    %cst_95 = arith.constant 5.000000e-01 : f32
    %141 = vector.broadcast %cst_95 : f32 to vector<64x256xf32>
    %142 = arith.mulf %141, %140 : vector<64x256xf32>
    %cst_96 = arith.constant 4.471500e-02 : f32
    %143 = vector.broadcast %cst_96 : f32 to vector<64x256xf32>
    %144 = arith.mulf %143, %140 : vector<64x256xf32>
    %145 = arith.mulf %144, %140 : vector<64x256xf32>
    %146 = arith.mulf %145, %140 : vector<64x256xf32>
    %147 = arith.addf %140, %146 : vector<64x256xf32>
    %cst_97 = arith.constant 0.797884583 : f32
    %148 = vector.broadcast %cst_97 : f32 to vector<64x256xf32>
    %149 = arith.mulf %148, %147 : vector<64x256xf32>
    %150 = math.tanh %149 : vector<64x256xf32>
    %cst_98 = arith.constant 1.000000e+00 : f32
    %151 = vector.broadcast %cst_98 : f32 to vector<64x256xf32>
    %152 = arith.addf %151, %150 : vector<64x256xf32>
    %153 = arith.mulf %142, %152 : vector<64x256xf32>
    %c0_99 = arith.constant 0 : index
    %c0_100 = arith.constant 0 : index
    %154 = vector.load %arg19[%c0_99, %c0_100] : memref<64x1xf32, #tpu.memory_space<vmem>>, vector<64x1xf32>
    %cst_101 = arith.constant 0.000000e+00 : bf16
    %155 = vector.broadcast %cst_101 : bf16 to vector<64x290xbf16>
    %c0_102 = arith.constant 0 : index
    %c0_103 = arith.constant 0 : index
    %156 = vector.load %arg25[%c0_102, %c0_103] : memref<64x290xbf16, #tpu.memory_space<vmem>>, vector<64x290xbf16>
    tpu.vector_store %arg25[%c0_102, %c0_103], %155 {strides = array<i32>} : memref<64x290xbf16, #tpu.memory_space<vmem>>, vector<64x290xbf16>,
    %157 = arith.truncf %153 : vector<64x256xf32> to vector<64x256xbf16>
    %c0_104 = arith.constant 0 : index
    %c17_105 = arith.constant 17 : index
    %158 = vector.load %arg25[%c0_104, %c17_105] : memref<64x290xbf16, #tpu.memory_space<vmem>>, vector<64x256xbf16>
    tpu.vector_store %arg25[%c0_104, %c17_105], %157 {strides = array<i32>} : memref<64x290xbf16, #tpu.memory_space<vmem>>, vector<64x256xbf16>,
    %c0_106 = arith.constant 0 : index
    %c0_107 = arith.constant 0 : index
    %159 = vector.load %arg25[%c0_106, %c0_107] : memref<64x290xbf16, #tpu.memory_space<vmem>>, vector<64x256xbf16>
    %160 = vector.broadcast %8 : vector<1x256xbf16> to vector<64x256xbf16>
    %161 = arith.mulf %159, %160 : vector<64x256xbf16>
    %c0_108 = arith.constant 0 : index
    %c0_109 = arith.constant 0 : index
    %162 = vector.load %arg26[%c0_108, %c0_109] : memref<576x256xbf16, #tpu.memory_space<vmem>>, vector<64x256xbf16>
    tpu.vector_store %arg26[%c0_108, %c0_109], %161 {strides = array<i32>} : memref<576x256xbf16, #tpu.memory_space<vmem>>, vector<64x256xbf16>,
    %c0_110 = arith.constant 0 : index
    %c1_111 = arith.constant 1 : index
    %163 = vector.load %arg25[%c0_110, %c1_111] : memref<64x290xbf16, #tpu.memory_space<vmem>>, vector<64x256xbf16>
    %c64_112 = arith.constant 64 : index
    %c0_113 = arith.constant 0 : index
    %164 = vector.load %arg26[%c64_112, %c0_113] : memref<576x256xbf16, #tpu.memory_space<vmem>>, vector<64x256xbf16>
    tpu.vector_store %arg26[%c64_112, %c0_113], %163 {strides = array<i32>} : memref<576x256xbf16, #tpu.memory_space<vmem>>, vector<64x256xbf16>,
    %c0_114 = arith.constant 0 : index
    %c2_115 = arith.constant 2 : index
    %165 = vector.load %arg25[%c0_114, %c2_115] : memref<64x290xbf16, #tpu.memory_space<vmem>>, vector<64x256xbf16>
    %166 = vector.broadcast %14 : vector<1x256xbf16> to vector<64x256xbf16>
    %167 = arith.mulf %165, %166 : vector<64x256xbf16>
    %c128_116 = arith.constant 128 : index
    %c0_117 = arith.constant 0 : index
    %168 = vector.load %arg26[%c128_116, %c0_117] : memref<576x256xbf16, #tpu.memory_space<vmem>>, vector<64x256xbf16>
    tpu.vector_store %arg26[%c128_116, %c0_117], %167 {strides = array<i32>} : memref<576x256xbf16, #tpu.memory_space<vmem>>, vector<64x256xbf16>,
    %c0_118 = arith.constant 0 : index
    %c16_119 = arith.constant 16 : index
    %169 = vector.load %arg25[%c0_118, %c16_119] : memref<64x290xbf16, #tpu.memory_space<vmem>>, vector<64x256xbf16>
    %170 = vector.broadcast %8 : vector<1x256xbf16> to vector<64x256xbf16>
    %171 = arith.mulf %169, %170 : vector<64x256xbf16>
    %c192_120 = arith.constant 192 : index
    %c0_121 = arith.constant 0 : index
    %172 = vector.load %arg26[%c192_120, %c0_121] : memref<576x256xbf16, #tpu.memory_space<vmem>>, vector<64x256xbf16>
    tpu.vector_store %arg26[%c192_120, %c0_121], %171 {strides = array<i32>} : memref<576x256xbf16, #tpu.memory_space<vmem>>, vector<64x256xbf16>,
    %c0_122 = arith.constant 0 : index
    %c17_123 = arith.constant 17 : index
    %173 = vector.load %arg25[%c0_122, %c17_123] : memref<64x290xbf16, #tpu.memory_space<vmem>>, vector<64x256xbf16>
    %c256_124 = arith.constant 256 : index
    %c0_125 = arith.constant 0 : index
    %174 = vector.load %arg26[%c256_124, %c0_125] : memref<576x256xbf16, #tpu.memory_space<vmem>>, vector<64x256xbf16>
    tpu.vector_store %arg26[%c256_124, %c0_125], %173 {strides = array<i32>} : memref<576x256xbf16, #tpu.memory_space<vmem>>, vector<64x256xbf16>,
    %c0_126 = arith.constant 0 : index
    %c18_127 = arith.constant 18 : index
    %175 = vector.load %arg25[%c0_126, %c18_127] : memref<64x290xbf16, #tpu.memory_space<vmem>>, vector<64x256xbf16>
    %176 = vector.broadcast %14 : vector<1x256xbf16> to vector<64x256xbf16>
    %177 = arith.mulf %175, %176 : vector<64x256xbf16>
    %c320 = arith.constant 320 : index
    %c0_128 = arith.constant 0 : index
    %178 = vector.load %arg26[%c320, %c0_128] : memref<576x256xbf16, #tpu.memory_space<vmem>>, vector<64x256xbf16>
    tpu.vector_store %arg26[%c320, %c0_128], %177 {strides = array<i32>} : memref<576x256xbf16, #tpu.memory_space<vmem>>, vector<64x256xbf16>,
    %c0_129 = arith.constant 0 : index
    %c32_130 = arith.constant 32 : index
    %179 = vector.load %arg25[%c0_129, %c32_130] : memref<64x290xbf16, #tpu.memory_space<vmem>>, vector<64x256xbf16>
    %180 = vector.broadcast %8 : vector<1x256xbf16> to vector<64x256xbf16>
    %181 = arith.mulf %179, %180 : vector<64x256xbf16>
    %c384 = arith.constant 384 : index
    %c0_131 = arith.constant 0 : index
    %182 = vector.load %arg26[%c384, %c0_131] : memref<576x256xbf16, #tpu.memory_space<vmem>>, vector<64x256xbf16>
    tpu.vector_store %arg26[%c384, %c0_131], %181 {strides = array<i32>} : memref<576x256xbf16, #tpu.memory_space<vmem>>, vector<64x256xbf16>,
    %c0_132 = arith.constant 0 : index
    %c33_133 = arith.constant 33 : index
    %183 = vector.load %arg25[%c0_132, %c33_133] : memref<64x290xbf16, #tpu.memory_space<vmem>>, vector<64x256xbf16>
    %c448 = arith.constant 448 : index
    %c0_134 = arith.constant 0 : index
    %184 = vector.load %arg26[%c448, %c0_134] : memref<576x256xbf16, #tpu.memory_space<vmem>>, vector<64x256xbf16>
    tpu.vector_store %arg26[%c448, %c0_134], %183 {strides = array<i32>} : memref<576x256xbf16, #tpu.memory_space<vmem>>, vector<64x256xbf16>,
    %c0_135 = arith.constant 0 : index
    %c34_136 = arith.constant 34 : index
    %185 = vector.load %arg25[%c0_135, %c34_136] : memref<64x290xbf16, #tpu.memory_space<vmem>>, vector<64x256xbf16>
    %186 = vector.broadcast %14 : vector<1x256xbf16> to vector<64x256xbf16>
    %187 = arith.mulf %185, %186 : vector<64x256xbf16>
    %c512 = arith.constant 512 : index
    %c0_137 = arith.constant 0 : index
    %188 = vector.load %arg26[%c512, %c0_137] : memref<576x256xbf16, #tpu.memory_space<vmem>>, vector<64x256xbf16>
    tpu.vector_store %arg26[%c512, %c0_137], %187 {strides = array<i32>} : memref<576x256xbf16, #tpu.memory_space<vmem>>, vector<64x256xbf16>,
    %c0_138 = arith.constant 0 : index
    %c0_139 = arith.constant 0 : index
    %189 = vector.load %arg18[%c0_138, %c0_139] : memref<64x576xbf16, #tpu.memory_space<vmem>>, vector<64x576xbf16>
    %c0_140 = arith.constant 0 : index
    %c0_141 = arith.constant 0 : index
    %190 = vector.load %arg26[%c0_140, %c0_141] : memref<576x256xbf16, #tpu.memory_space<vmem>>, vector<576x256xbf16>
    %cst_142 = arith.constant dense<0.000000e+00> : vector<64x256xf32>
    %191 = tpu.matmul %189, %190, %cst_142 {dimension_numbers = #tpu.dot_dimension_numbers<[1], [0], [0], [1], [0, 0, 1, 1], [], []>} : vector<64x576xbf16>, vector<576x256xbf16>, vector<64x256xf32> -> vector<64x256xf32>
    %192 = vector.broadcast %154 : vector<64x1xf32> to vector<64x256xf32>
    %193 = arith.addf %191, %192 : vector<64x256xf32>
    %cst_143 = arith.constant 5.000000e-01 : f32
    %194 = vector.broadcast %cst_143 : f32 to vector<64x256xf32>
    %195 = arith.mulf %194, %193 : vector<64x256xf32>
    %cst_144 = arith.constant 4.471500e-02 : f32
    %196 = vector.broadcast %cst_144 : f32 to vector<64x256xf32>
    %197 = arith.mulf %196, %193 : vector<64x256xf32>
    %198 = arith.mulf %197, %193 : vector<64x256xf32>
    %199 = arith.mulf %198, %193 : vector<64x256xf32>
    %200 = arith.addf %193, %199 : vector<64x256xf32>
    %cst_145 = arith.constant 0.797884583 : f32
    %201 = vector.broadcast %cst_145 : f32 to vector<64x256xf32>
    %202 = arith.mulf %201, %200 : vector<64x256xf32>
    %203 = math.tanh %202 : vector<64x256xf32>
    %cst_146 = arith.constant 1.000000e+00 : f32
    %204 = vector.broadcast %cst_146 : f32 to vector<64x256xf32>
    %205 = arith.addf %204, %203 : vector<64x256xf32>
    %206 = arith.mulf %195, %205 : vector<64x256xf32>
    %c0_147 = arith.constant 0 : index
    %c0_148 = arith.constant 0 : index
    %207 = vector.load %arg20[%c0_147, %c0_148] : memref<64x64xbf16, #tpu.memory_space<vmem>>, vector<64x64xbf16>
    %208 = arith.truncf %206 : vector<64x256xf32> to vector<64x256xbf16>
    %cst_149 = arith.constant dense<0.000000e+00> : vector<64x256xf32>
    %209 = tpu.matmul %207, %208, %cst_149 {dimension_numbers = #tpu.dot_dimension_numbers<[1], [0], [0], [1], [0, 0, 1, 1], [], []>} : vector<64x64xbf16>, vector<64x256xbf16>, vector<64x256xf32> -> vector<64x256xf32>
    %c0_150 = arith.constant 0 : index
    %c0_151 = arith.constant 0 : index
    %210 = vector.load %arg21[%c0_150, %c0_151] : memref<64x1xf32, #tpu.memory_space<vmem>>, vector<64x1xf32>
    %211 = vector.broadcast %210 : vector<64x1xf32> to vector<64x256xf32>
    %212 = arith.addf %209, %211 : vector<64x256xf32>
    %cst_152 = arith.constant 5.000000e-01 : f32
    %213 = vector.broadcast %cst_152 : f32 to vector<64x256xf32>
    %214 = arith.mulf %213, %212 : vector<64x256xf32>
    %215 = math.tanh %214 : vector<64x256xf32>
    %cst_153 = arith.constant 1.000000e+00 : f32
    %216 = vector.broadcast %cst_153 : f32 to vector<64x256xf32>
    %217 = arith.addf %215, %216 : vector<64x256xf32>
    %cst_154 = arith.constant 5.000000e-01 : f32
    %218 = vector.broadcast %cst_154 : f32 to vector<64x256xf32>
    %219 = arith.mulf %218, %217 : vector<64x256xf32>
    %c0_155 = arith.constant 0 : index
    %c0_156 = arith.constant 0 : index
    %c0_157 = arith.constant 0 : index
    %220 = vector.load %arg22[%c0_155, %c0_156, %c0_157] : memref<1x64x256xf32, #tpu.memory_space<vmem>>, vector<1x64x256xf32>
    %221 = vector.shape_cast %220 : vector<1x64x256xf32> to vector<64x256xf32>
    %222 = vector.shape_cast %219 : vector<64x256xf32> to vector<1x64x256xf32>
    tpu.vector_store %arg22[%c0_155, %c0_156, %c0_157], %222 {strides = array<i32>} : memref<1x64x256xf32, #tpu.memory_space<vmem>>, vector<1x64x256xf32>,
    return
  }
  func.func @transform_0(%arg0: i32) -> (i32, i32, i32) {
    %c0_i32 = arith.constant 0 : i32
    %c0_i32_0 = arith.constant 0 : i32
    %c0_i32_1 = arith.constant 0 : i32
    return %arg0, %c0_i32, %c0_i32_0 : i32, i32, i32
  }
  func.func @transform_1(%arg0: i32) -> (i32, i32) {
    %c0_i32 = arith.constant 0 : i32
    %c0_i32_0 = arith.constant 0 : i32
    %c0_i32_1 = arith.constant 0 : i32
    return %c0_i32, %c0_i32_0 : i32, i32
  }
  func.func @transform_2(%arg0: i32) -> (i32, i32) {
    %c0_i32 = arith.constant 0 : i32
    %c0_i32_0 = arith.constant 0 : i32
    %c0_i32_1 = arith.constant 0 : i32
    return %c0_i32, %c0_i32_0 : i32, i32
  }
  func.func @transform_3(%arg0: i32) -> (i32, i32) {
    %c0_i32 = arith.constant 0 : i32
    %c0_i32_0 = arith.constant 0 : i32
    %c0_i32_1 = arith.constant 0 : i32
    return %c0_i32, %c0_i32_0 : i32, i32
  }
  func.func @transform_4(%arg0: i32) -> (i32, i32) {
    %c0_i32 = arith.constant 0 : i32
    %c0_i32_0 = arith.constant 0 : i32
    %c0_i32_1 = arith.constant 0 : i32
    return %c0_i32, %c0_i32_0 : i32, i32
  }
  func.func @transform_5(%arg0: i32) -> (i32, i32) {
    %c0_i32 = arith.constant 0 : i32
    %c0_i32_0 = arith.constant 0 : i32
    %c0_i32_1 = arith.constant 0 : i32
    return %c0_i32, %c0_i32_0 : i32, i32
  }
  func.func @transform_6(%arg0: i32) -> (i32, i32) {
    %c0_i32 = arith.constant 0 : i32
    %c0_i32_0 = arith.constant 0 : i32
    %c0_i32_1 = arith.constant 0 : i32
    return %c0_i32, %c0_i32_0 : i32, i32
  }
  func.func @transform_7(%arg0: i32) -> (i32, i32) {
    %c0_i32 = arith.constant 0 : i32
    %c0_i32_0 = arith.constant 0 : i32
    %c0_i32_1 = arith.constant 0 : i32
    return %c0_i32, %c0_i32_0 : i32, i32
  }
  func.func @transform_8(%arg0: i32) -> (i32, i32) {
    %c0_i32 = arith.constant 0 : i32
    %c0_i32_0 = arith.constant 0 : i32
    %c0_i32_1 = arith.constant 0 : i32
    return %c0_i32, %c0_i32_0 : i32, i32
  }
  func.func @transform_9(%arg0: i32) -> (i32, i32) {
    %c0_i32 = arith.constant 0 : i32
    %c0_i32_0 = arith.constant 0 : i32
    %c0_i32_1 = arith.constant 0 : i32
    return %c0_i32, %c0_i32_0 : i32, i32
  }
  func.func @transform_10(%arg0: i32) -> (i32, i32) {
    %c0_i32 = arith.constant 0 : i32
    %c0_i32_0 = arith.constant 0 : i32
    %c0_i32_1 = arith.constant 0 : i32
    return %c0_i32, %c0_i32_0 : i32, i32
  }
  func.func @transform_11(%arg0: i32) -> (i32, i32) {
    %c0_i32 = arith.constant 0 : i32
    %c0_i32_0 = arith.constant 0 : i32
    %c0_i32_1 = arith.constant 0 : i32
    return %c0_i32, %c0_i32_0 : i32, i32
  }
  func.func @transform_12(%arg0: i32) -> (i32, i32) {
    %c0_i32 = arith.constant 0 : i32
    %c0_i32_0 = arith.constant 0 : i32
    %c0_i32_1 = arith.constant 0 : i32
    return %c0_i32, %c0_i32_0 : i32, i32
  }
  func.func @transform_13(%arg0: i32) -> (i32, i32) {
    %c0_i32 = arith.constant 0 : i32
    %c0_i32_0 = arith.constant 0 : i32
    %c0_i32_1 = arith.constant 0 : i32
    return %c0_i32, %c0_i32_0 : i32, i32
  }
  func.func @transform_14(%arg0: i32) -> (i32, i32) {
    %c0_i32 = arith.constant 0 : i32
    %c0_i32_0 = arith.constant 0 : i32
    %c0_i32_1 = arith.constant 0 : i32
    return %c0_i32, %c0_i32_0 : i32, i32
  }
  func.func @transform_15(%arg0: i32) -> (i32, i32) {
    %c0_i32 = arith.constant 0 : i32
    %c0_i32_0 = arith.constant 0 : i32
    %c0_i32_1 = arith.constant 0 : i32
    return %c0_i32, %c0_i32_0 : i32, i32
  }
  func.func @transform_16(%arg0: i32) -> (i32, i32) {
    %c0_i32 = arith.constant 0 : i32
    %c0_i32_0 = arith.constant 0 : i32
    %c0_i32_1 = arith.constant 0 : i32
    return %c0_i32, %c0_i32_0 : i32, i32
  }
  func.func @transform_17(%arg0: i32) -> (i32, i32) {
    %c0_i32 = arith.constant 0 : i32
    %c0_i32_0 = arith.constant 0 : i32
    %c0_i32_1 = arith.constant 0 : i32
    return %c0_i32, %c0_i32_0 : i32, i32
  }
  func.func @transform_18(%arg0: i32) -> (i32, i32) {
    %c0_i32 = arith.constant 0 : i32
    %c0_i32_0 = arith.constant 0 : i32
    %c0_i32_1 = arith.constant 0 : i32
    return %c0_i32, %c0_i32_0 : i32, i32
  }
  func.func @transform_19(%arg0: i32) -> (i32, i32) {
    %c0_i32 = arith.constant 0 : i32
    %c0_i32_0 = arith.constant 0 : i32
    %c0_i32_1 = arith.constant 0 : i32
    return %c0_i32, %c0_i32_0 : i32, i32
  }
  func.func @transform_20(%arg0: i32) -> (i32, i32) {
    %c0_i32 = arith.constant 0 : i32
    %c0_i32_0 = arith.constant 0 : i32
    %c0_i32_1 = arith.constant 0 : i32
    return %c0_i32, %c0_i32_0 : i32, i32
  }
  func.func @transform_21(%arg0: i32) -> (i32, i32, i32) {
    %c0_i32 = arith.constant 0 : i32
    %c0_i32_0 = arith.constant 0 : i32
    %c0_i32_1 = arith.constant 0 : i32
    return %arg0, %c0_i32, %c0_i32_0 : i32, i32, i32
  }
}

</mosaic_0001>

<llo_original>
// kernel: mask_decoder_forward.1
$region0: #{mask_decoder_forward.1}
  #allocation0 [shape = 'u32[]', space=smem, size = 0x4, offset = 0x4, fixed_abs, tag = 'smem constant byte address 0x4 - core index']
  #allocation1 [shape = 'u32[144,128]{1,0:T(1,128)}', space=vmem, size = 0x12000, scoped, tag = 'internal scratch']
  #allocation2 [shape = 'bf16[32,290]{1,0:T(16,128)(2,1)}', space=vmem, size = 0x6000, scoped, tag = 'scratch operand']
  #allocation3 [shape = 'bf16[288,256]{1,0:T(16,128)(2,1)}', space=vmem, size = 0x24000, scoped, tag = 'scratch operand']
  #allocation4 [shape = 'bf16[64,290]{1,0:T(16,128)(2,1)}', space=vmem, size = 0xc000, scoped, tag = 'scratch operand']
  #allocation5 [shape = 'bf16[576,256]{1,0:T(16,128)(2,1)}', space=vmem, size = 0x48000, scoped, tag = 'scratch operand']
  %s0 = inlined_call_operand.hbm [shape: f32[2,32,257], index: 0, kind: input, shape index: {}]
  %s1 = inlined_call_operand.hbm [shape: bf16[257,256], index: 1, kind: input, shape index: {}]
  %s2 = inlined_call_operand.hbm [shape: f32[1,256], index: 2, kind: input, shape index: {}]
  %s3 = inlined_call_operand.hbm [shape: bf16[32,32], index: 3, kind: input, shape index: {}]
  %s4 = inlined_call_operand.vmem [shape: f32[32,1], index: 4, kind: input, shape index: {}]
  %s5 = inlined_call_operand.vmem [shape: f32[32,1], index: 5, kind: input, shape index: {}]
  %s6 = inlined_call_operand.vmem [shape: f32[32,1], index: 6, kind: input, shape index: {}]
  %s7 = inlined_call_operand.hbm [shape: f32[4,32], index: 7, kind: input, shape index: {}]
  %s8 = inlined_call_operand.vmem [shape: f32[32,4], index: 8, kind: input, shape index: {}]
  %s9 = inlined_call_operand.hbm [shape: bf16[32,288], index: 9, kind: input, shape index: {}]
  %s10 = inlined_call_operand.vmem [shape: f32[32,1], index: 10, kind: input, shape index: {}]
  %s11 = inlined_call_operand.vmem [shape: bf16[64,32], index: 11, kind: input, shape index: {}]
  %s12 = inlined_call_operand.vmem [shape: f32[64,1], index: 12, kind: input, shape index: {}]
  %s13 = inlined_call_operand.vmem [shape: f32[64,1], index: 13, kind: input, shape index: {}]
  %s14 = inlined_call_operand.vmem [shape: f32[64,1], index: 14, kind: input, shape index: {}]
  %s15 = inlined_call_operand.hbm [shape: f32[16,64], index: 15, kind: input, shape index: {}]
  %s16 = inlined_call_operand.vmem [shape: f32[64,16], index: 16, kind: input, shape index: {}]
  %s17 = inlined_call_operand.hbm [shape: bf16[64,576], index: 17, kind: input, shape index: {}]
  %s18 = inlined_call_operand.vmem [shape: f32[64,1], index: 18, kind: input, shape index: {}]
  %s19 = inlined_call_operand.hbm [shape: bf16[64,64], index: 19, kind: input, shape index: {}]
  %s20 = inlined_call_operand.vmem [shape: f32[64,1], index: 20, kind: input, shape index: {}]
  %s21 = inlined_call_operand.vmem [shape: f32[2,64,256], index: 21, kind: output, shape index: {}]
  %s22 = sld [smem:[#allocation0]]
  $region153: #{mask_decoder_forward.1} parent=0
    _
  %s24 = ssub.s32 1, %s22
  %s25 = scalar_select 0, %s24, %s22
  $region1: #{mask_decoder_forward.1} parent=0
    #allocation6 [shape = 'u8[98304]{0}', space=vmem, size = 0x18000, scoped, tag = 'input window, operand 0']
    #allocation7 [shape = 's32[2]{0}', space=sflag, size = 0x8, scoped, tag = 'scoped memory for mask_decoder_forward.1']
    #allocation8 [shape = 'u8[135168]{0}', space=vmem, size = 0x21000, scoped, tag = 'input window, operand 1, single buffered']
    #allocation9 [shape = 's32[1]{0}', space=sflag, size = 0x4, scoped, tag = 'scoped memory for mask_decoder_forward.1']
    #allocation10 [shape = 'u8[1024]{0}', space=vmem, size = 0x400, scoped, tag = 'input window, operand 2, single buffered']
    #allocation11 [shape = 'u8[8192]{0}', space=vmem, size = 0x2000, scoped, tag = 'input window, operand 3, single buffered']
    #allocation12 [shape = 's32[1]{0}', space=sflag, size = 0x4, scoped, tag = 'scoped memory for mask_decoder_forward.1']
    #allocation13 [shape = 'u8[2048]{0}', space=vmem, size = 0x800, scoped, tag = 'input window, operand 7, single buffered']
    #allocation14 [shape = 'u8[24576]{0}', space=vmem, size = 0x6000, scoped, tag = 'input window, operand 9, single buffered']
    #allocation15 [shape = 's32[1]{0}', space=sflag, size = 0x4, scoped, tag = 'scoped memory for mask_decoder_forward.1']
    #allocation16 [shape = 'u8[8192]{0}', space=vmem, size = 0x2000, scoped, tag = 'input window, operand 15, single buffered']
    #allocation17 [shape = 'u8[81920]{0}', space=vmem, size = 0x14000, scoped, tag = 'input window, operand 17, single buffered']
    #allocation18 [shape = 's32[1]{0}', space=sflag, size = 0x4, scoped, tag = 'scoped memory for mask_decoder_forward.1']
    #allocation19 [shape = 'u8[16384]{0}', space=vmem, size = 0x4000, scoped, tag = 'input window, operand 19, single buffered']
    %26 = vsyncpa [#allocation7], 0
    %s27 = scalar_lea.sflag [#allocation7], 1
    %28 = vsyncpa %s27, 0
    %29 = vsyncpa [#allocation9], 0
    %30 = vsyncpa [#allocation12], 0
    %31 = vsyncpa [#allocation15], 0
    %32 = vsyncpa [#allocation18], 0
    loop: start=0, step=1, limit=4
    $region2: #{mask_decoder_forward.1} parent=1 // loop_pre_header
      _
    $region3: #{mask_decoder_forward.1} parent=1 // loop_header
      %s34 = sphi 0, %s38
      %p35 = scmp.ge.s32.totalorder %s34, 4
      %s44 = sphi 0, %s46
      %s47 = sphi 0, %s44
      %s48 = sphi 0, %s47
      %s64 = sphi 0, %s48
      %s68 = sphi 0, %s68
      %s70 = sphi 0, %s68
      %s71 = sphi 0, %s70
      %s85 = sphi 0, %s71
      %s89 = sphi 0, %s89
      %s91 = sphi 0, %s89
      %s92 = sphi 0, %s91
      %s106 = sphi 0, %s92
      %s110 = sphi 0, %s110
      %s112 = sphi 0, %s110
      %s113 = sphi 0, %s112
      %s127 = sphi 0, %s113
      %s131 = sphi 0, %s131
      %s133 = sphi 0, %s131
      %s134 = sphi 0, %s133
      %s148 = sphi 0, %s134
      %s152 = sphi 0, %s152
      %s154 = sphi 0, %s152
      %s155 = sphi 0, %s154
      %s169 = sphi 0, %s155
      %s173 = sphi 0, %s173
      %s175 = sphi 0, %s173
      %s176 = sphi 0, %s175
      %s190 = sphi 0, %s176
      %s194 = sphi 0, %s194
      %s196 = sphi 0, %s194
      %s197 = sphi 0, %s196
      %s211 = sphi 0, %s197
      %s215 = sphi 0, %s215
      %s217 = sphi 0, %s215
      %s218 = sphi 0, %s217
      %s232 = sphi 0, %s218
      %s236 = sphi 0, %s236
      %s238 = sphi 0, %s236
      %s239 = sphi 0, %s238
      %s253 = sphi 0, %s239
      %s257 = sphi 0, %s257
      %s259 = sphi 0, %s257
      %s260 = sphi 0, %s259
      %s274 = sphi 0, %s260
      %s278 = sphi 0, %s278
      %s280 = sphi 0, %s278
      %s281 = sphi 0, %s280
      %s295 = sphi 0, %s281
      %s299 = sphi 0, %s299
      %s301 = sphi 0, %s299
      %s302 = sphi 0, %s301
      %s316 = sphi 0, %s302
      %s320 = sphi 0, %s320
      %s322 = sphi 0, %s320
      %s323 = sphi 0, %s322
      %s337 = sphi 0, %s323
      %s341 = sphi 0, %s341
      %s343 = sphi 0, %s341
      %s344 = sphi 0, %s343
      %s358 = sphi 0, %s344
      %s362 = sphi 0, %s362
      %s364 = sphi 0, %s362
      %s365 = sphi 0, %s364
      %s379 = sphi 0, %s365
      %s383 = sphi 0, %s383
      %s385 = sphi 0, %s383
      %s386 = sphi 0, %s385
      %s400 = sphi 0, %s386
      %s404 = sphi 0, %s404
      %s406 = sphi 0, %s404
      %s407 = sphi 0, %s406
      %s421 = sphi 0, %s407
      %s425 = sphi 0, %s425
      %s427 = sphi 0, %s425
      %s428 = sphi 0, %s427
      %s442 = sphi 0, %s428
      %s446 = sphi 0, %s446
      %s448 = sphi 0, %s446
      %s449 = sphi 0, %s448
      %s463 = sphi 0, %s449
      %s467 = sphi 0, %s467
      %s469 = sphi 0, %s467
      %s470 = sphi 0, %s469
      %s484 = sphi 0, %s470
      %s490 = sphi 0, %s492
      %s493 = sphi 0, %s490
      %s494 = sphi 0, %s493
      %s510 = sphi 0, %s494
    $region4: #{mask_decoder_forward.1} parent=1 // loop_header_branch
      %37 = sbr.rel (%p35) target = $region8
    $region5: #{mask_decoder_forward.1} parent=1 // loop_body
      %s39 = ssub.s32 %s34, 1
      %s40 = ssub.s32 %s34, 2
      %s41 = sadd.s32 %s34, 1
      %s42 = ssub.s32 %s34, %s41
      %p43 = scmp.eq.s32.totalorder %s42, 0
      %s45 = sadd.s32 %s44, 1
      %s46 = scalar_select %p43, %s44, %s45
      %p49 = pneg %p43
      %p50 = scmp.eq.s32.totalorder %s34, 1
      %p51 = por %p49, %p50
      %p52 = scmp.ne.s32.totalorder %s44, %s47
      %p53 = scmp.eq.s32.totalorder %s34, 0
      %p54 = por %p52, %p53
      %p55 = scmp.ne.s32.totalorder %s44, %s47
      %p56 = scmp.eq.s32.totalorder %s39, 1
      %p57 = por %p55, %p56
      %p58 = scmp.ne.s32.totalorder %s47, %s48
      %p59 = scmp.eq.s32.totalorder %s39, 0
      %p60 = por %p58, %p59
      %p61 = scmp.ne.s32.totalorder %s47, %s48
      %p62 = scmp.eq.s32.totalorder %s40, 1
      %p63 = por %p61, %p62
      %p65 = scmp.ne.s32.totalorder %s48, %s64
      %p66 = scmp.eq.s32.totalorder %s40, 0
      %p67 = por %p65, %p66
      %s69 = sadd.s32 %s68, 1
      %p72 = scmp.eq.s32.totalorder %s34, 1
      %p73 = scmp.ne.s32.totalorder %s68, %s70
      %p74 = scmp.eq.s32.totalorder %s34, 0
      %p75 = por %p73, %p74
      %p76 = scmp.ne.s32.totalorder %s68, %s70
      %p77 = scmp.eq.s32.totalorder %s39, 1
      %p78 = por %p76, %p77
      %p79 = scmp.ne.s32.totalorder %s70, %s71
      %p80 = scmp.eq.s32.totalorder %s39, 0
      %p81 = por %p79, %p80
      %p82 = scmp.ne.s32.totalorder %s70, %s71
      %p83 = scmp.eq.s32.totalorder %s40, 1
      %p84 = por %p82, %p83
      %p86 = scmp.ne.s32.totalorder %s71, %s85
      %p87 = scmp.eq.s32.totalorder %s40, 0
      %p88 = por %p86, %p87
      %s90 = sadd.s32 %s89, 1
      %p93 = scmp.eq.s32.totalorder %s34, 1
      %p94 = scmp.ne.s32.totalorder %s89, %s91
      %p95 = scmp.eq.s32.totalorder %s34, 0
      %p96 = por %p94, %p95
      %p97 = scmp.ne.s32.totalorder %s89, %s91
      %p98 = scmp.eq.s32.totalorder %s39, 1
      %p99 = por %p97, %p98
      %p100 = scmp.ne.s32.totalorder %s91, %s92
      %p101 = scmp.eq.s32.totalorder %s39, 0
      %p102 = por %p100, %p101
      %p103 = scmp.ne.s32.totalorder %s91, %s92
      %p104 = scmp.eq.s32.totalorder %s40, 1
      %p105 = por %p103, %p104
      %p107 = scmp.ne.s32.totalorder %s92, %s106
      %p108 = scmp.eq.s32.totalorder %s40, 0
      %p109 = por %p107, %p108
      %s111 = sadd.s32 %s110, 1
      %p114 = scmp.eq.s32.totalorder %s34, 1
      %p115 = scmp.ne.s32.totalorder %s110, %s112
      %p116 = scmp.eq.s32.totalorder %s34, 0
      %p117 = por %p115, %p116
      %p118 = scmp.ne.s32.totalorder %s110, %s112
      %p119 = scmp.eq.s32.totalorder %s39, 1
      %p120 = por %p118, %p119
      %p121 = scmp.ne.s32.totalorder %s112, %s113
      %p122 = scmp.eq.s32.totalorder %s39, 0
      %p123 = por %p121, %p122
      %p124 = scmp.ne.s32.totalorder %s112, %s113
      %p125 = scmp.eq.s32.totalorder %s40, 1
      %p126 = por %p124, %p125
      %p128 = scmp.ne.s32.totalorder %s113, %s127
      %p129 = scmp.eq.s32.totalorder %s40, 0
      %p130 = por %p128, %p129
      %s132 = sadd.s32 %s131, 1
      %p135 = scmp.eq.s32.totalorder %s34, 1
      %p136 = scmp.ne.s32.totalorder %s131, %s133
      %p137 = scmp.eq.s32.totalorder %s34, 0
      %p138 = por %p136, %p137
      %p139 = scmp.ne.s32.totalorder %s131, %s133
      %p140 = scmp.eq.s32.totalorder %s39, 1
      %p141 = por %p139, %p140
      %p142 = scmp.ne.s32.totalorder %s133, %s134
      %p143 = scmp.eq.s32.totalorder %s39, 0
      %p144 = por %p142, %p143
      %p145 = scmp.ne.s32.totalorder %s133, %s134
      %p146 = scmp.eq.s32.totalorder %s40, 1
      %p147 = por %p145, %p146
      %p149 = scmp.ne.s32.totalorder %s134, %s148
      %p150 = scmp.eq.s32.totalorder %s40, 0
      %p151 = por %p149, %p150
      %s153 = sadd.s32 %s152, 1
      %p156 = scmp.eq.s32.totalorder %s34, 1
      %p157 = scmp.ne.s32.totalorder %s152, %s154
      %p158 = scmp.eq.s32.totalorder %s34, 0
      %p159 = por %p157, %p158
      %p160 = scmp.ne.s32.totalorder %s152, %s154
      %p161 = scmp.eq.s32.totalorder %s39, 1
      %p162 = por %p160, %p161
      %p163 = scmp.ne.s32.totalorder %s154, %s155
      %p164 = scmp.eq.s32.totalorder %s39, 0
      %p165 = por %p163, %p164
      %p166 = scmp.ne.s32.totalorder %s154, %s155
      %p167 = scmp.eq.s32.totalorder %s40, 1
      %p168 = por %p166, %p167
      %p170 = scmp.ne.s32.totalorder %s155, %s169
      %p171 = scmp.eq.s32.totalorder %s40, 0
      %p172 = por %p170, %p171
      %s174 = sadd.s32 %s173, 1
      %p177 = scmp.eq.s32.totalorder %s34, 1
      %p178 = scmp.ne.s32.totalorder %s173, %s175
      %p179 = scmp.eq.s32.totalorder %s34, 0
      %p180 = por %p178, %p179
      %p181 = scmp.ne.s32.totalorder %s173, %s175
      %p182 = scmp.eq.s32.totalorder %s39, 1
      %p183 = por %p181, %p182
      %p184 = scmp.ne.s32.totalorder %s175, %s176
      %p185 = scmp.eq.s32.totalorder %s39, 0
      %p186 = por %p184, %p185
      %p187 = scmp.ne.s32.totalorder %s175, %s176
      %p188 = scmp.eq.s32.totalorder %s40, 1
      %p189 = por %p187, %p188
      %p191 = scmp.ne.s32.totalorder %s176, %s190
      %p192 = scmp.eq.s32.totalorder %s40, 0
      %p193 = por %p191, %p192
      %s195 = sadd.s32 %s194, 1
      %p198 = scmp.eq.s32.totalorder %s34, 1
      %p199 = scmp.ne.s32.totalorder %s194, %s196
      %p200 = scmp.eq.s32.totalorder %s34, 0
      %p201 = por %p199, %p200
      %p202 = scmp.ne.s32.totalorder %s194, %s196
      %p203 = scmp.eq.s32.totalorder %s39, 1
      %p204 = por %p202, %p203
      %p205 = scmp.ne.s32.totalorder %s196, %s197
      %p206 = scmp.eq.s32.totalorder %s39, 0
      %p207 = por %p205, %p206
      %p208 = scmp.ne.s32.totalorder %s196, %s197
      %p209 = scmp.eq.s32.totalorder %s40, 1
      %p210 = por %p208, %p209
      %p212 = scmp.ne.s32.totalorder %s197, %s211
      %p213 = scmp.eq.s32.totalorder %s40, 0
      %p214 = por %p212, %p213
      %s216 = sadd.s32 %s215, 1
      %p219 = scmp.eq.s32.totalorder %s34, 1
      %p220 = scmp.ne.s32.totalorder %s215, %s217
      %p221 = scmp.eq.s32.totalorder %s34, 0
      %p222 = por %p220, %p221
      %p223 = scmp.ne.s32.totalorder %s215, %s217
      %p224 = scmp.eq.s32.totalorder %s39, 1
      %p225 = por %p223, %p224
      %p226 = scmp.ne.s32.totalorder %s217, %s218
      %p227 = scmp.eq.s32.totalorder %s39, 0
      %p228 = por %p226, %p227
      %p229 = scmp.ne.s32.totalorder %s217, %s218
      %p230 = scmp.eq.s32.totalorder %s40, 1
      %p231 = por %p229, %p230
      %p233 = scmp.ne.s32.totalorder %s218, %s232
      %p234 = scmp.eq.s32.totalorder %s40, 0
      %p235 = por %p233, %p234
      %s237 = sadd.s32 %s236, 1
      %p240 = scmp.eq.s32.totalorder %s34, 1
      %p241 = scmp.ne.s32.totalorder %s236, %s238
      %p242 = scmp.eq.s32.totalorder %s34, 0
      %p243 = por %p241, %p242
      %p244 = scmp.ne.s32.totalorder %s236, %s238
      %p245 = scmp.eq.s32.totalorder %s39, 1
      %p246 = por %p244, %p245
      %p247 = scmp.ne.s32.totalorder %s238, %s239
      %p248 = scmp.eq.s32.totalorder %s39, 0
      %p249 = por %p247, %p248
      %p250 = scmp.ne.s32.totalorder %s238, %s239
      %p251 = scmp.eq.s32.totalorder %s40, 1
      %p252 = por %p250, %p251
      %p254 = scmp.ne.s32.totalorder %s239, %s253
      %p255 = scmp.eq.s32.totalorder %s40, 0
      %p256 = por %p254, %p255
      %s258 = sadd.s32 %s257, 1
      %p261 = scmp.eq.s32.totalorder %s34, 1
      %p262 = scmp.ne.s32.totalorder %s257, %s259
      %p263 = scmp.eq.s32.totalorder %s34, 0
      %p264 = por %p262, %p263
      %p265 = scmp.ne.s32.totalorder %s257, %s259
      %p266 = scmp.eq.s32.totalorder %s39, 1
      %p267 = por %p265, %p266
      %p268 = scmp.ne.s32.totalorder %s259, %s260
      %p269 = scmp.eq.s32.totalorder %s39, 0
      %p270 = por %p268, %p269
      %p271 = scmp.ne.s32.totalorder %s259, %s260
      %p272 = scmp.eq.s32.totalorder %s40, 1
      %p273 = por %p271, %p272
      %p275 = scmp.ne.s32.totalorder %s260, %s274
      %p276 = scmp.eq.s32.totalorder %s40, 0
      %p277 = por %p275, %p276
      %s279 = sadd.s32 %s278, 1
      %p282 = scmp.eq.s32.totalorder %s34, 1
      %p283 = scmp.ne.s32.totalorder %s278, %s280
      %p284 = scmp.eq.s32.totalorder %s34, 0
      %p285 = por %p283, %p284
      %p286 = scmp.ne.s32.totalorder %s278, %s280
      %p287 = scmp.eq.s32.totalorder %s39, 1
      %p288 = por %p286, %p287
      %p289 = scmp.ne.s32.totalorder %s280, %s281
      %p290 = scmp.eq.s32.totalorder %s39, 0
      %p291 = por %p289, %p290
      %p292 = scmp.ne.s32.totalorder %s280, %s281
      %p293 = scmp.eq.s32.totalorder %s40, 1
      %p294 = por %p292, %p293
      %p296 = scmp.ne.s32.totalorder %s281, %s295
      %p297 = scmp.eq.s32.totalorder %s40, 0
      %p298 = por %p296, %p297
      %s300 = sadd.s32 %s299, 1
      %p303 = scmp.eq.s32.totalorder %s34, 1
      %p304 = scmp.ne.s32.totalorder %s299, %s301
      %p305 = scmp.eq.s32.totalorder %s34, 0
      %p306 = por %p304, %p305
      %p307 = scmp.ne.s32.totalorder %s299, %s301
      %p308 = scmp.eq.s32.totalorder %s39, 1
      %p309 = por %p307, %p308
      %p310 = scmp.ne.s32.totalorder %s301, %s302
      %p311 = scmp.eq.s32.totalorder %s39, 0
      %p312 = por %p310, %p311
      %p313 = scmp.ne.s32.totalorder %s301, %s302
      %p314 = scmp.eq.s32.totalorder %s40, 1
      %p315 = por %p313, %p314
      %p317 = scmp.ne.s32.totalorder %s302, %s316
      %p318 = scmp.eq.s32.totalorder %s40, 0
      %p319 = por %p317, %p318
      %s321 = sadd.s32 %s320, 1
      %p324 = scmp.eq.s32.totalorder %s34, 1
      %p325 = scmp.ne.s32.totalorder %s320, %s322
      %p326 = scmp.eq.s32.totalorder %s34, 0
      %p327 = por %p325, %p326
      %p328 = scmp.ne.s32.totalorder %s320, %s322
      %p329 = scmp.eq.s32.totalorder %s39, 1
      %p330 = por %p328, %p329
      %p331 = scmp.ne.s32.totalorder %s322, %s323
      %p332 = scmp.eq.s32.totalorder %s39, 0
      %p333 = por %p331, %p332
      %p334 = scmp.ne.s32.totalorder %s322, %s323
      %p335 = scmp.eq.s32.totalorder %s40, 1
      %p336 = por %p334, %p335
      %p338 = scmp.ne.s32.totalorder %s323, %s337
      %p339 = scmp.eq.s32.totalorder %s40, 0
      %p340 = por %p338, %p339
      %s342 = sadd.s32 %s341, 1
      %p345 = scmp.eq.s32.totalorder %s34, 1
      %p346 = scmp.ne.s32.totalorder %s341, %s343
      %p347 = scmp.eq.s32.totalorder %s34, 0
      %p348 = por %p346, %p347
      %p349 = scmp.ne.s32.totalorder %s341, %s343
      %p350 = scmp.eq.s32.totalorder %s39, 1
      %p351 = por %p349, %p350
      %p352 = scmp.ne.s32.totalorder %s343, %s344
      %p353 = scmp.eq.s32.totalorder %s39, 0
      %p354 = por %p352, %p353
      %p355 = scmp.ne.s32.totalorder %s343, %s344
      %p356 = scmp.eq.s32.totalorder %s40, 1
      %p357 = por %p355, %p356
      %p359 = scmp.ne.s32.totalorder %s344, %s358
      %p360 = scmp.eq.s32.totalorder %s40, 0
      %p361 = por %p359, %p360
      %s363 = sadd.s32 %s362, 1
      %p366 = scmp.eq.s32.totalorder %s34, 1
      %p367 = scmp.ne.s32.totalorder %s362, %s364
      %p368 = scmp.eq.s32.totalorder %s34, 0
      %p369 = por %p367, %p368
      %p370 = scmp.ne.s32.totalorder %s362, %s364
      %p371 = scmp.eq.s32.totalorder %s39, 1
      %p372 = por %p370, %p371
      %p373 = scmp.ne.s32.totalorder %s364, %s365
      %p374 = scmp.eq.s32.totalorder %s39, 0
      %p375 = por %p373, %p374
      %p376 = scmp.ne.s32.totalorder %s364, %s365
      %p377 = scmp.eq.s32.totalorder %s40, 1
      %p378 = por %p376, %p377
      %p380 = scmp.ne.s32.totalorder %s365, %s379
      %p381 = scmp.eq.s32.totalorder %s40, 0
      %p382 = por %p380, %p381
      %s384 = sadd.s32 %s383, 1
      %p387 = scmp.eq.s32.totalorder %s34, 1
      %p388 = scmp.ne.s32.totalorder %s383, %s385
      %p389 = scmp.eq.s32.totalorder %s34, 0
      %p390 = por %p388, %p389
      %p391 = scmp.ne.s32.totalorder %s383, %s385
      %p392 = scmp.eq.s32.totalorder %s39, 1
      %p393 = por %p391, %p392
      %p394 = scmp.ne.s32.totalorder %s385, %s386
      %p395 = scmp.eq.s32.totalorder %s39, 0
      %p396 = por %p394, %p395
      %p397 = scmp.ne.s32.totalorder %s385, %s386
      %p398 = scmp.eq.s32.totalorder %s40, 1
      %p399 = por %p397, %p398
      %p401 = scmp.ne.s32.totalorder %s386, %s400
      %p402 = scmp.eq.s32.totalorder %s40, 0
      %p403 = por %p401, %p402
      %s405 = sadd.s32 %s404, 1
      %p408 = scmp.eq.s32.totalorder %s34, 1
      %p409 = scmp.ne.s32.totalorder %s404, %s406
      %p410 = scmp.eq.s32.totalorder %s34, 0
      %p411 = por %p409, %p410
      %p412 = scmp.ne.s32.totalorder %s404, %s406
      %p413 = scmp.eq.s32.totalorder %s39, 1
      %p414 = por %p412, %p413
      %p415 = scmp.ne.s32.totalorder %s406, %s407
      %p416 = scmp.eq.s32.totalorder %s39, 0
      %p417 = por %p415, %p416
      %p418 = scmp.ne.s32.totalorder %s406, %s407
      %p419 = scmp.eq.s32.totalorder %s40, 1
      %p420 = por %p418, %p419
      %p422 = scmp.ne.s32.totalorder %s407, %s421
      %p423 = scmp.eq.s32.totalorder %s40, 0
      %p424 = por %p422, %p423
      %s426 = sadd.s32 %s425, 1
      %p429 = scmp.eq.s32.totalorder %s34, 1
      %p430 = scmp.ne.s32.totalorder %s425, %s427
      %p431 = scmp.eq.s32.totalorder %s34, 0
      %p432 = por %p430, %p431
      %p433 = scmp.ne.s32.totalorder %s425, %s427
      %p434 = scmp.eq.s32.totalorder %s39, 1
      %p435 = por %p433, %p434
      %p436 = scmp.ne.s32.totalorder %s427, %s428
      %p437 = scmp.eq.s32.totalorder %s39, 0
      %p438 = por %p436, %p437
      %p439 = scmp.ne.s32.totalorder %s427, %s428
      %p440 = scmp.eq.s32.totalorder %s40, 1
      %p441 = por %p439, %p440
      %p443 = scmp.ne.s32.totalorder %s428, %s442
      %p444 = scmp.eq.s32.totalorder %s40, 0
      %p445 = por %p443, %p444
      %s447 = sadd.s32 %s446, 1
      %p450 = scmp.eq.s32.totalorder %s34, 1
      %p451 = scmp.ne.s32.totalorder %s446, %s448
      %p452 = scmp.eq.s32.totalorder %s34, 0
      %p453 = por %p451, %p452
      %p454 = scmp.ne.s32.totalorder %s446, %s448
      %p455 = scmp.eq.s32.totalorder %s39, 1
      %p456 = por %p454, %p455
      %p457 = scmp.ne.s32.totalorder %s448, %s449
      %p458 = scmp.eq.s32.totalorder %s39, 0
      %p459 = por %p457, %p458
      %p460 = scmp.ne.s32.totalorder %s448, %s449
      %p461 = scmp.eq.s32.totalorder %s40, 1
      %p462 = por %p460, %p461
      %p464 = scmp.ne.s32.totalorder %s449, %s463
      %p465 = scmp.eq.s32.totalorder %s40, 0
      %p466 = por %p464, %p465
      %s468 = sadd.s32 %s467, 1
      %p471 = scmp.eq.s32.totalorder %s34, 1
      %p472 = scmp.ne.s32.totalorder %s467, %s469
      %p473 = scmp.eq.s32.totalorder %s34, 0
      %p474 = por %p472, %p473
      %p475 = scmp.ne.s32.totalorder %s467, %s469
      %p476 = scmp.eq.s32.totalorder %s39, 1
      %p477 = por %p475, %p476
      %p478 = scmp.ne.s32.totalorder %s469, %s470
      %p479 = scmp.eq.s32.totalorder %s39, 0
      %p480 = por %p478, %p479
      %p481 = scmp.ne.s32.totalorder %s469, %s470
      %p482 = scmp.eq.s32.totalorder %s40, 1
      %p483 = por %p481, %p482
      %p485 = scmp.ne.s32.totalorder %s470, %s484
      %p486 = scmp.eq.s32.totalorder %s40, 0
      %p487 = por %p485, %p486
      %s488 = ssub.s32 %s34, %s41
      %p489 = scmp.eq.s32.totalorder %s488, 0
      %s491 = sadd.s32 %s490, 1
      %s492 = scalar_select %p489, %s490, %s491
      %p495 = pneg %p489
      %p496 = scmp.eq.s32.totalorder %s34, 1
      %p497 = por %p495, %p496
      %p498 = scmp.ne.s32.totalorder %s490, %s493
      %p499 = scmp.eq.s32.totalorder %s34, 0
      %p500 = por %p498, %p499
      %p501 = scmp.ne.s32.totalorder %s490, %s493
      %p502 = scmp.eq.s32.totalorder %s39, 1
      %p503 = por %p501, %p502
      %p504 = scmp.ne.s32.totalorder %s493, %s494
      %p505 = scmp.eq.s32.totalorder %s39, 0
      %p506 = por %p504, %p505
      %p507 = scmp.ne.s32.totalorder %s493, %s494
      %p508 = scmp.eq.s32.totalorder %s40, 1
      %p509 = por %p507, %p508
      %p511 = scmp.ne.s32.totalorder %s494, %s510
      %p512 = scmp.eq.s32.totalorder %s40, 0
      %p513 = por %p511, %p512
      %p514 = scmp.le.s32.totalorder 1, %s34
      %p515 = scmp.lt.s32.totalorder %s34, 3
      %p516 = pnand %p514, %p515
      %p517 = pneg %p516
      // Predicated region
      $region9: #{mask_decoder_forward.1} parent=5 // pred_check
        _
      $region10: #{mask_decoder_forward.1} parent=5 // pred_check_branch
        %519 = sbr.rel (%p516) target = $region12
      $region11: #{mask_decoder_forward.1} parent=5 // pred_region
        %s520 = ssub.s32 %s34, 1
        // Predicated region
        $region13: #{mask_decoder_forward.1} parent=11 // pred_check
          %p521 = pneg %p81
        $region14: #{mask_decoder_forward.1} parent=11 // pred_check_branch
          %523 = sbr.rel (%p521) target = $region16
        $region15: #{mask_decoder_forward.1} parent=11 // pred_region
          %s525 = ssub.s32 4224, 4224
          %526 = vsyncadd [#allocation9], %s525
          %s527 = sshll.u32 [#allocation8], 4
          %s528 = int_to_ptr.vmem [resolvable:$true] %s527
          %533 = dma.hbm_to_vmem [thread:$0]  %s1, 4224, %s528, [#allocation9], 128, 128, 8
        $region16: #{mask_decoder_forward.1} parent=11 // pred_fallthru
          _
        // Predicated region
        $region17: #{mask_decoder_forward.1} parent=11 // pred_check
          %p534 = pneg %p102
        $region18: #{mask_decoder_forward.1} parent=11 // pred_check_branch
          %536 = sbr.rel (%p534) target = $region20
        $region19: #{mask_decoder_forward.1} parent=11 // pred_region
          %s538 = ssub.s32 32, 32
          %539 = vsyncadd [#allocation9], %s538
          %s541 = sshll.u32 [#allocation10], 4
          %s542 = int_to_ptr.vmem [resolvable:$true] %s541
          %544 = dma.hbm_to_vmem [thread:$0]  %s2, 32, %s542, [#allocation9]
        $region20: #{mask_decoder_forward.1} parent=11 // pred_fallthru
          _
        // Predicated region
        $region21: #{mask_decoder_forward.1} parent=11 // pred_check
          %p545 = pneg %p123
        $region22: #{mask_decoder_forward.1} parent=11 // pred_check_branch
          %547 = sbr.rel (%p545) target = $region24
        $region23: #{mask_decoder_forward.1} parent=11 // pred_region
          %s549 = ssub.s32 256, 256
          %550 = vsyncadd [#allocation12], %s549
          %s551 = sshll.u32 [#allocation11], 4
          %s552 = int_to_ptr.vmem [resolvable:$true] %s551
          %557 = dma.hbm_to_vmem [thread:$0]  %s3, 256, %s552, [#allocation12], 64, 64, 4
        $region24: #{mask_decoder_forward.1} parent=11 // pred_fallthru
          _
        // Predicated region
        $region25: #{mask_decoder_forward.1} parent=11 // pred_check
          %p558 = pneg %p144
        $region26: #{mask_decoder_forward.1} parent=11 // pred_check_branch
          %560 = sbr.rel (%p558) target = $region28
        $region27: #{mask_decoder_forward.1} parent=11 // pred_region
          _
        $region28: #{mask_decoder_forward.1} parent=11 // pred_fallthru
          _
        // Predicated region
        $region29: #{mask_decoder_forward.1} parent=11 // pred_check
          %p561 = pneg %p165
        $region30: #{mask_decoder_forward.1} parent=11 // pred_check_branch
          %563 = sbr.rel (%p561) target = $region32
        $region31: #{mask_decoder_forward.1} parent=11 // pred_region
          _
        $region32: #{mask_decoder_forward.1} parent=11 // pred_fallthru
          _
        // Predicated region
        $region33: #{mask_decoder_forward.1} parent=11 // pred_check
          %p564 = pneg %p186
        $region34: #{mask_decoder_forward.1} parent=11 // pred_check_branch
          %566 = sbr.rel (%p564) target = $region36
        $region35: #{mask_decoder_forward.1} parent=11 // pred_region
          _
        $region36: #{mask_decoder_forward.1} parent=11 // pred_fallthru
          _
        // Predicated region
        $region37: #{mask_decoder_forward.1} parent=11 // pred_check
          %p567 = pneg %p207
        $region38: #{mask_decoder_forward.1} parent=11 // pred_check_branch
          %569 = sbr.rel (%p567) target = $region40
        $region39: #{mask_decoder_forward.1} parent=11 // pred_region
          %s571 = ssub.s32 64, 64
          %572 = vsyncadd [#allocation12], %s571
          %s574 = sshll.u32 [#allocation13], 4
          %s575 = int_to_ptr.vmem [resolvable:$true] %s574
          %577 = dma.hbm_to_vmem [thread:$0]  %s7, 64, %s575, [#allocation12]
        $region40: #{mask_decoder_forward.1} parent=11 // pred_fallthru
          _
        // Predicated region
        $region41: #{mask_decoder_forward.1} parent=11 // pred_check
          %p578 = pneg %p228
        $region42: #{mask_decoder_forward.1} parent=11 // pred_check_branch
          %580 = sbr.rel (%p578) target = $region44
        $region43: #{mask_decoder_forward.1} parent=11 // pred_region
          _
        $region44: #{mask_decoder_forward.1} parent=11 // pred_fallthru
          _
        // Predicated region
        $region45: #{mask_decoder_forward.1} parent=11 // pred_check
          %p581 = pneg %p249
        $region46: #{mask_decoder_forward.1} parent=11 // pred_check_branch
          %583 = sbr.rel (%p581) target = $region48
        $region47: #{mask_decoder_forward.1} parent=11 // pred_region
          %s585 = ssub.s32 768, 768
          %586 = vsyncadd [#allocation15], %s585
          %s587 = sshll.u32 [#allocation14], 4
          %s588 = int_to_ptr.vmem [resolvable:$true] %s587
          %593 = dma.hbm_to_vmem [thread:$0]  %s9, 768, %s588, [#allocation15], 192, 192, 12
        $region48: #{mask_decoder_forward.1} parent=11 // pred_fallthru
          _
        // Predicated region
        $region49: #{mask_decoder_forward.1} parent=11 // pred_check
          %p594 = pneg %p270
        $region50: #{mask_decoder_forward.1} parent=11 // pred_check_branch
          %596 = sbr.rel (%p594) target = $region52
        $region51: #{mask_decoder_forward.1} parent=11 // pred_region
          _
        $region52: #{mask_decoder_forward.1} parent=11 // pred_fallthru
          _
        // Predicated region
        $region53: #{mask_decoder_forward.1} parent=11 // pred_check
          %p597 = pneg %p291
        $region54: #{mask_decoder_forward.1} parent=11 // pred_check_branch
          %599 = sbr.rel (%p597) target = $region56
        $region55: #{mask_decoder_forward.1} parent=11 // pred_region
          _
        $region56: #{mask_decoder_forward.1} parent=11 // pred_fallthru
          _
        // Predicated region
        $region57: #{mask_decoder_forward.1} parent=11 // pred_check
          %p600 = pneg %p312
        $region58: #{mask_decoder_forward.1} parent=11 // pred_check_branch
          %602 = sbr.rel (%p600) target = $region60
        $region59: #{mask_decoder_forward.1} parent=11 // pred_region
          _
        $region60: #{mask_decoder_forward.1} parent=11 // pred_fallthru
          _
        // Predicated region
        $region61: #{mask_decoder_forward.1} parent=11 // pred_check
          %p603 = pneg %p333
        $region62: #{mask_decoder_forward.1} parent=11 // pred_check_branch
          %605 = sbr.rel (%p603) target = $region64
        $region63: #{mask_decoder_forward.1} parent=11 // pred_region
          _
        $region64: #{mask_decoder_forward.1} parent=11 // pred_fallthru
          _
        // Predicated region
        $region65: #{mask_decoder_forward.1} parent=11 // pred_check
          %p606 = pneg %p354
        $region66: #{mask_decoder_forward.1} parent=11 // pred_check_branch
          %608 = sbr.rel (%p606) target = $region68
        $region67: #{mask_decoder_forward.1} parent=11 // pred_region
          _
        $region68: #{mask_decoder_forward.1} parent=11 // pred_fallthru
          _
        // Predicated region
        $region69: #{mask_decoder_forward.1} parent=11 // pred_check
          %p609 = pneg %p375
        $region70: #{mask_decoder_forward.1} parent=11 // pred_check_branch
          %611 = sbr.rel (%p609) target = $region72
        $region71: #{mask_decoder_forward.1} parent=11 // pred_region
          %s613 = ssub.s32 256, 256
          %614 = vsyncadd [#allocation15], %s613
          %s615 = sshll.u32 [#allocation16], 4
          %s616 = int_to_ptr.vmem [resolvable:$true] %s615
          %621 = dma.hbm_to_vmem [thread:$0]  %s15, 256, %s616, [#allocation15], 128, 128, 8
        $region72: #{mask_decoder_forward.1} parent=11 // pred_fallthru
          _
        // Predicated region
        $region73: #{mask_decoder_forward.1} parent=11 // pred_check
          %p622 = pneg %p396
        $region74: #{mask_decoder_forward.1} parent=11 // pred_check_branch
          %624 = sbr.rel (%p622) target = $region76
        $region75: #{mask_decoder_forward.1} parent=11 // pred_region
          _
        $region76: #{mask_decoder_forward.1} parent=11 // pred_fallthru
          _
        // Predicated region
        $region77: #{mask_decoder_forward.1} parent=11 // pred_check
          %p625 = pneg %p417
        $region78: #{mask_decoder_forward.1} parent=11 // pred_check_branch
          %627 = sbr.rel (%p625) target = $region80
        $region79: #{mask_decoder_forward.1} parent=11 // pred_region
          %s629 = ssub.s32 2560, 2560
          %630 = vsyncadd [#allocation18], %s629
          %s631 = sshll.u32 [#allocation17], 4
          %s632 = int_to_ptr.vmem [resolvable:$true] %s631
          %637 = dma.hbm_to_vmem [thread:$0]  %s17, 2560, %s632, [#allocation18], 320, 320, 20
        $region80: #{mask_decoder_forward.1} parent=11 // pred_fallthru
          _
        // Predicated region
        $region81: #{mask_decoder_forward.1} parent=11 // pred_check
          %p638 = pneg %p438
        $region82: #{mask_decoder_forward.1} parent=11 // pred_check_branch
          %640 = sbr.rel (%p638) target = $region84
        $region83: #{mask_decoder_forward.1} parent=11 // pred_region
          _
        $region84: #{mask_decoder_forward.1} parent=11 // pred_fallthru
          _
        // Predicated region
        $region85: #{mask_decoder_forward.1} parent=11 // pred_check
          %p641 = pneg %p459
        $region86: #{mask_decoder_forward.1} parent=11 // pred_check_branch
          %643 = sbr.rel (%p641) target = $region88
        $region87: #{mask_decoder_forward.1} parent=11 // pred_region
          %s645 = ssub.s32 512, 512
          %646 = vsyncadd [#allocation18], %s645
          %s647 = sshll.u32 [#allocation19], 4
          %s648 = int_to_ptr.vmem [resolvable:$true] %s647
          %653 = dma.hbm_to_vmem [thread:$0]  %s19, 512, %s648, [#allocation18], 64, 64, 4
        $region88: #{mask_decoder_forward.1} parent=11 // pred_fallthru
          _
        // Predicated region
        $region89: #{mask_decoder_forward.1} parent=11 // pred_check
          %p654 = pneg %p480
        $region90: #{mask_decoder_forward.1} parent=11 // pred_check_branch
          %656 = sbr.rel (%p654) target = $region92
        $region91: #{mask_decoder_forward.1} parent=11 // pred_region
          _
        $region92: #{mask_decoder_forward.1} parent=11 // pred_fallthru
          _
      $region12: #{mask_decoder_forward.1} parent=5 // pred_fallthru
        _
      %p657 = scmp.lt.s32.totalorder %s34, 2
      // Predicated region
      $region93: #{mask_decoder_forward.1} parent=5 // pred_check
        %p658 = pneg %p657
      $region94: #{mask_decoder_forward.1} parent=5 // pred_check_branch
        %660 = sbr.rel (%p658) target = $region96
      $region95: #{mask_decoder_forward.1} parent=5 // pred_region
        // Predicated region
        $region97: #{mask_decoder_forward.1} parent=95 // pred_check
          %p661 = pneg %p54
        $region98: #{mask_decoder_forward.1} parent=95 // pred_check_branch
          %663 = sbr.rel (%p661) target = $region100
        $region99: #{mask_decoder_forward.1} parent=95 // pred_region
          %s664 = sand.u32 %s44, 1
          %s665 = scalar_lea.sflag [#allocation7], %s664
          %s666 = sand.u32 %s44, 1
          %s667 = smul.addr %s666, 96
          %s668 = scalar_lea.vmem [#allocation6], %s667
          %s670 = ssub.s32 1536, 1536
          %671 = vsyncadd %s665, %s670
          %s672 = smul.addr %s34, 12
          %s673 = smul.addr %s672, 128
          %s674 = scalar_lea.hbm %s0, %s673
          %s675 = sshll.u32 %s668, 4
          %s676 = int_to_ptr.vmem [resolvable:$true] %s675
          %681 = dma.hbm_to_vmem [thread:$0]  %s674, 1536, %s676, %s665, 384, 384, 24
        $region100: #{mask_decoder_forward.1} parent=95 // pred_fallthru
          _
      $region96: #{mask_decoder_forward.1} parent=5 // pred_fallthru
        _
      %p682 = scmp.le.s32.totalorder 1, %s34
      %p683 = scmp.lt.s32.totalorder %s34, 3
      %p684 = pnand %p682, %p683
      %p685 = pneg %p684
      // Predicated region
      $region101: #{mask_decoder_forward.1} parent=5 // pred_check
        _
      $region102: #{mask_decoder_forward.1} parent=5 // pred_check_branch
        %687 = sbr.rel (%p684) target = $region104
      $region103: #{mask_decoder_forward.1} parent=5 // pred_region
        %s688 = ssub.s32 %s34, 1
        %s689 = sand.u32 %s47, 1
        %s690 = scalar_lea.sflag [#allocation7], %s689
        %s691 = sand.u32 %s47, 1
        %s692 = smul.addr %s691, 96
        %s693 = scalar_lea.vmem [#allocation6], %s692
        // Predicated region
        $region105: #{mask_decoder_forward.1} parent=103 // pred_check
          %p694 = pneg %p60
        $region106: #{mask_decoder_forward.1} parent=103 // pred_check_branch
          %696 = sbr.rel (%p694) target = $region108
        $region107: #{mask_decoder_forward.1} parent=103 // pred_region
          %697 = dma.done %s690, 1536
        $region108: #{mask_decoder_forward.1} parent=103 // pred_fallthru
          _
        // Predicated region
        $region109: #{mask_decoder_forward.1} parent=103 // pred_check
          %p698 = pneg %p81
        $region110: #{mask_decoder_forward.1} parent=103 // pred_check_branch
          %700 = sbr.rel (%p698) target = $region112
        $region111: #{mask_decoder_forward.1} parent=103 // pred_region
          %701 = dma.done [#allocation9], 4224
        $region112: #{mask_decoder_forward.1} parent=103 // pred_fallthru
          _
        // Predicated region
        $region113: #{mask_decoder_forward.1} parent=103 // pred_check
          %p702 = pneg %p102
        $region114: #{mask_decoder_forward.1} parent=103 // pred_check_branch
          %704 = sbr.rel (%p702) target = $region116
        $region115: #{mask_decoder_forward.1} parent=103 // pred_region
          %705 = dma.done [#allocation9], 32
        $region116: #{mask_decoder_forward.1} parent=103 // pred_fallthru
          _
        // Predicated region
        $region117: #{mask_decoder_forward.1} parent=103 // pred_check
          %p706 = pneg %p123
        $region118: #{mask_decoder_forward.1} parent=103 // pred_check_branch
          %708 = sbr.rel (%p706) target = $region120
        $region119: #{mask_decoder_forward.1} parent=103 // pred_region
          %709 = dma.done [#allocation12], 256
        $region120: #{mask_decoder_forward.1} parent=103 // pred_fallthru
          _
        // Predicated region
        $region121: #{mask_decoder_forward.1} parent=103 // pred_check
          %p710 = pneg %p207
        $region122: #{mask_decoder_forward.1} parent=103 // pred_check_branch
          %712 = sbr.rel (%p710) target = $region124
        $region123: #{mask_decoder_forward.1} parent=103 // pred_region
          %713 = dma.done [#allocation12], 64
        $region124: #{mask_decoder_forward.1} parent=103 // pred_fallthru
          _
        // Predicated region
        $region125: #{mask_decoder_forward.1} parent=103 // pred_check
          %p714 = pneg %p249
        $region126: #{mask_decoder_forward.1} parent=103 // pred_check_branch
          %716 = sbr.rel (%p714) target = $region128
        $region127: #{mask_decoder_forward.1} parent=103 // pred_region
          %717 = dma.done [#allocation15], 768
        $region128: #{mask_decoder_forward.1} parent=103 // pred_fallthru
          _
        // Predicated region
        $region129: #{mask_decoder_forward.1} parent=103 // pred_check
          %p718 = pneg %p375
        $region130: #{mask_decoder_forward.1} parent=103 // pred_check_branch
          %720 = sbr.rel (%p718) target = $region132
        $region131: #{mask_decoder_forward.1} parent=103 // pred_region
          %721 = dma.done [#allocation15], 256
        $region132: #{mask_decoder_forward.1} parent=103 // pred_fallthru
          _
        // Predicated region
        $region133: #{mask_decoder_forward.1} parent=103 // pred_check
          %p722 = pneg %p417
        $region134: #{mask_decoder_forward.1} parent=103 // pred_check_branch
          %724 = sbr.rel (%p722) target = $region136
        $region135: #{mask_decoder_forward.1} parent=103 // pred_region
          %725 = dma.done [#allocation18], 2560
        $region136: #{mask_decoder_forward.1} parent=103 // pred_fallthru
          _
        // Predicated region
        $region137: #{mask_decoder_forward.1} parent=103 // pred_check
          %p726 = pneg %p459
        $region138: #{mask_decoder_forward.1} parent=103 // pred_check_branch
          %728 = sbr.rel (%p726) target = $region140
        $region139: #{mask_decoder_forward.1} parent=103 // pred_region
          %729 = dma.done [#allocation18], 512
        $region140: #{mask_decoder_forward.1} parent=103 // pred_fallthru
          _
        %s730 = sand.u32 %s47, 1
        %s731 = scalar_lea.sflag [#allocation7], %s730
        %s732 = sand.u32 %s47, 1
        %s733 = smul.addr %s732, 96
        %s734 = scalar_lea.vmem [#allocation6], %s733
        %p735 = pneg %p60
        %p736 = pneg %p57
        %p737 = pneg %p81
        %p738 = pneg %p78
        %p739 = pneg %p102
        %p740 = pneg %p99
        %p741 = pneg %p123
        %p742 = pneg %p120
        %p743 = pneg %p144
        %p744 = pneg %p141
        %p745 = pneg %p165
        %p746 = pneg %p162
        %p747 = pneg %p186
        %p748 = pneg %p183
        %p749 = pneg %p207
        %p750 = pneg %p204
        %p751 = pneg %p228
        %p752 = pneg %p225
        %p753 = pneg %p249
        %p754 = pneg %p246
        %p755 = pneg %p270
        %p756 = pneg %p267
        %p757 = pneg %p291
        %p758 = pneg %p288
        %p759 = pneg %p312
        %p760 = pneg %p309
        %p761 = pneg %p333
        %p762 = pneg %p330
        %p763 = pneg %p354
        %p764 = pneg %p351
        %p765 = pneg %p375
        %p766 = pneg %p372
        %p767 = pneg %p396
        %p768 = pneg %p393
        %p769 = pneg %p417
        %p770 = pneg %p414
        %p771 = pneg %p438
        %p772 = pneg %p435
        %p773 = pneg %p459
        %p774 = pneg %p456
        %p775 = pneg %p480
        %p776 = pneg %p477
        %p777 = pneg %p506
        %p778 = pneg %p503
        %p779 = scmp.lt.s32.totalorder %s39, 1
        %s780 = scalar_select %p779, %s39, 1
        %s781 = smul.addr %s780, 16
        %s782 = smul.addr %s781, 8
        %s783 = scalar_lea.vmem %s21, %s782
        %p784 = scmp.lt.s32.totalorder %s39, 1
        %s785 = scalar_select %p784, %s39, 1
        %s786 = smul.addr %s785, 16
        %s787 = smul.addr %s786, 8
        %s788 = scalar_lea.vmem %s21, %s787
        %v790 = vlaneseq
        %v791 = vand.u32 %v790, 127
        %v792 = vadd.s32 %v791, 128
        %v793 = vand.u32 %v791, 15
        %v794 = vand.u32 %v792, 15
        %vm795 = vcmp.ge.s32.totalorder %v793, 1
        %vm796 = vcmp.ge.s32.totalorder %v794, 1
        %v797 = vsel %vm795, 1.0, 0.0
        %v798 = vsel %vm796, 1.0, 0.0
        %v799 = vpack.c.bf16 %v797, %v797
        %v800 = vpack.c.bf16 %v798, %v798
        %vm801 = vcmp.le.s32.totalorder %v793, 14
        %vm802 = vcmp.le.s32.totalorder %v794, 14
        %v803 = vsel %vm801, 1.0, 0.0
        %v804 = vsel %vm802, 1.0, 0.0
        %v805 = vpack.c.bf16 %v803, %v803
        %v806 = vpack.c.bf16 %v804, %v804
        %v807 = vld [vmem:[%s693] sm:$0xff]
        %v808 = vld [vmem:[%s693 + $0x8] sm:$0xff]
        %v809 = vld [vmem:[%s693 + $0x10] sm:$0xff]
        %v810 = vld [vmem:[%s693 + $0x18] sm:$0xff]
        %v811 = vld [vmem:[%s693 + $0x20] sm:$0xff]
        %v812 = vld [vmem:[%s693 + $0x28] sm:$0xff]
        %v813 = vld [vmem:[%s693 + $0x30] sm:$0xff]
        %v814 = vld [vmem:[%s693 + $0x38] sm:$0xff]
        %v815 = vld [vmem:[%s693 + $0x40] sm:$0xff]
        %v816 = vld [vmem:[%s693 + $0x48] sm:$0xff]
        %v817 = vld [vmem:[%s693 + $0x50] sm:$0xff]
        %v818 = vld [vmem:[%s693 + $0x58] sm:$0xff]
        %v819 = vpack.c.bf16 %v810, %v807
        %v820 = vpack.c.bf16 %v811, %v808
        %v821 = vpack.c.bf16 %v812, %v809
        %v822 = vpack.c.bf16 %v816, %v813
        %v823 = vpack.c.bf16 %v817, %v814
        %v824 = vpack.c.bf16 %v818, %v815
        %v825 = vld [vmem:[#allocation8] sm:$0xff]
        %v826 = vld [vmem:[#allocation8 + $0x8] sm:$0xff]
        %v827 = vld [vmem:[#allocation8 + $0x10] sm:$0xff]
        %v828 = vld [vmem:[#allocation8 + $0x18] sm:$0xff]
        %v829 = vld [vmem:[#allocation8 + $0x20] sm:$0xff]
        %v830 = vld [vmem:[#allocation8 + $0x28] sm:$0xff]
        %v831 = vld [vmem:[#allocation8 + $0x30] sm:$0xff]
        %v832 = vld [vmem:[#allocation8 + $0x38] sm:$0xff]
        %v833 = vld [vmem:[#allocation8 + $0x40] sm:$0xff]
        %v834 = vld [vmem:[#allocation8 + $0x48] sm:$0xff]
        %v835 = vld [vmem:[#allocation8 + $0x50] sm:$0xff]
        %v836 = vld [vmem:[#allocation8 + $0x58] sm:$0xff]
        %v837 = vld [vmem:[#allocation8 + $0x60] sm:$0xff]
        %v838 = vld [vmem:[#allocation8 + $0x68] sm:$0xff]
        %v839 = vld [vmem:[#allocation8 + $0x70] sm:$0xff]
        %v840 = vld [vmem:[#allocation8 + $0x78] sm:$0xff]
        %v841 = vld [vmem:[#allocation8 + $0x80] sm:$0xff]
        %v842 = vld [vmem:[#allocation8 + $0x88] sm:$0xff]
        %v843 = vld [vmem:[#allocation8 + $0x90] sm:$0xff]
        %v844 = vld [vmem:[#allocation8 + $0x98] sm:$0xff]
        %v845 = vld [vmem:[#allocation8 + $0xa0] sm:$0xff]
        %v846 = vld [vmem:[#allocation8 + $0xa8] sm:$0xff]
        %v847 = vld [vmem:[#allocation8 + $0xb0] sm:$0xff]
        %v848 = vld [vmem:[#allocation8 + $0xb8] sm:$0xff]
        %v849 = vld [vmem:[#allocation8 + $0xc0] sm:$0xff]
        %v850 = vld [vmem:[#allocation8 + $0xc8] sm:$0xff]
        %v851 = vld [vmem:[#allocation8 + $0xd0] sm:$0xff]
        %v852 = vld [vmem:[#allocation8 + $0xd8] sm:$0xff]
        %v853 = vld [vmem:[#allocation8 + $0xe0] sm:$0xff]
        %v854 = vld [vmem:[#allocation8 + $0xe8] sm:$0xff]
        %v855 = vld [vmem:[#allocation8 + $0xf0] sm:$0xff]
        %v856 = vld [vmem:[#allocation8 + $0xf8] sm:$0xff]
        %v857 = vld [vmem:[#allocation8 + $0x100] sm:$0x11]
        %v858 = vld [vmem:[#allocation10] sm:$0x3]
        %v860 = vlaneseq
        %v861 = vshrl.u32 %v860, 7
        %v862 = vsub.s32 0, %v861
        %v863 = vrot.slane %v858, %v862
        %v864 = vlaneseq
        %v865 = vshrl.u32 %v864, 7
        %v866 = vsub.s32 1, %v865
        %v867 = vrot.slane %v858, %v866
        %v903 = vunpack.c.l.b16 %v825
        %v904 = vunpack.c.h.b16 %v825
        %v905 = vunpack.c.l.b16 %v826
        %v906 = vunpack.c.h.b16 %v826
        %v907 = vunpack.c.l.b16 %v827
        %v908 = vunpack.c.h.b16 %v827
        %v909 = vunpack.c.l.b16 %v828
        %v910 = vunpack.c.h.b16 %v828
        %v911 = vunpack.c.l.b16 %v829
        %v912 = vunpack.c.h.b16 %v829
        %v913 = vunpack.c.l.b16 %v830
        %v914 = vunpack.c.h.b16 %v830
        %v915 = vunpack.c.l.b16 %v831
        %v916 = vunpack.c.h.b16 %v831
        %v917 = vunpack.c.l.b16 %v832
        %v918 = vunpack.c.h.b16 %v832
        %v919 = vunpack.c.l.b16 %v833
        %v920 = vunpack.c.h.b16 %v833
        %v921 = vunpack.c.l.b16 %v834
        %v922 = vunpack.c.h.b16 %v834
        %v923 = vunpack.c.l.b16 %v835
        %v924 = vunpack.c.h.b16 %v835
        %v925 = vunpack.c.l.b16 %v836
        %v926 = vunpack.c.h.b16 %v836
        %v927 = vunpack.c.l.b16 %v837
        %v928 = vunpack.c.h.b16 %v837
        %v929 = vunpack.c.l.b16 %v838
        %v930 = vunpack.c.h.b16 %v838
        %v931 = vunpack.c.l.b16 %v839
        %v932 = vunpack.c.h.b16 %v839
        %v933 = vunpack.c.l.b16 %v840
        %v934 = vunpack.c.h.b16 %v840
        %v935 = vunpack.c.l.b16 %v841
        %v936 = vunpack.c.h.b16 %v841
        %v937 = vunpack.c.l.b16 %v842
        %v938 = vunpack.c.h.b16 %v842
        %v939 = vunpack.c.l.b16 %v843
        %v940 = vunpack.c.h.b16 %v843
        %v941 = vunpack.c.l.b16 %v844
        %v942 = vunpack.c.h.b16 %v844
        %v943 = vunpack.c.l.b16 %v845
        %v944 = vunpack.c.h.b16 %v845
        %v945 = vunpack.c.l.b16 %v846
        %v946 = vunpack.c.h.b16 %v846
        %v947 = vunpack.c.l.b16 %v847
        %v948 = vunpack.c.h.b16 %v847
        %v949 = vunpack.c.l.b16 %v848
        %v950 = vunpack.c.h.b16 %v848
        %v951 = vunpack.c.l.b16 %v849
        %v952 = vunpack.c.h.b16 %v849
        %v953 = vunpack.c.l.b16 %v850
        %v954 = vunpack.c.h.b16 %v850
        %v955 = vunpack.c.l.b16 %v851
        %v956 = vunpack.c.h.b16 %v851
        %v957 = vunpack.c.l.b16 %v852
        %v958 = vunpack.c.h.b16 %v852
        %v959 = vunpack.c.l.b16 %v853
        %v960 = vunpack.c.h.b16 %v853
        %v961 = vunpack.c.l.b16 %v854
        %v962 = vunpack.c.h.b16 %v854
        %v963 = vunpack.c.l.b16 %v855
        %v964 = vunpack.c.h.b16 %v855
        %v965 = vunpack.c.l.b16 %v856
        %v966 = vunpack.c.h.b16 %v856
        %v967 = vunpack.c.l.b16 %v857
        %v968 = vunpack.c.h.b16 %v857
        %v969 = vpack.c.b16 %v905, %v903
        %v970 = vpack.c.b16 %v906, %v904
        %v971 = vpack.c.b16 %v909, %v907
        %v972 = vpack.c.b16 %v910, %v908
        %v973 = vpack.c.b16 %v913, %v911
        %v974 = vpack.c.b16 %v914, %v912
        %v975 = vpack.c.b16 %v917, %v915
        %v976 = vpack.c.b16 %v918, %v916
        %v977 = vpack.c.b16 %v921, %v919
        %v978 = vpack.c.b16 %v922, %v920
        %v979 = vpack.c.b16 %v925, %v923
        %v980 = vpack.c.b16 %v926, %v924
        %v981 = vpack.c.b16 %v929, %v927
        %v982 = vpack.c.b16 %v930, %v928
        %v983 = vpack.c.b16 %v933, %v931
        %v984 = vpack.c.b16 %v934, %v932
        %v985 = vpack.c.b16 %v937, %v935
        %v986 = vpack.c.b16 %v938, %v936
        %v987 = vpack.c.b16 %v941, %v939
        %v988 = vpack.c.b16 %v942, %v940
        %v989 = vpack.c.b16 %v945, %v943
        %v990 = vpack.c.b16 %v946, %v944
        %v991 = vpack.c.b16 %v949, %v947
        %v992 = vpack.c.b16 %v950, %v948
        %v993 = vpack.c.b16 %v953, %v951
        %v994 = vpack.c.b16 %v954, %v952
        %v995 = vpack.c.b16 %v957, %v955
        %v996 = vpack.c.b16 %v958, %v956
        %v997 = vpack.c.b16 %v961, %v959
        %v998 = vpack.c.b16 %v962, %v960
        %v999 = vpack.c.b16 %v965, %v963
        %v1000 = vpack.c.b16 %v966, %v964
        %v1001 = vpack.c.b16 %v967, %v967
        %v1002 = vpack.c.b16 %v968, %v968
        %vm1035 = vcmask 7168
        %v1037 = vsel %vm1035, %v821, 0
        %v1040 = vsel %vm1035, %v824, 0
        %vm1042 = vcmask 1040384
        %v1043 = vsel 0, 4294967295, 65535
        %v1044 = vsel %vm1042, %v1043, 0
        %v1046 = vand.u32 %v1001, %v1044
        %v1049 = vand.u32 %v1002, %v1044
        %1051 = vmatprep.subr.bf16.mxu0 %v970
        %1052 = vmatpush1.bf16.msra.mxu0 %v969
        %1053 = vmatprep.subr.bf16.mxu0 %v972
        %1054 = vmatpush1.bf16.msra.mxu0 %v971
        %1055 = vmatprep.subr.bf16.mxu0 %v974
        %1056 = vmatpush1.bf16.msra.mxu0 %v973
        %1057 = vmatprep.subr.bf16.mxu0 %v976
        %1058 = vmatpush1.bf16.msra.mxu0 %v975
        %1059 = vmatprep.subr.bf16.mxu0 %v978
        %1060 = vmatpush1.bf16.msra.mxu0 %v977
        %1061 = vmatprep.subr.bf16.mxu0 %v980
        %1062 = vmatpush1.bf16.msra.mxu0 %v979
        %1063 = vmatprep.subr.bf16.mxu0 %v982
        %1064 = vmatpush1.bf16.msra.mxu0 %v981
        %1065 = vmatprep.subr.bf16.mxu0 %v984
        %1066 = vmatpush1.bf16.msra.mxu0 %v983
        %1067 = vmatprep.subr.bf16.mxu0 %v986
        %1068 = vmatpush1.bf16.msra.mxu0 %v985
        %1069 = vmatprep.subr.bf16.mxu0 %v988
        %1070 = vmatpush1.bf16.msra.mxu0 %v987
        %1071 = vmatprep.subr.bf16.mxu0 %v990
        %1072 = vmatpush1.bf16.msra.mxu0 %v989
        %1073 = vmatprep.subr.bf16.mxu0 %v992
        %1074 = vmatpush1.bf16.msra.mxu0 %v991
        %1075 = vmatprep.subr.bf16.mxu0 %v994
        %1076 = vmatpush1.bf16.msra.mxu0 %v993
        %1077 = vmatprep.subr.bf16.mxu0 %v996
        %1078 = vmatpush1.bf16.msra.mxu0 %v995
        %1079 = vmatprep.subr.bf16.mxu0 %v998
        %1080 = vmatpush1.bf16.msra.mxu0 %v997
        %1081 = vmatprep.subr.bf16.mxu0 %v1000
        %1082 = vmatpush1.bf16.msra.mxu0 %v999
        %1083 = vmatprep.mubr.bf16.mxu0 %v820
        %1084 = vmatmul.mubr.bf16.gmra.mrb[0].mxu0 %v819
        %v1085 = vpop.f32.mrb[0].mxu0
        %v1086 = vadd.f32 %v863, %v1085
        %v1087 = vpop.f32.mrb[0].mxu0
        %v1088 = vadd.f32 %v867, %v1087
        %v1089 = vpop.f32.mrb[0].mxu0
        %v1090 = vadd.f32 %v863, %v1089
        %v1091 = vpop.f32.mrb[0].mxu0
        %v1092 = vadd.f32 %v867, %v1091
        %1093 = vmatprep.mubr.bf16.mxu0 %v823
        %1094 = vmatmul.mubr.bf16.gmra.mrb[0].mxu0 %v822
        %v1095 = vpop.f32.mrb[0].mxu0
        %v1096 = vadd.f32 %v863, %v1095
        %v1097 = vpop.f32.mrb[0].mxu0
        %v1098 = vadd.f32 %v867, %v1097
        %v1099 = vpop.f32.mrb[0].mxu0
        %v1100 = vadd.f32 %v863, %v1099
        %v1101 = vpop.f32.mrb[0].mxu0
        %v1102 = vadd.f32 %v867, %v1101
        %1103 = vdwg.mxu0
        %1104 = vmatprep.subr.bf16.mxu0 %v1049
        %1105 = vmatpush1.bf16.msra.mxu0 %v1046
        %1106 = vmatprep.subr.bf16.mxu0 0
        %1107 = vmatpush1.bf16.msra.mxu0 0
        %1108 = vmatprep.subr.bf16.mxu0 0
        %1109 = vmatpush1.bf16.msra.mxu0 0
        %1110 = vmatprep.subr.bf16.mxu0 0
        %1111 = vmatpush1.bf16.msra.mxu0 0
        %1112 = vmatprep.subr.bf16.mxu0 0
        %1113 = vmatpush1.bf16.msra.mxu0 0
        %1114 = vmatprep.subr.bf16.mxu0 0
        %1115 = vmatpush1.bf16.msra.mxu0 0
        %1116 = vmatprep.subr.bf16.mxu0 0
        %1117 = vmatpush1.bf16.msra.mxu0 0
        %1118 = vmatprep.subr.bf16.mxu0 0
        %1119 = vmatpush1.bf16.msra.mxu0 0
        %1120 = vmatprep.subr.bf16.mxu0 0
        %1121 = vmatpush1.bf16.msra.mxu0 0
        %1122 = vmatprep.subr.bf16.mxu0 0
        %1123 = vmatpush1.bf16.msra.mxu0 0
        %1124 = vmatprep.subr.bf16.mxu0 0
        %1125 = vmatpush1.bf16.msra.mxu0 0
        %1126 = vmatprep.subr.bf16.mxu0 0
        %1127 = vmatpush1.bf16.msra.mxu0 0
        %1128 = vmatprep.subr.bf16.mxu0 0
        %1129 = vmatpush1.bf16.msra.mxu0 0
        %1130 = vmatprep.subr.bf16.mxu0 0
        %1131 = vmatpush1.bf16.msra.mxu0 0
        %1132 = vmatprep.subr.bf16.mxu0 0
        %1133 = vmatpush1.bf16.msra.mxu0 0
        %1134 = vmatprep.subr.bf16.mxu0 0
        %1135 = vmatpush1.bf16.msra.mxu0 0
        %1136 = vmatprep.mubr.bf16.mxu0 0
        %1137 = vmatmul.mubr.bf16.gmra.mrb[0].mxu0 %v1037
        %v1138 = vpop.f32.mrb[0].mxu0
        %v1139 = vadd.f32 %v1086, %v1138
        %v1140 = vpop.f32.mrb[0].mxu0
        %v1141 = vadd.f32 %v1088, %v1140
        %v1142 = vpop.f32.mrb[0].mxu0
        %v1143 = vadd.f32 %v1090, %v1142
        %v1144 = vpop.f32.mrb[0].mxu0
        %v1145 = vadd.f32 %v1092, %v1144
        %1146 = vmatprep.mubr.bf16.mxu0 0
        %1147 = vmatmul.mubr.bf16.gmra.mrb[0].mxu0 %v1040
        %v1148 = vpop.f32.mrb[0].mxu0
        %v1149 = vadd.f32 %v1096, %v1148
        %v1150 = vpop.f32.mrb[0].mxu0
        %v1151 = vadd.f32 %v1098, %v1150
        %v1152 = vpop.f32.mrb[0].mxu0
        %v1153 = vadd.f32 %v1100, %v1152
        %v1154 = vpop.f32.mrb[0].mxu0
        %v1155 = vadd.f32 %v1102, %v1154
        %1156 = vdwg.mxu0
        %v1157 = vld [vmem:[#allocation11] sm:$0xf]
        %v1158 = vld [vmem:[#allocation11 + $0x4] sm:$0xf]
        %v1159 = vld [vmem:[#allocation11 + $0x8] sm:$0xf]
        %v1160 = vld [vmem:[#allocation11 + $0xc] sm:$0xf]
        %v1161 = vpack.c.bf16 %v1143, %v1139
        %v1162 = vpack.c.bf16 %v1145, %v1141
        %v1163 = vpack.c.bf16 %v1153, %v1149
        %v1164 = vpack.c.bf16 %v1155, %v1151
        %v1165 = vld [vmem:[%s4] sm:$0xff]
        %v1166 = vld [vmem:[%s4 + $0x8] sm:$0xff]
        %v1167 = vld [vmem:[%s4 + $0x10] sm:$0xff]
        %v1168 = vld [vmem:[%s4 + $0x18] sm:$0xff]
        %1170 = vset.pattern.permute.xlu0 0
        %1171 = vperm.xlu0 %1170, %v1165
        %v1172 = vpop.permute.xlu0 %1171
        %1175 = vset.pattern.permute.xlu0 0
        %1176 = vperm.xlu0 %1175, %v1166
        %v1177 = vpop.permute.xlu0 %1176
        %1180 = vset.pattern.permute.xlu0 0
        %1181 = vperm.xlu0 %1180, %v1167
        %v1182 = vpop.permute.xlu0 %1181
        %1185 = vset.pattern.permute.xlu0 0
        %1186 = vperm.xlu0 %1185, %v1168
        %v1187 = vpop.permute.xlu0 %1186
        %v1193 = vunpack.c.l.b16 %v1157
        %v1194 = vunpack.c.l.b16 %v1158
        %v1195 = vunpack.c.l.b16 %v1159
        %v1196 = vunpack.c.l.b16 %v1160
        %v1197 = vpack.c.b16 %v1194, %v1193
        %v1198 = vpack.c.b16 %v1196, %v1195
        %vm1199 = vcmask 261120
        %v1201 = vsel %vm1199, %v1197, 0
        %v1204 = vsel %vm1199, %v1198, 0
        %1206 = vmatprep.subr.bf16.mxu0 %v1162
        %1207 = vmatpush1.bf16.msra.mxu0 %v1161
        %1208 = vmatprep.subr.bf16.mxu0 %v1164
        %1209 = vmatpush1.bf16.msra.mxu0 %v1163
        %1210 = vmatprep.subr.bf16.mxu0 0
        %1211 = vmatpush1.bf16.msra.mxu0 0
        %1212 = vmatprep.subr.bf16.mxu0 0
        %1213 = vmatpush1.bf16.msra.mxu0 0
        %1214 = vmatprep.subr.bf16.mxu0 0
        %1215 = vmatpush1.bf16.msra.mxu0 0
        %1216 = vmatprep.subr.bf16.mxu0 0
        %1217 = vmatpush1.bf16.msra.mxu0 0
        %1218 = vmatprep.subr.bf16.mxu0 0
        %1219 = vmatpush1.bf16.msra.mxu0 0
        %1220 = vmatprep.subr.bf16.mxu0 0
        %1221 = vmatpush1.bf16.msra.mxu0 0
        %1222 = vmatprep.subr.bf16.mxu0 0
        %1223 = vmatpush1.bf16.msra.mxu0 0
        %1224 = vmatprep.subr.bf16.mxu0 0
        %1225 = vmatpush1.bf16.msra.mxu0 0
        %1226 = vmatprep.subr.bf16.mxu0 0
        %1227 = vmatpush1.bf16.msra.mxu0 0
        %1228 = vmatprep.subr.bf16.mxu0 0
        %1229 = vmatpush1.bf16.msra.mxu0 0
        %1230 = vmatprep.subr.bf16.mxu0 0
        %1231 = vmatpush1.bf16.msra.mxu0 0
        %1232 = vmatprep.subr.bf16.mxu0 0
        %1233 = vmatpush1.bf16.msra.mxu0 0
        %1234 = vmatprep.subr.bf16.mxu0 0
        %1235 = vmatpush1.bf16.msra.mxu0 0
        %1236 = vmatprep.subr.bf16.mxu0 0
        %1237 = vmatpush1.bf16.msra.mxu0 0
        %1238 = vmatprep.mubr.bf16.mxu0 0
        %1239 = vmatmul.mubr.bf16.gmra.mrb[0].mxu0 %v1201
        %v1240 = vpop.f32.mrb[0].mxu0
        %v1241 = vadd.f32 %v1172, %v1240
        %v1242 = vpop.f32.mrb[0].mxu0
        %v1243 = vadd.f32 %v1172, %v1242
        %v1244 = vpop.f32.mrb[0].mxu0
        %v1245 = vadd.f32 %v1177, %v1244
        %v1246 = vpop.f32.mrb[0].mxu0
        %v1247 = vadd.f32 %v1177, %v1246
        %1248 = vmatprep.mubr.bf16.mxu0 0
        %1249 = vmatmul.mubr.bf16.gmra.mrb[0].mxu0 %v1204
        %v1250 = vpop.f32.mrb[0].mxu0
        %v1251 = vadd.f32 %v1182, %v1250
        %v1252 = vpop.f32.mrb[0].mxu0
        %v1253 = vadd.f32 %v1182, %v1252
        %v1254 = vpop.f32.mrb[0].mxu0
        %v1255 = vadd.f32 %v1187, %v1254
        %v1256 = vpop.f32.mrb[0].mxu0
        %v1257 = vadd.f32 %v1187, %v1256
        %1258 = vdwg.mxu0
        %v1259 = vld [vmem:[%s5] sm:$0xff]
        %v1260 = vld [vmem:[%s5 + $0x8] sm:$0xff]
        %v1261 = vld [vmem:[%s5 + $0x10] sm:$0xff]
        %v1262 = vld [vmem:[%s5 + $0x18] sm:$0xff]
        %v1263 = vld [vmem:[%s6] sm:$0xff]
        %v1264 = vld [vmem:[%s6 + $0x8] sm:$0xff]
        %v1265 = vld [vmem:[%s6 + $0x10] sm:$0xff]
        %v1266 = vld [vmem:[%s6 + $0x18] sm:$0xff]
        %v1267 = vld [vmem:[%s8] sm:$0xff]
        %v1268 = vld [vmem:[%s8 + $0x8] sm:$0xff]
        %v1269 = vld [vmem:[%s8 + $0x10] sm:$0xff]
        %v1270 = vld [vmem:[%s8 + $0x18] sm:$0xff]
        %v1271 = vld [vmem:[#allocation13] sm:$0xf]
        %v1273 = vsel %vm1199, %v1271, 0
        %1275 = vmatprep.subr.mxu0 %v1243
        %1276 = vmatpush1.msra.mxu0 %v1241
        %1277 = vmatprep.subr.mxu0 %v1247
        %1278 = vmatpush1.msra.mxu0 %v1245
        %1279 = vmatprep.subr.mxu0 %v1253
        %1280 = vmatpush1.msra.mxu0 %v1251
        %1281 = vmatprep.subr.mxu0 %v1257
        %1282 = vmatpush1.msra.mxu0 %v1255
        %1283 = vmatprep.subr.mxu0 0.0
        %1284 = vmatpush1.msra.mxu0 0.0
        %1285 = vmatprep.subr.mxu0 0.0
        %1286 = vmatpush1.msra.mxu0 0.0
        %1287 = vmatprep.subr.mxu0 0.0
        %1288 = vmatpush1.msra.mxu0 0.0
        %1289 = vmatprep.subr.mxu0 0.0
        %1290 = vmatpush1.msra.mxu0 0.0
        %1291 = vmatprep.subr.mxu0 0.0
        %1292 = vmatpush1.msra.mxu0 0.0
        %1293 = vmatprep.subr.mxu0 0.0
        %1294 = vmatpush1.msra.mxu0 0.0
        %1295 = vmatprep.subr.mxu0 0.0
        %1296 = vmatpush1.msra.mxu0 0.0
        %1297 = vmatprep.subr.mxu0 0.0
        %1298 = vmatpush1.msra.mxu0 0.0
        %1299 = vmatprep.subr.mxu0 0.0
        %1300 = vmatpush1.msra.mxu0 0.0
        %1301 = vmatprep.subr.mxu0 0.0
        %1302 = vmatpush1.msra.mxu0 0.0
        %1303 = vmatprep.subr.mxu0 0.0
        %1304 = vmatpush1.msra.mxu0 0.0
        %1305 = vmatprep.subr.mxu0 0.0
        %1306 = vmatpush1.msra.mxu0 0.0
        %1307 = vmatprep.subr.mxu0 0.0
        %1308 = vmatpush1.msra.mxu0 0.0
        %1309 = vmatprep.subr.mxu0 0.0
        %1310 = vmatpush1.msra.mxu0 0.0
        %1311 = vmatprep.subr.mxu0 0.0
        %1312 = vmatpush1.msra.mxu0 0.0
        %1313 = vmatprep.subr.mxu0 0.0
        %1314 = vmatpush1.msra.mxu0 0.0
        %1315 = vmatprep.subr.mxu0 0.0
        %1316 = vmatpush1.msra.mxu0 0.0
        %1317 = vmatprep.subr.mxu0 0.0
        %1318 = vmatpush1.msra.mxu0 0.0
        %1319 = vmatprep.subr.mxu0 0.0
        %1320 = vmatpush1.msra.mxu0 0.0
        %1321 = vmatprep.subr.mxu0 0.0
        %1322 = vmatpush1.msra.mxu0 0.0
        %1323 = vmatprep.subr.mxu0 0.0
        %1324 = vmatpush1.msra.mxu0 0.0
        %1325 = vmatprep.subr.mxu0 0.0
        %1326 = vmatpush1.msra.mxu0 0.0
        %1327 = vmatprep.subr.mxu0 0.0
        %1328 = vmatpush1.msra.mxu0 0.0
        %1329 = vmatprep.subr.mxu0 0.0
        %1330 = vmatpush1.msra.mxu0 0.0
        %1331 = vmatprep.subr.mxu0 0.0
        %1332 = vmatpush1.msra.mxu0 0.0
        %1333 = vmatprep.subr.mxu0 0.0
        %1334 = vmatpush1.msra.mxu0 0.0
        %1335 = vmatprep.subr.mxu0 0.0
        %1336 = vmatpush1.msra.mxu0 0.0
        %1337 = vmatprep.subr.mxu0 0.0
        %1338 = vmatpush1.msra.mxu0 0.0
        %1339 = vmatprep.mubr.f32.mxu0 0.0
        %1340 = vmatmul.mubr.f32.gmra.mrb[0].mxu0 %v1273
        %v1341 = vpop.f32.mrb[0].mxu0
        %v1342 = vadd.f32 0.0, %v1341
        %v1343 = vpop.f32.mrb[0].mxu0
        %v1344 = vadd.f32 0.0, %v1343
        %1345 = vdwg.mxu0
        %vm1346 = vcmask 31744
        %v1348 = vsel %vm1346, %v1267, 0
        %v1351 = vsel %vm1346, %v1268, 0
        %v1354 = vsel %vm1346, %v1269, 0
        %v1357 = vsel %vm1346, %v1270, 0
        %vm1359 = vcmask 1043456
        %v1361 = vsel %vm1359, %v1342, 0
        %v1364 = vsel %vm1359, %v1344, 0
        %1366 = vmatprep.subr.mxu0 %v1364
        %1367 = vmatpush1.msra.mxu0 %v1361
        %1368 = vmatprep.subr.mxu0 0.0
        %1369 = vmatpush1.msra.mxu0 0.0
        %1370 = vmatprep.subr.mxu0 0.0
        %1371 = vmatpush1.msra.mxu0 0.0
        %1372 = vmatprep.subr.mxu0 0.0
        %1373 = vmatpush1.msra.mxu0 0.0
        %1374 = vmatprep.subr.mxu0 0.0
        %1375 = vmatpush1.msra.mxu0 0.0
        %1376 = vmatprep.subr.mxu0 0.0
        %1377 = vmatpush1.msra.mxu0 0.0
        %1378 = vmatprep.subr.mxu0 0.0
        %1379 = vmatpush1.msra.mxu0 0.0
        %1380 = vmatprep.subr.mxu0 0.0
        %1381 = vmatpush1.msra.mxu0 0.0
        %1382 = vmatprep.subr.mxu0 0.0
        %1383 = vmatpush1.msra.mxu0 0.0
        %1384 = vmatprep.subr.mxu0 0.0
        %1385 = vmatpush1.msra.mxu0 0.0
        %1386 = vmatprep.subr.mxu0 0.0
        %1387 = vmatpush1.msra.mxu0 0.0
        %1388 = vmatprep.subr.mxu0 0.0
        %1389 = vmatpush1.msra.mxu0 0.0
        %1390 = vmatprep.subr.mxu0 0.0
        %1391 = vmatpush1.msra.mxu0 0.0
        %1392 = vmatprep.subr.mxu0 0.0
        %1393 = vmatpush1.msra.mxu0 0.0
        %1394 = vmatprep.subr.mxu0 0.0
        %1395 = vmatpush1.msra.mxu0 0.0
        %1396 = vmatprep.subr.mxu0 0.0
        %1397 = vmatpush1.msra.mxu0 0.0
        %1398 = vmatprep.subr.mxu0 0.0
        %1399 = vmatpush1.msra.mxu0 0.0
        %1400 = vmatprep.subr.mxu0 0.0
        %1401 = vmatpush1.msra.mxu0 0.0
        %1402 = vmatprep.subr.mxu0 0.0
        %1403 = vmatpush1.msra.mxu0 0.0
        %1404 = vmatprep.subr.mxu0 0.0
        %1405 = vmatpush1.msra.mxu0 0.0
        %1406 = vmatprep.subr.mxu0 0.0
        %1407 = vmatpush1.msra.mxu0 0.0
        %1408 = vmatprep.subr.mxu0 0.0
        %1409 = vmatpush1.msra.mxu0 0.0
        %1410 = vmatprep.subr.mxu0 0.0
        %1411 = vmatpush1.msra.mxu0 0.0
        %1412 = vmatprep.subr.mxu0 0.0
        %1413 = vmatpush1.msra.mxu0 0.0
        %1414 = vmatprep.subr.mxu0 0.0
        %1415 = vmatpush1.msra.mxu0 0.0
        %1416 = vmatprep.subr.mxu0 0.0
        %1417 = vmatpush1.msra.mxu0 0.0
        %1418 = vmatprep.subr.mxu0 0.0
        %1419 = vmatpush1.msra.mxu0 0.0
        %1420 = vmatprep.subr.mxu0 0.0
        %1421 = vmatpush1.msra.mxu0 0.0
        %1422 = vmatprep.subr.mxu0 0.0
        %1423 = vmatpush1.msra.mxu0 0.0
        %1424 = vmatprep.subr.mxu0 0.0
        %1425 = vmatpush1.msra.mxu0 0.0
        %1426 = vmatprep.subr.mxu0 0.0
        %1427 = vmatpush1.msra.mxu0 0.0
        %1428 = vmatprep.subr.mxu0 0.0
        %1429 = vmatpush1.msra.mxu0 0.0
        %1430 = vmatprep.mubr.f32.mxu0 0.0
        %1431 = vmatmul.mubr.f32.gmra.mrb[0].mxu0 %v1348
        %v1432 = vpop.f32.mrb[0].mxu0
        %v1433 = vadd.f32 0.0, %v1432
        %v1434 = vpop.f32.mrb[0].mxu0
        %v1435 = vadd.f32 0.0, %v1434
        %1436 = vmatprep.mubr.f32.mxu0 0.0
        %1437 = vmatmul.mubr.f32.gmra.mrb[0].mxu0 %v1351
        %v1438 = vpop.f32.mrb[0].mxu0
        %v1439 = vadd.f32 0.0, %v1438
        %v1440 = vpop.f32.mrb[0].mxu0
        %v1441 = vadd.f32 0.0, %v1440
        %1442 = vmatprep.mubr.f32.mxu0 0.0
        %1443 = vmatmul.mubr.f32.gmra.mrb[0].mxu0 %v1354
        %v1444 = vpop.f32.mrb[0].mxu0
        %v1445 = vadd.f32 0.0, %v1444
        %v1446 = vpop.f32.mrb[0].mxu0
        %v1447 = vadd.f32 0.0, %v1446
        %1448 = vmatprep.mubr.f32.mxu0 0.0
        %1449 = vmatmul.mubr.f32.gmra.mrb[0].mxu0 %v1357
        %v1450 = vpop.f32.mrb[0].mxu0
        %v1451 = vadd.f32 0.0, %v1450
        %v1452 = vpop.f32.mrb[0].mxu0
        %v1453 = vadd.f32 0.0, %v1452
        %1454 = vdwg.mxu0
        %v1455 = vsub.f32 %v1241, %v1433
        %v1456 = vsub.f32 %v1243, %v1435
        %v1457 = vsub.f32 %v1245, %v1439
        %v1458 = vsub.f32 %v1247, %v1441
        %v1459 = vsub.f32 %v1251, %v1445
        %v1460 = vsub.f32 %v1253, %v1447
        %v1461 = vsub.f32 %v1255, %v1451
        %v1462 = vsub.f32 %v1257, %v1453
        %v1463 = vmul.f32 %v1455, %v1455
        %v1464 = vmul.f32 %v1456, %v1456
        %v1465 = vmul.f32 %v1457, %v1457
        %v1466 = vmul.f32 %v1458, %v1458
        %v1467 = vmul.f32 %v1459, %v1459
        %v1468 = vmul.f32 %v1460, %v1460
        %v1469 = vmul.f32 %v1461, %v1461
        %v1470 = vmul.f32 %v1462, %v1462
        %1471 = vmatprep.subr.mxu0 %v1464
        %1472 = vmatpush1.msra.mxu0 %v1463
        %1473 = vmatprep.subr.mxu0 %v1466
        %1474 = vmatpush1.msra.mxu0 %v1465
        %1475 = vmatprep.subr.mxu0 %v1468
        %1476 = vmatpush1.msra.mxu0 %v1467
        %1477 = vmatprep.subr.mxu0 %v1470
        %1478 = vmatpush1.msra.mxu0 %v1469
        %1479 = vmatprep.subr.mxu0 0.0
        %1480 = vmatpush1.msra.mxu0 0.0
        %1481 = vmatprep.subr.mxu0 0.0
        %1482 = vmatpush1.msra.mxu0 0.0
        %1483 = vmatprep.subr.mxu0 0.0
        %1484 = vmatpush1.msra.mxu0 0.0
        %1485 = vmatprep.subr.mxu0 0.0
        %1486 = vmatpush1.msra.mxu0 0.0
        %1487 = vmatprep.subr.mxu0 0.0
        %1488 = vmatpush1.msra.mxu0 0.0
        %1489 = vmatprep.subr.mxu0 0.0
        %1490 = vmatpush1.msra.mxu0 0.0
        %1491 = vmatprep.subr.mxu0 0.0
        %1492 = vmatpush1.msra.mxu0 0.0
        %1493 = vmatprep.subr.mxu0 0.0
        %1494 = vmatpush1.msra.mxu0 0.0
        %1495 = vmatprep.subr.mxu0 0.0
        %1496 = vmatpush1.msra.mxu0 0.0
        %1497 = vmatprep.subr.mxu0 0.0
        %1498 = vmatpush1.msra.mxu0 0.0
        %1499 = vmatprep.subr.mxu0 0.0
        %1500 = vmatpush1.msra.mxu0 0.0
        %1501 = vmatprep.subr.mxu0 0.0
        %1502 = vmatpush1.msra.mxu0 0.0
        %1503 = vmatprep.subr.mxu0 0.0
        %1504 = vmatpush1.msra.mxu0 0.0
        %1505 = vmatprep.subr.mxu0 0.0
        %1506 = vmatpush1.msra.mxu0 0.0
        %1507 = vmatprep.subr.mxu0 0.0
        %1508 = vmatpush1.msra.mxu0 0.0
        %1509 = vmatprep.subr.mxu0 0.0
        %1510 = vmatpush1.msra.mxu0 0.0
        %1511 = vmatprep.subr.mxu0 0.0
        %1512 = vmatpush1.msra.mxu0 0.0
        %1513 = vmatprep.subr.mxu0 0.0
        %1514 = vmatpush1.msra.mxu0 0.0
        %1515 = vmatprep.subr.mxu0 0.0
        %1516 = vmatpush1.msra.mxu0 0.0
        %1517 = vmatprep.subr.mxu0 0.0
        %1518 = vmatpush1.msra.mxu0 0.0
        %1519 = vmatprep.subr.mxu0 0.0
        %1520 = vmatpush1.msra.mxu0 0.0
        %1521 = vmatprep.subr.mxu0 0.0
        %1522 = vmatpush1.msra.mxu0 0.0
        %1523 = vmatprep.subr.mxu0 0.0
        %1524 = vmatpush1.msra.mxu0 0.0
        %1525 = vmatprep.subr.mxu0 0.0
        %1526 = vmatpush1.msra.mxu0 0.0
        %1527 = vmatprep.subr.mxu0 0.0
        %1528 = vmatpush1.msra.mxu0 0.0
        %1529 = vmatprep.subr.mxu0 0.0
        %1530 = vmatpush1.msra.mxu0 0.0
        %1531 = vmatprep.subr.mxu0 0.0
        %1532 = vmatpush1.msra.mxu0 0.0
        %1533 = vmatprep.subr.mxu0 0.0
        %1534 = vmatpush1.msra.mxu0 0.0
        %1535 = vmatprep.mubr.f32.mxu0 0.0
        %1536 = vmatmul.mubr.f32.gmra.mrb[0].mxu0 %v1273
        %v1537 = vpop.f32.mrb[0].mxu0
        %v1538 = vadd.f32 0.0, %v1537
        %v1539 = vpop.f32.mrb[0].mxu0
        %v1540 = vadd.f32 0.0, %v1539
        %1541 = vdwg.mxu0
        %v1543 = vsel %vm1359, %v1538, 0
        %v1546 = vsel %vm1359, %v1540, 0
        %1548 = vmatprep.subr.mxu0 %v1546
        %1549 = vmatpush1.msra.mxu0 %v1543
        %1550 = vmatprep.subr.mxu0 0.0
        %1551 = vmatpush1.msra.mxu0 0.0
        %1552 = vmatprep.subr.mxu0 0.0
        %1553 = vmatpush1.msra.mxu0 0.0
        %1554 = vmatprep.subr.mxu0 0.0
        %1555 = vmatpush1.msra.mxu0 0.0
        %1556 = vmatprep.subr.mxu0 0.0
        %1557 = vmatpush1.msra.mxu0 0.0
        %1558 = vmatprep.subr.mxu0 0.0
        %1559 = vmatpush1.msra.mxu0 0.0
        %1560 = vmatprep.subr.mxu0 0.0
        %1561 = vmatpush1.msra.mxu0 0.0
        %1562 = vmatprep.subr.mxu0 0.0
        %1563 = vmatpush1.msra.mxu0 0.0
        %1564 = vmatprep.subr.mxu0 0.0
        %1565 = vmatpush1.msra.mxu0 0.0
        %1566 = vmatprep.subr.mxu0 0.0
        %1567 = vmatpush1.msra.mxu0 0.0
        %1568 = vmatprep.subr.mxu0 0.0
        %1569 = vmatpush1.msra.mxu0 0.0
        %1570 = vmatprep.subr.mxu0 0.0
        %1571 = vmatpush1.msra.mxu0 0.0
        %1572 = vmatprep.subr.mxu0 0.0
        %1573 = vmatpush1.msra.mxu0 0.0
        %1574 = vmatprep.subr.mxu0 0.0
        %1575 = vmatpush1.msra.mxu0 0.0
        %1576 = vmatprep.subr.mxu0 0.0
        %1577 = vmatpush1.msra.mxu0 0.0
        %1578 = vmatprep.subr.mxu0 0.0
        %1579 = vmatpush1.msra.mxu0 0.0
        %1580 = vmatprep.subr.mxu0 0.0
        %1581 = vmatpush1.msra.mxu0 0.0
        %1582 = vmatprep.subr.mxu0 0.0
        %1583 = vmatpush1.msra.mxu0 0.0
        %1584 = vmatprep.subr.mxu0 0.0
        %1585 = vmatpush1.msra.mxu0 0.0
        %1586 = vmatprep.subr.mxu0 0.0
        %1587 = vmatpush1.msra.mxu0 0.0
        %1588 = vmatprep.subr.mxu0 0.0
        %1589 = vmatpush1.msra.mxu0 0.0
        %1590 = vmatprep.subr.mxu0 0.0
        %1591 = vmatpush1.msra.mxu0 0.0
        %1592 = vmatprep.subr.mxu0 0.0
        %1593 = vmatpush1.msra.mxu0 0.0
        %1594 = vmatprep.subr.mxu0 0.0
        %1595 = vmatpush1.msra.mxu0 0.0
        %1596 = vmatprep.subr.mxu0 0.0
        %1597 = vmatpush1.msra.mxu0 0.0
        %1598 = vmatprep.subr.mxu0 0.0
        %1599 = vmatpush1.msra.mxu0 0.0
        %1600 = vmatprep.subr.mxu0 0.0
        %1601 = vmatpush1.msra.mxu0 0.0
        %1602 = vmatprep.subr.mxu0 0.0
        %1603 = vmatpush1.msra.mxu0 0.0
        %1604 = vmatprep.subr.mxu0 0.0
        %1605 = vmatpush1.msra.mxu0 0.0
        %1606 = vmatprep.subr.mxu0 0.0
        %1607 = vmatpush1.msra.mxu0 0.0
        %1608 = vmatprep.subr.mxu0 0.0
        %1609 = vmatpush1.msra.mxu0 0.0
        %1610 = vmatprep.subr.mxu0 0.0
        %1611 = vmatpush1.msra.mxu0 0.0
        %1612 = vmatprep.mubr.f32.mxu0 0.0
        %1613 = vmatmul.mubr.f32.gmra.mrb[0].mxu0 %v1348
        %v1614 = vpop.f32.mrb[0].mxu0
        %v1615 = vadd.f32 1e-06, %v1614
        %v1616 = vpop.f32.mrb[0].mxu0
        %v1617 = vadd.f32 1e-06, %v1616
        %1618 = vmatprep.mubr.f32.mxu0 0.0
        %1619 = vmatmul.mubr.f32.gmra.mrb[0].mxu0 %v1351
        %v1620 = vpop.f32.mrb[0].mxu0
        %v1621 = vadd.f32 1e-06, %v1620
        %v1622 = vpop.f32.mrb[0].mxu0
        %v1623 = vadd.f32 1e-06, %v1622
        %1624 = vmatprep.mubr.f32.mxu0 0.0
        %1625 = vmatmul.mubr.f32.gmra.mrb[0].mxu0 %v1354
        %v1626 = vpop.f32.mrb[0].mxu0
        %v1627 = vadd.f32 1e-06, %v1626
        %v1628 = vpop.f32.mrb[0].mxu0
        %v1629 = vadd.f32 1e-06, %v1628
        %1630 = vmatprep.mubr.f32.mxu0 0.0
        %1631 = vmatmul.mubr.f32.gmra.mrb[0].mxu0 %v1357
        %v1632 = vpop.f32.mrb[0].mxu0
        %v1633 = vadd.f32 1e-06, %v1632
        %v1634 = vpop.f32.mrb[0].mxu0
        %v1635 = vadd.f32 1e-06, %v1634
        %1636 = vdwg.mxu0
        %v1637 = vrsqrt.pop %v1615
        %v1638 = vrsqrt.pop %v1617
        %v1639 = vrsqrt.pop %v1621
        %v1640 = vrsqrt.pop %v1623
        %v1641 = vrsqrt.pop %v1627
        %v1642 = vrsqrt.pop %v1629
        %v1643 = vrsqrt.pop %v1633
        %v1644 = vrsqrt.pop %v1635
        %v1645 = vmul.f32 %v1455, %v1637
        %v1646 = vmul.f32 %v1456, %v1638
        %v1647 = vmul.f32 %v1457, %v1639
        %v1648 = vmul.f32 %v1458, %v1640
        %v1649 = vmul.f32 %v1459, %v1641
        %v1650 = vmul.f32 %v1460, %v1642
        %v1651 = vmul.f32 %v1461, %v1643
        %v1652 = vmul.f32 %v1462, %v1644
        %1654 = vset.pattern.permute.xlu0 0
        %1655 = vperm.xlu0 %1654, %v1259
        %v1656 = vpop.permute.xlu0 %1655
        %1659 = vset.pattern.permute.xlu0 0
        %1660 = vperm.xlu0 %1659, %v1260
        %v1661 = vpop.permute.xlu0 %1660
        %1664 = vset.pattern.permute.xlu0 0
        %1665 = vperm.xlu0 %1664, %v1261
        %v1666 = vpop.permute.xlu0 %1665
        %1669 = vset.pattern.permute.xlu0 0
        %1670 = vperm.xlu0 %1669, %v1262
        %v1671 = vpop.permute.xlu0 %1670
        %v1673 = vmul.f32 %v1656, %v1645
        %v1674 = vmul.f32 %v1656, %v1646
        %v1675 = vmul.f32 %v1661, %v1647
        %v1676 = vmul.f32 %v1661, %v1648
        %v1677 = vmul.f32 %v1666, %v1649
        %v1678 = vmul.f32 %v1666, %v1650
        %v1679 = vmul.f32 %v1671, %v1651
        %v1680 = vmul.f32 %v1671, %v1652
        %1682 = vset.pattern.permute.xlu0 0
        %1683 = vperm.xlu0 %1682, %v1263
        %v1684 = vpop.permute.xlu0 %1683
        %1687 = vset.pattern.permute.xlu0 0
        %1688 = vperm.xlu0 %1687, %v1264
        %v1689 = vpop.permute.xlu0 %1688
        %1692 = vset.pattern.permute.xlu0 0
        %1693 = vperm.xlu0 %1692, %v1265
        %v1694 = vpop.permute.xlu0 %1693
        %1697 = vset.pattern.permute.xlu0 0
        %1698 = vperm.xlu0 %1697, %v1266
        %v1699 = vpop.permute.xlu0 %1698
        %v1701 = vadd.f32 %v1673, %v1684
        %v1702 = vadd.f32 %v1674, %v1684
        %v1703 = vadd.f32 %v1675, %v1689
        %v1704 = vadd.f32 %v1676, %v1689
        %v1705 = vadd.f32 %v1677, %v1694
        %v1706 = vadd.f32 %v1678, %v1694
        %v1707 = vadd.f32 %v1679, %v1699
        %v1708 = vadd.f32 %v1680, %v1699
        %v1709 = vmul.f32 %v1701, 0.5
        %v1710 = vmul.f32 %v1702, 0.5
        %v1711 = vmul.f32 %v1703, 0.5
        %v1712 = vmul.f32 %v1704, 0.5
        %v1713 = vmul.f32 %v1705, 0.5
        %v1714 = vmul.f32 %v1706, 0.5
        %v1715 = vmul.f32 %v1707, 0.5
        %v1716 = vmul.f32 %v1708, 0.5
        %v1717 = vmul.f32 %v1701, 0.044715
        %v1718 = vmul.f32 %v1702, 0.044715
        %v1719 = vmul.f32 %v1703, 0.044715
        %v1720 = vmul.f32 %v1704, 0.044715
        %v1721 = vmul.f32 %v1705, 0.044715
        %v1722 = vmul.f32 %v1706, 0.044715
        %v1723 = vmul.f32 %v1707, 0.044715
        %v1724 = vmul.f32 %v1708, 0.044715
        %v1725 = vmul.f32 %v1717, %v1701
        %v1726 = vmul.f32 %v1718, %v1702
        %v1727 = vmul.f32 %v1719, %v1703
        %v1728 = vmul.f32 %v1720, %v1704
        %v1729 = vmul.f32 %v1721, %v1705
        %v1730 = vmul.f32 %v1722, %v1706
        %v1731 = vmul.f32 %v1723, %v1707
        %v1732 = vmul.f32 %v1724, %v1708
        %v1733 = vmul.f32 %v1725, %v1701
        %v1734 = vmul.f32 %v1726, %v1702
        %v1735 = vmul.f32 %v1727, %v1703
        %v1736 = vmul.f32 %v1728, %v1704
        %v1737 = vmul.f32 %v1729, %v1705
        %v1738 = vmul.f32 %v1730, %v1706
        %v1739 = vmul.f32 %v1731, %v1707
        %v1740 = vmul.f32 %v1732, %v1708
        %v1741 = vadd.f32 %v1701, %v1733
        %v1742 = vadd.f32 %v1702, %v1734
        %v1743 = vadd.f32 %v1703, %v1735
        %v1744 = vadd.f32 %v1704, %v1736
        %v1745 = vadd.f32 %v1705, %v1737
        %v1746 = vadd.f32 %v1706, %v1738
        %v1747 = vadd.f32 %v1707, %v1739
        %v1748 = vadd.f32 %v1708, %v1740
        %v1749 = vmul.f32 %v1741, 0.7978846
        %v1750 = vmul.f32 %v1742, 0.7978846
        %v1751 = vmul.f32 %v1743, 0.7978846
        %v1752 = vmul.f32 %v1744, 0.7978846
        %v1753 = vmul.f32 %v1745, 0.7978846
        %v1754 = vmul.f32 %v1746, 0.7978846
        %v1755 = vmul.f32 %v1747, 0.7978846
        %v1756 = vmul.f32 %v1748, 0.7978846
        %v1757 = vtanh.pop %v1749
        %v1758 = vtanh.pop %v1750
        %v1759 = vtanh.pop %v1751
        %v1760 = vtanh.pop %v1752
        %v1761 = vtanh.pop %v1753
        %v1762 = vtanh.pop %v1754
        %v1763 = vtanh.pop %v1755
        %v1764 = vtanh.pop %v1756
        %v1765 = vadd.f32 %v1757, 1.0
        %v1766 = vadd.f32 %v1758, 1.0
        %v1767 = vadd.f32 %v1759, 1.0
        %v1768 = vadd.f32 %v1760, 1.0
        %v1769 = vadd.f32 %v1761, 1.0
        %v1770 = vadd.f32 %v1762, 1.0
        %v1771 = vadd.f32 %v1763, 1.0
        %v1772 = vadd.f32 %v1764, 1.0
        %v1773 = vmul.f32 %v1709, %v1765
        %v1774 = vmul.f32 %v1710, %v1766
        %v1775 = vmul.f32 %v1711, %v1767
        %v1776 = vmul.f32 %v1712, %v1768
        %v1777 = vmul.f32 %v1713, %v1769
        %v1778 = vmul.f32 %v1714, %v1770
        %v1779 = vmul.f32 %v1715, %v1771
        %v1780 = vmul.f32 %v1716, %v1772
        %v1781 = vld [vmem:[%s10] sm:$0xff]
        %v1782 = vld [vmem:[%s10 + $0x8] sm:$0xff]
        %v1783 = vld [vmem:[%s10 + $0x10] sm:$0xff]
        %v1784 = vld [vmem:[%s10 + $0x18] sm:$0xff]
        %1785 = vst [vmem:[#allocation2] sm:$0xff] 0
        %1786 = vst [vmem:[#allocation2 + $0x8] sm:$0xff] 0
        %vm1787 = vcmask 277504
        %1788 = vst.msk [vmem:[#allocation2 + $0x10] sm:$0xff] %vm1787, 0
        %1789 = vst [vmem:[#allocation2 + $0x18] sm:$0xff] 0
        %1790 = vst [vmem:[#allocation2 + $0x20] sm:$0xff] 0
        %1791 = vst.msk [vmem:[#allocation2 + $0x28] sm:$0xff] %vm1787, 0
        %v1792 = vpack.c.bf16 %v1775, %v1773
        %v1793 = vpack.c.bf16 %v1776, %v1774
        %v1794 = vpack.c.bf16 %v1779, %v1777
        %v1795 = vpack.c.bf16 %v1780, %v1778
        %1800 = vrot.lane.b32.xlu0 %v1792, 17
        %v1801 = vpop.permute.xlu0 %1800
        %1802 = vrot.lane.b32.xlu0 %v1793, 17
        %v1803 = vpop.permute.xlu0 %1802
        %1804 = vrot.lane.b32.xlu0 %v1794, 17
        %v1805 = vpop.permute.xlu0 %1804
        %1806 = vrot.lane.b32.xlu0 %v1795, 17
        %v1807 = vpop.permute.xlu0 %1806
        %vm1808 = vcmask 138240
        %v1809 = vsel %vm1808, %v1801, %v1803
        %v1810 = vsel %vm1808, %v1805, %v1807
        %vm1817 = vcmask 1047688
        %1818 = vst.msk [vmem:[#allocation2] sm:$0xff] %vm1817, %v1801
        %1819 = vst [vmem:[#allocation2 + $0x8] sm:$0xff] %v1809
        %vm1820 = vcmask 138240
        %1821 = vst.msk [vmem:[#allocation2 + $0x10] sm:$0xff] %vm1820, %v1803
        %1822 = vst.msk [vmem:[#allocation2 + $0x18] sm:$0xff] %vm1817, %v1805
        %1823 = vst [vmem:[#allocation2 + $0x20] sm:$0xff] %v1810
        %1824 = vst.msk [vmem:[#allocation2 + $0x28] sm:$0xff] %vm1820, %v1807
        %v1825 = vld [vmem:[#allocation2] sm:$0xff]
        %v1826 = vld [vmem:[#allocation2 + $0x8] sm:$0xff]
        %v1827 = vld [vmem:[#allocation2 + $0x18] sm:$0xff]
        %v1828 = vld [vmem:[#allocation2 + $0x20] sm:$0xff]
        %v1829 = vmul.bf16 %v1825, %v799
        %v1830 = vmul.bf16 %v1826, %v800
        %v1831 = vmul.bf16 %v1827, %v799
        %v1832 = vmul.bf16 %v1828, %v800
        %1833 = vst [vmem:[#allocation3] sm:$0xff] %v1829
        %1834 = vst [vmem:[#allocation3 + $0x8] sm:$0xff] %v1830
        %1835 = vst [vmem:[#allocation3 + $0x10] sm:$0xff] %v1831
        %1836 = vst [vmem:[#allocation3 + $0x18] sm:$0xff] %v1832
        %v1837 = vld [vmem:[#allocation2] sm:$0xff]
        %v1838 = vld [vmem:[#allocation2 + $0x8] sm:$0xff]
        %v1839 = vld [vmem:[#allocation2 + $0x10] sm:$0xff]
        %v1840 = vld [vmem:[#allocation2 + $0x18] sm:$0xff]
        %v1841 = vld [vmem:[#allocation2 + $0x20] sm:$0xff]
        %v1842 = vld [vmem:[#allocation2 + $0x28] sm:$0xff]
        %1849 = vrot.lane.b32.xlu0 %v1837, 127
        %v1850 = vpop.permute.xlu0 %1849
        %1851 = vrot.lane.b32.xlu0 %v1838, 127
        %v1852 = vpop.permute.xlu0 %1851
        %1853 = vrot.lane.b32.xlu0 %v1839, 127
        %v1854 = vpop.permute.xlu0 %1853
        %1855 = vrot.lane.b32.xlu0 %v1840, 127
        %v1856 = vpop.permute.xlu0 %1855
        %1857 = vrot.lane.b32.xlu0 %v1841, 127
        %v1858 = vpop.permute.xlu0 %1857
        %1859 = vrot.lane.b32.xlu0 %v1842, 127
        %v1860 = vpop.permute.xlu0 %1859
        %vm1861 = vcmask 1039360
        %v1862 = vsel %vm1861, %v1850, %v1852
        %v1863 = vsel %vm1861, %v1852, %v1854
        %v1864 = vsel %vm1861, %v1856, %v1858
        %v1865 = vsel %vm1861, %v1858, %v1860
        %1870 = vst [vmem:[#allocation3 + $0x20] sm:$0xff] %v1862
        %1871 = vst [vmem:[#allocation3 + $0x28] sm:$0xff] %v1863
        %1872 = vst [vmem:[#allocation3 + $0x30] sm:$0xff] %v1864
        %1873 = vst [vmem:[#allocation3 + $0x38] sm:$0xff] %v1865
        %v1874 = vld [vmem:[#allocation2] sm:$0xff]
        %v1875 = vld [vmem:[#allocation2 + $0x8] sm:$0xff]
        %v1876 = vld [vmem:[#allocation2 + $0x10] sm:$0xff]
        %v1877 = vld [vmem:[#allocation2 + $0x18] sm:$0xff]
        %v1878 = vld [vmem:[#allocation2 + $0x20] sm:$0xff]
        %v1879 = vld [vmem:[#allocation2 + $0x28] sm:$0xff]
        %1882 = vrot.lane.b32.xlu0 %v805, 2
        %v1883 = vpop.permute.xlu0 %1882
        %1884 = vrot.lane.b32.xlu0 %v806, 2
        %v1885 = vpop.permute.xlu0 %1884
        %vm1886 = vcmask 15360
        %v1887 = vsel %vm1886, %v1883, %v1885
        %v1891 = vmul.bf16 %v1874, %v1883
        %v1892 = vmul.bf16 %v1875, %v1887
        %v1893 = vmul.bf16 %v1876, %v1885
        %v1894 = vmul.bf16 %v1877, %v1883
        %v1895 = vmul.bf16 %v1878, %v1887
        %v1896 = vmul.bf16 %v1879, %v1885
        %1903 = vrot.lane.b32.xlu0 %v1891, 126
        %v1904 = vpop.permute.xlu0 %1903
        %1905 = vrot.lane.b32.xlu0 %v1892, 126
        %v1906 = vpop.permute.xlu0 %1905
        %1907 = vrot.lane.b32.xlu0 %v1893, 126
        %v1908 = vpop.permute.xlu0 %1907
        %1909 = vrot.lane.b32.xlu0 %v1894, 126
        %v1910 = vpop.permute.xlu0 %1909
        %1911 = vrot.lane.b32.xlu0 %v1895, 126
        %v1912 = vpop.permute.xlu0 %1911
        %1913 = vrot.lane.b32.xlu0 %v1896, 126
        %v1914 = vpop.permute.xlu0 %1913
        %vm1915 = vcmask 1031168
        %v1916 = vsel %vm1915, %v1904, %v1906
        %v1917 = vsel %vm1915, %v1906, %v1908
        %v1918 = vsel %vm1915, %v1910, %v1912
        %v1919 = vsel %vm1915, %v1912, %v1914
        %1924 = vst [vmem:[#allocation3 + $0x40] sm:$0xff] %v1916
        %1925 = vst [vmem:[#allocation3 + $0x48] sm:$0xff] %v1917
        %1926 = vst [vmem:[#allocation3 + $0x50] sm:$0xff] %v1918
        %1927 = vst [vmem:[#allocation3 + $0x58] sm:$0xff] %v1919
        %v1928 = vld [vmem:[#allocation2] sm:$0xff]
        %v1929 = vld [vmem:[#allocation2 + $0x8] sm:$0xff]
        %v1930 = vld [vmem:[#allocation2 + $0x10] sm:$0xff]
        %v1931 = vld [vmem:[#allocation2 + $0x18] sm:$0xff]
        %v1932 = vld [vmem:[#allocation2 + $0x20] sm:$0xff]
        %v1933 = vld [vmem:[#allocation2 + $0x28] sm:$0xff]
        %1936 = vrot.lane.b32.xlu0 %v799, 16
        %v1937 = vpop.permute.xlu0 %1936
        %1938 = vrot.lane.b32.xlu0 %v800, 16
        %v1939 = vpop.permute.xlu0 %1938
        %vm1940 = vcmask 130048
        %v1941 = vsel %vm1940, %v1937, %v1939
        %v1945 = vmul.bf16 %v1928, %v1937
        %v1946 = vmul.bf16 %v1929, %v1941
        %v1947 = vmul.bf16 %v1930, %v1939
        %v1948 = vmul.bf16 %v1931, %v1937
        %v1949 = vmul.bf16 %v1932, %v1941
        %v1950 = vmul.bf16 %v1933, %v1939
        %1957 = vrot.lane.b32.xlu0 %v1945, 112
        %v1958 = vpop.permute.xlu0 %1957
        %1959 = vrot.lane.b32.xlu0 %v1946, 112
        %v1960 = vpop.permute.xlu0 %1959
        %1961 = vrot.lane.b32.xlu0 %v1947, 112
        %v1962 = vpop.permute.xlu0 %1961
        %1963 = vrot.lane.b32.xlu0 %v1948, 112
        %v1964 = vpop.permute.xlu0 %1963
        %1965 = vrot.lane.b32.xlu0 %v1949, 112
        %v1966 = vpop.permute.xlu0 %1965
        %1967 = vrot.lane.b32.xlu0 %v1950, 112
        %v1968 = vpop.permute.xlu0 %1967
        %vm1969 = vcmask 916480
        %v1970 = vsel %vm1969, %v1958, %v1960
        %v1971 = vsel %vm1969, %v1960, %v1962
        %v1972 = vsel %vm1969, %v1964, %v1966
        %v1973 = vsel %vm1969, %v1966, %v1968
        %1978 = vst [vmem:[#allocation3 + $0x60] sm:$0xff] %v1970
        %1979 = vst [vmem:[#allocation3 + $0x68] sm:$0xff] %v1971
        %1980 = vst [vmem:[#allocation3 + $0x70] sm:$0xff] %v1972
        %1981 = vst [vmem:[#allocation3 + $0x78] sm:$0xff] %v1973
        %v1982 = vld [vmem:[#allocation2] sm:$0xff]
        %v1983 = vld [vmem:[#allocation2 + $0x8] sm:$0xff]
        %v1984 = vld [vmem:[#allocation2 + $0x10] sm:$0xff]
        %v1985 = vld [vmem:[#allocation2 + $0x18] sm:$0xff]
        %v1986 = vld [vmem:[#allocation2 + $0x20] sm:$0xff]
        %v1987 = vld [vmem:[#allocation2 + $0x28] sm:$0xff]
        %1994 = vrot.lane.b32.xlu0 %v1982, 111
        %v1995 = vpop.permute.xlu0 %1994
        %1996 = vrot.lane.b32.xlu0 %v1983, 111
        %v1997 = vpop.permute.xlu0 %1996
        %1998 = vrot.lane.b32.xlu0 %v1984, 111
        %v1999 = vpop.permute.xlu0 %1998
        %2000 = vrot.lane.b32.xlu0 %v1985, 111
        %v2001 = vpop.permute.xlu0 %2000
        %2002 = vrot.lane.b32.xlu0 %v1986, 111
        %v2003 = vpop.permute.xlu0 %2002
        %2004 = vrot.lane.b32.xlu0 %v1987, 111
        %v2005 = vpop.permute.xlu0 %2004
        %vm2006 = vcmask 908288
        %v2007 = vsel %vm2006, %v1995, %v1997
        %v2008 = vsel %vm2006, %v1997, %v1999
        %v2009 = vsel %vm2006, %v2001, %v2003
        %v2010 = vsel %vm2006, %v2003, %v2005
        %2015 = vst [vmem:[#allocation3 + $0x80] sm:$0xff] %v2007
        %2016 = vst [vmem:[#allocation3 + $0x88] sm:$0xff] %v2008
        %2017 = vst [vmem:[#allocation3 + $0x90] sm:$0xff] %v2009
        %2018 = vst [vmem:[#allocation3 + $0x98] sm:$0xff] %v2010
        %v2019 = vld [vmem:[#allocation2] sm:$0xff]
        %v2020 = vld [vmem:[#allocation2 + $0x8] sm:$0xff]
        %v2021 = vld [vmem:[#allocation2 + $0x10] sm:$0xff]
        %v2022 = vld [vmem:[#allocation2 + $0x18] sm:$0xff]
        %v2023 = vld [vmem:[#allocation2 + $0x20] sm:$0xff]
        %v2024 = vld [vmem:[#allocation2 + $0x28] sm:$0xff]
        %2025 = vrot.lane.b32.xlu0 %v805, 18
        %v2026 = vpop.permute.xlu0 %2025
        %2027 = vrot.lane.b32.xlu0 %v806, 18
        %v2028 = vpop.permute.xlu0 %2027
        %vm2029 = vcmask 146432
        %v2030 = vsel %vm2029, %v2026, %v2028
        %v2034 = vmul.bf16 %v2019, %v2026
        %v2035 = vmul.bf16 %v2020, %v2030
        %v2036 = vmul.bf16 %v2021, %v2028
        %v2037 = vmul.bf16 %v2022, %v2026
        %v2038 = vmul.bf16 %v2023, %v2030
        %v2039 = vmul.bf16 %v2024, %v2028
        %2046 = vrot.lane.b32.xlu0 %v2034, 110
        %v2047 = vpop.permute.xlu0 %2046
        %2048 = vrot.lane.b32.xlu0 %v2035, 110
        %v2049 = vpop.permute.xlu0 %2048
        %2050 = vrot.lane.b32.xlu0 %v2036, 110
        %v2051 = vpop.permute.xlu0 %2050
        %2052 = vrot.lane.b32.xlu0 %v2037, 110
        %v2053 = vpop.permute.xlu0 %2052
        %2054 = vrot.lane.b32.xlu0 %v2038, 110
        %v2055 = vpop.permute.xlu0 %2054
        %2056 = vrot.lane.b32.xlu0 %v2039, 110
        %v2057 = vpop.permute.xlu0 %2056
        %vm2058 = vcmask 900096
        %v2059 = vsel %vm2058, %v2047, %v2049
        %v2060 = vsel %vm2058, %v2049, %v2051
        %v2061 = vsel %vm2058, %v2053, %v2055
        %v2062 = vsel %vm2058, %v2055, %v2057
        %2067 = vst [vmem:[#allocation3 + $0xa0] sm:$0xff] %v2059
        %2068 = vst [vmem:[#allocation3 + $0xa8] sm:$0xff] %v2060
        %2069 = vst [vmem:[#allocation3 + $0xb0] sm:$0xff] %v2061
        %2070 = vst [vmem:[#allocation3 + $0xb8] sm:$0xff] %v2062
        %v2071 = vld [vmem:[#allocation2] sm:$0xff]
        %v2072 = vld [vmem:[#allocation2 + $0x8] sm:$0xff]
        %v2073 = vld [vmem:[#allocation2 + $0x10] sm:$0xff]
        %v2074 = vld [vmem:[#allocation2 + $0x18] sm:$0xff]
        %v2075 = vld [vmem:[#allocation2 + $0x20] sm:$0xff]
        %v2076 = vld [vmem:[#allocation2 + $0x28] sm:$0xff]
        %2077 = vrot.lane.b32.xlu0 %v799, 32
        %v2078 = vpop.permute.xlu0 %2077
        %2079 = vrot.lane.b32.xlu0 %v800, 32
        %v2080 = vpop.permute.xlu0 %2079
        %vm2081 = vcmask 261120
        %v2082 = vsel %vm2081, %v2078, %v2080
        %v2086 = vmul.bf16 %v2071, %v2078
        %v2087 = vmul.bf16 %v2072, %v2082
        %v2088 = vmul.bf16 %v2073, %v2080
        %v2089 = vmul.bf16 %v2074, %v2078
        %v2090 = vmul.bf16 %v2075, %v2082
        %v2091 = vmul.bf16 %v2076, %v2080
        %2098 = vrot.lane.b32.xlu0 %v2086, 96
        %v2099 = vpop.permute.xlu0 %2098
        %2100 = vrot.lane.b32.xlu0 %v2087, 96
        %v2101 = vpop.permute.xlu0 %2100
        %2102 = vrot.lane.b32.xlu0 %v2088, 96
        %v2103 = vpop.permute.xlu0 %2102
        %2104 = vrot.lane.b32.xlu0 %v2089, 96
        %v2105 = vpop.permute.xlu0 %2104
        %2106 = vrot.lane.b32.xlu0 %v2090, 96
        %v2107 = vpop.permute.xlu0 %2106
        %2108 = vrot.lane.b32.xlu0 %v2091, 96
        %v2109 = vpop.permute.xlu0 %2108
        %vm2110 = vcmask 785408
        %v2111 = vsel %vm2110, %v2099, %v2101
        %v2112 = vsel %vm2110, %v2101, %v2103
        %v2113 = vsel %vm2110, %v2105, %v2107
        %v2114 = vsel %vm2110, %v2107, %v2109
        %2119 = vst [vmem:[#allocation3 + $0xc0] sm:$0xff] %v2111
        %2120 = vst [vmem:[#allocation3 + $0xc8] sm:$0xff] %v2112
        %2121 = vst [vmem:[#allocation3 + $0xd0] sm:$0xff] %v2113
        %2122 = vst [vmem:[#allocation3 + $0xd8] sm:$0xff] %v2114
        %v2123 = vld [vmem:[#allocation2] sm:$0xff]
        %v2124 = vld [vmem:[#allocation2 + $0x8] sm:$0xff]
        %v2125 = vld [vmem:[#allocation2 + $0x10] sm:$0xff]
        %v2126 = vld [vmem:[#allocation2 + $0x18] sm:$0xff]
        %v2127 = vld [vmem:[#allocation2 + $0x20] sm:$0xff]
        %v2128 = vld [vmem:[#allocation2 + $0x28] sm:$0xff]
        %2135 = vrot.lane.b32.xlu0 %v2123, 95
        %v2136 = vpop.permute.xlu0 %2135
        %2137 = vrot.lane.b32.xlu0 %v2124, 95
        %v2138 = vpop.permute.xlu0 %2137
        %2139 = vrot.lane.b32.xlu0 %v2125, 95
        %v2140 = vpop.permute.xlu0 %2139
        %2141 = vrot.lane.b32.xlu0 %v2126, 95
        %v2142 = vpop.permute.xlu0 %2141
        %2143 = vrot.lane.b32.xlu0 %v2127, 95
        %v2144 = vpop.permute.xlu0 %2143
        %2145 = vrot.lane.b32.xlu0 %v2128, 95
        %v2146 = vpop.permute.xlu0 %2145
        %vm2147 = vcmask 777216
        %v2148 = vsel %vm2147, %v2136, %v2138
        %v2149 = vsel %vm2147, %v2138, %v2140
        %v2150 = vsel %vm2147, %v2142, %v2144
        %v2151 = vsel %vm2147, %v2144, %v2146
        %2156 = vst [vmem:[#allocation3 + $0xe0] sm:$0xff] %v2148
        %2157 = vst [vmem:[#allocation3 + $0xe8] sm:$0xff] %v2149
        %2158 = vst [vmem:[#allocation3 + $0xf0] sm:$0xff] %v2150
        %2159 = vst [vmem:[#allocation3 + $0xf8] sm:$0xff] %v2151
        %v2160 = vld [vmem:[#allocation2] sm:$0xff]
        %v2161 = vld [vmem:[#allocation2 + $0x8] sm:$0xff]
        %v2162 = vld [vmem:[#allocation2 + $0x10] sm:$0xff]
        %v2163 = vld [vmem:[#allocation2 + $0x18] sm:$0xff]
        %v2164 = vld [vmem:[#allocation2 + $0x20] sm:$0xff]
        %v2165 = vld [vmem:[#allocation2 + $0x28] sm:$0xff]
        %2166 = vrot.lane.b32.xlu0 %v805, 34
        %v2167 = vpop.permute.xlu0 %2166
        %2168 = vrot.lane.b32.xlu0 %v806, 34
        %v2169 = vpop.permute.xlu0 %2168
        %vm2170 = vcmask 277504
        %v2171 = vsel %vm2170, %v2167, %v2169
        %v2175 = vmul.bf16 %v2160, %v2167
        %v2176 = vmul.bf16 %v2161, %v2171
        %v2177 = vmul.bf16 %v2162, %v2169
        %v2178 = vmul.bf16 %v2163, %v2167
        %v2179 = vmul.bf16 %v2164, %v2171
        %v2180 = vmul.bf16 %v2165, %v2169
        %2187 = vrot.lane.b32.xlu0 %v2175, 94
        %v2188 = vpop.permute.xlu0 %2187
        %2189 = vrot.lane.b32.xlu0 %v2176, 94
        %v2190 = vpop.permute.xlu0 %2189
        %2191 = vrot.lane.b32.xlu0 %v2177, 94
        %v2192 = vpop.permute.xlu0 %2191
        %2193 = vrot.lane.b32.xlu0 %v2178, 94
        %v2194 = vpop.permute.xlu0 %2193
        %2195 = vrot.lane.b32.xlu0 %v2179, 94
        %v2196 = vpop.permute.xlu0 %2195
        %2197 = vrot.lane.b32.xlu0 %v2180, 94
        %v2198 = vpop.permute.xlu0 %2197
        %vm2199 = vcmask 769024
        %v2200 = vsel %vm2199, %v2188, %v2190
        %v2201 = vsel %vm2199, %v2190, %v2192
        %v2202 = vsel %vm2199, %v2194, %v2196
        %v2203 = vsel %vm2199, %v2196, %v2198
        %2208 = vst [vmem:[#allocation3 + $0x100] sm:$0xff] %v2200
        %2209 = vst [vmem:[#allocation3 + $0x108] sm:$0xff] %v2201
        %2210 = vst [vmem:[#allocation3 + $0x110] sm:$0xff] %v2202
        %2211 = vst [vmem:[#allocation3 + $0x118] sm:$0xff] %v2203
        %v2212 = vld [vmem:[#allocation14] sm:$0xff]
        %v2213 = vld [vmem:[#allocation14 + $0x8] sm:$0xf]
        %v2214 = vld [vmem:[#allocation14 + $0xc] sm:$0xff]
        %v2215 = vld [vmem:[#allocation14 + $0x14] sm:$0xf]
        %v2216 = vld [vmem:[#allocation14 + $0x18] sm:$0xff]
        %v2217 = vld [vmem:[#allocation14 + $0x20] sm:$0xf]
        %v2218 = vld [vmem:[#allocation14 + $0x24] sm:$0xff]
        %v2219 = vld [vmem:[#allocation14 + $0x2c] sm:$0xf]
        %v2220 = vld [vmem:[#allocation3] sm:$0xff]
        %v2221 = vld [vmem:[#allocation3 + $0x8] sm:$0xff]
        %v2222 = vld [vmem:[#allocation3 + $0x10] sm:$0xff]
        %v2223 = vld [vmem:[#allocation3 + $0x18] sm:$0xff]
        %v2224 = vld [vmem:[#allocation3 + $0x20] sm:$0xff]
        %v2225 = vld [vmem:[#allocation3 + $0x28] sm:$0xff]
        %v2226 = vld [vmem:[#allocation3 + $0x30] sm:$0xff]
        %v2227 = vld [vmem:[#allocation3 + $0x38] sm:$0xff]
        %v2228 = vld [vmem:[#allocation3 + $0x40] sm:$0xff]
        %v2229 = vld [vmem:[#allocation3 + $0x48] sm:$0xff]
        %v2230 = vld [vmem:[#allocation3 + $0x50] sm:$0xff]
        %v2231 = vld [vmem:[#allocation3 + $0x58] sm:$0xff]
        %v2232 = vld [vmem:[#allocation3 + $0x60] sm:$0xff]
        %v2233 = vld [vmem:[#allocation3 + $0x68] sm:$0xff]
        %v2234 = vld [vmem:[#allocation3 + $0x70] sm:$0xff]
        %v2235 = vld [vmem:[#allocation3 + $0x78] sm:$0xff]
        %v2236 = vld [vmem:[#allocation3 + $0x80] sm:$0xff]
        %v2237 = vld [vmem:[#allocation3 + $0x88] sm:$0xff]
        %v2238 = vld [vmem:[#allocation3 + $0x90] sm:$0xff]
        %v2239 = vld [vmem:[#allocation3 + $0x98] sm:$0xff]
        %v2240 = vld [vmem:[#allocation3 + $0xa0] sm:$0xff]
        %v2241 = vld [vmem:[#allocation3 + $0xa8] sm:$0xff]
        %v2242 = vld [vmem:[#allocation3 + $0xb0] sm:$0xff]
        %v2243 = vld [vmem:[#allocation3 + $0xb8] sm:$0xff]
        %v2244 = vld [vmem:[#allocation3 + $0xc0] sm:$0xff]
        %v2245 = vld [vmem:[#allocation3 + $0xc8] sm:$0xff]
        %v2246 = vld [vmem:[#allocation3 + $0xd0] sm:$0xff]
        %v2247 = vld [vmem:[#allocation3 + $0xd8] sm:$0xff]
        %v2248 = vld [vmem:[#allocation3 + $0xe0] sm:$0xff]
        %v2249 = vld [vmem:[#allocation3 + $0xe8] sm:$0xff]
        %v2250 = vld [vmem:[#allocation3 + $0xf0] sm:$0xff]
        %v2251 = vld [vmem:[#allocation3 + $0xf8] sm:$0xff]
        %v2252 = vld [vmem:[#allocation3 + $0x100] sm:$0xff]
        %v2253 = vld [vmem:[#allocation3 + $0x108] sm:$0xff]
        %v2254 = vld [vmem:[#allocation3 + $0x110] sm:$0xff]
        %v2255 = vld [vmem:[#allocation3 + $0x118] sm:$0xff]
        %2257 = vset.pattern.permute.xlu0 0
        %2258 = vperm.xlu0 %2257, %v1781
        %v2259 = vpop.permute.xlu0 %2258
        %2262 = vset.pattern.permute.xlu0 0
        %2263 = vperm.xlu0 %2262, %v1782
        %v2264 = vpop.permute.xlu0 %2263
        %2267 = vset.pattern.permute.xlu0 0
        %2268 = vperm.xlu0 %2267, %v1783
        %v2269 = vpop.permute.xlu0 %2268
        %2272 = vset.pattern.permute.xlu0 0
        %2273 = vperm.xlu0 %2272, %v1784
        %v2274 = vpop.permute.xlu0 %2273
        %v2284 = vunpack.c.l.b16 %v2212
        %v2285 = vunpack.c.h.b16 %v2212
        %v2286 = vunpack.c.l.b16 %v2213
        %v2287 = vunpack.c.l.b16 %v2214
        %v2288 = vunpack.c.h.b16 %v2214
        %v2289 = vunpack.c.l.b16 %v2215
        %v2290 = vunpack.c.l.b16 %v2216
        %v2291 = vunpack.c.h.b16 %v2216
        %v2292 = vunpack.c.l.b16 %v2217
        %v2293 = vunpack.c.l.b16 %v2218
        %v2294 = vunpack.c.h.b16 %v2218
        %v2295 = vunpack.c.l.b16 %v2219
        %v2296 = vpack.c.b16 %v2287, %v2284
        %v2297 = vpack.c.b16 %v2288, %v2285
        %v2298 = vpack.c.b16 %v2289, %v2286
        %v2299 = vpack.c.b16 %v2293, %v2290
        %v2300 = vpack.c.b16 %v2294, %v2291
        %v2301 = vpack.c.b16 %v2295, %v2292
        %v2307 = vsel %vm1199, %v2298, 0
        %v2310 = vsel %vm1199, %v2301, 0
        %2312 = vmatprep.subr.bf16.mxu0 %v2221
        %2313 = vmatpush1.bf16.msra.mxu0 %v2220
        %2314 = vmatprep.subr.bf16.mxu0 %v2223
        %2315 = vmatpush1.bf16.msra.mxu0 %v2222
        %2316 = vmatprep.subr.bf16.mxu0 %v2225
        %2317 = vmatpush1.bf16.msra.mxu0 %v2224
        %2318 = vmatprep.subr.bf16.mxu0 %v2227
        %2319 = vmatpush1.bf16.msra.mxu0 %v2226
        %2320 = vmatprep.subr.bf16.mxu0 %v2229
        %2321 = vmatpush1.bf16.msra.mxu0 %v2228
        %2322 = vmatprep.subr.bf16.mxu0 %v2231
        %2323 = vmatpush1.bf16.msra.mxu0 %v2230
        %2324 = vmatprep.subr.bf16.mxu0 %v2233
        %2325 = vmatpush1.bf16.msra.mxu0 %v2232
        %2326 = vmatprep.subr.bf16.mxu0 %v2235
        %2327 = vmatpush1.bf16.msra.mxu0 %v2234
        %2328 = vmatprep.subr.bf16.mxu0 %v2237
        %2329 = vmatpush1.bf16.msra.mxu0 %v2236
        %2330 = vmatprep.subr.bf16.mxu0 %v2239
        %2331 = vmatpush1.bf16.msra.mxu0 %v2238
        %2332 = vmatprep.subr.bf16.mxu0 %v2241
        %2333 = vmatpush1.bf16.msra.mxu0 %v2240
        %2334 = vmatprep.subr.bf16.mxu0 %v2243
        %2335 = vmatpush1.bf16.msra.mxu0 %v2242
        %2336 = vmatprep.subr.bf16.mxu0 %v2245
        %2337 = vmatpush1.bf16.msra.mxu0 %v2244
        %2338 = vmatprep.subr.bf16.mxu0 %v2247
        %2339 = vmatpush1.bf16.msra.mxu0 %v2246
        %2340 = vmatprep.subr.bf16.mxu0 %v2249
        %2341 = vmatpush1.bf16.msra.mxu0 %v2248
        %2342 = vmatprep.subr.bf16.mxu0 %v2251
        %2343 = vmatpush1.bf16.msra.mxu0 %v2250
        %2344 = vmatprep.mubr.bf16.mxu0 %v2297
        %2345 = vmatmul.mubr.bf16.gmra.mrb[0].mxu0 %v2296
        %v2346 = vpop.f32.mrb[0].mxu0
        %v2347 = vadd.f32 %v2259, %v2346
        %v2348 = vpop.f32.mrb[0].mxu0
        %v2349 = vadd.f32 %v2259, %v2348
        %v2350 = vpop.f32.mrb[0].mxu0
        %v2351 = vadd.f32 %v2264, %v2350
        %v2352 = vpop.f32.mrb[0].mxu0
        %v2353 = vadd.f32 %v2264, %v2352
        %2354 = vmatprep.mubr.bf16.mxu0 %v2300
        %2355 = vmatmul.mubr.bf16.gmra.mrb[0].mxu0 %v2299
        %v2356 = vpop.f32.mrb[0].mxu0
        %v2357 = vadd.f32 %v2269, %v2356
        %v2358 = vpop.f32.mrb[0].mxu0
        %v2359 = vadd.f32 %v2269, %v2358
        %v2360 = vpop.f32.mrb[0].mxu0
        %v2361 = vadd.f32 %v2274, %v2360
        %v2362 = vpop.f32.mrb[0].mxu0
        %v2363 = vadd.f32 %v2274, %v2362
        %2364 = vdwg.mxu0
        %2365 = vmatprep.subr.bf16.mxu0 %v2253
        %2366 = vmatpush1.bf16.msra.mxu0 %v2252
        %2367 = vmatprep.subr.bf16.mxu0 %v2255
        %2368 = vmatpush1.bf16.msra.mxu0 %v2254
        %2369 = vmatprep.subr.bf16.mxu0 0
        %2370 = vmatpush1.bf16.msra.mxu0 0
        %2371 = vmatprep.subr.bf16.mxu0 0
        %2372 = vmatpush1.bf16.msra.mxu0 0
        %2373 = vmatprep.subr.bf16.mxu0 0
        %2374 = vmatpush1.bf16.msra.mxu0 0
        %2375 = vmatprep.subr.bf16.mxu0 0
        %2376 = vmatpush1.bf16.msra.mxu0 0
        %2377 = vmatprep.subr.bf16.mxu0 0
        %2378 = vmatpush1.bf16.msra.mxu0 0
        %2379 = vmatprep.subr.bf16.mxu0 0
        %2380 = vmatpush1.bf16.msra.mxu0 0
        %2381 = vmatprep.subr.bf16.mxu0 0
        %2382 = vmatpush1.bf16.msra.mxu0 0
        %2383 = vmatprep.subr.bf16.mxu0 0
        %2384 = vmatpush1.bf16.msra.mxu0 0
        %2385 = vmatprep.subr.bf16.mxu0 0
        %2386 = vmatpush1.bf16.msra.mxu0 0
        %2387 = vmatprep.subr.bf16.mxu0 0
        %2388 = vmatpush1.bf16.msra.mxu0 0
        %2389 = vmatprep.subr.bf16.mxu0 0
        %2390 = vmatpush1.bf16.msra.mxu0 0
        %2391 = vmatprep.subr.bf16.mxu0 0
        %2392 = vmatpush1.bf16.msra.mxu0 0
        %2393 = vmatprep.subr.bf16.mxu0 0
        %2394 = vmatpush1.bf16.msra.mxu0 0
        %2395 = vmatprep.subr.bf16.mxu0 0
        %2396 = vmatpush1.bf16.msra.mxu0 0
        %2397 = vmatprep.mubr.bf16.mxu0 0
        %2398 = vmatmul.mubr.bf16.gmra.mrb[0].mxu0 %v2307
        %v2399 = vpop.f32.mrb[0].mxu0
        %v2400 = vadd.f32 %v2347, %v2399
        %v2401 = vpop.f32.mrb[0].mxu0
        %v2402 = vadd.f32 %v2349, %v2401
        %v2403 = vpop.f32.mrb[0].mxu0
        %v2404 = vadd.f32 %v2351, %v2403
        %v2405 = vpop.f32.mrb[0].mxu0
        %v2406 = vadd.f32 %v2353, %v2405
        %2407 = vmatprep.mubr.bf16.mxu0 0
        %2408 = vmatmul.mubr.bf16.gmra.mrb[0].mxu0 %v2310
        %v2409 = vpop.f32.mrb[0].mxu0
        %v2410 = vadd.f32 %v2357, %v2409
        %v2411 = vpop.f32.mrb[0].mxu0
        %v2412 = vadd.f32 %v2359, %v2411
        %v2413 = vpop.f32.mrb[0].mxu0
        %v2414 = vadd.f32 %v2361, %v2413
        %v2415 = vpop.f32.mrb[0].mxu0
        %v2416 = vadd.f32 %v2363, %v2415
        %2417 = vdwg.mxu0
        %v2418 = vmul.f32 %v2400, 0.5
        %v2419 = vmul.f32 %v2402, 0.5
        %v2420 = vmul.f32 %v2404, 0.5
        %v2421 = vmul.f32 %v2406, 0.5
        %v2422 = vmul.f32 %v2410, 0.5
        %v2423 = vmul.f32 %v2412, 0.5
        %v2424 = vmul.f32 %v2414, 0.5
        %v2425 = vmul.f32 %v2416, 0.5
        %v2426 = vmul.f32 %v2400, 0.044715
        %v2427 = vmul.f32 %v2402, 0.044715
        %v2428 = vmul.f32 %v2404, 0.044715
        %v2429 = vmul.f32 %v2406, 0.044715
        %v2430 = vmul.f32 %v2410, 0.044715
        %v2431 = vmul.f32 %v2412, 0.044715
        %v2432 = vmul.f32 %v2414, 0.044715
        %v2433 = vmul.f32 %v2416, 0.044715
        %v2434 = vmul.f32 %v2426, %v2400
        %v2435 = vmul.f32 %v2427, %v2402
        %v2436 = vmul.f32 %v2428, %v2404
        %v2437 = vmul.f32 %v2429, %v2406
        %v2438 = vmul.f32 %v2430, %v2410
        %v2439 = vmul.f32 %v2431, %v2412
        %v2440 = vmul.f32 %v2432, %v2414
        %v2441 = vmul.f32 %v2433, %v2416
        %v2442 = vmul.f32 %v2434, %v2400
        %v2443 = vmul.f32 %v2435, %v2402
        %v2444 = vmul.f32 %v2436, %v2404
        %v2445 = vmul.f32 %v2437, %v2406
        %v2446 = vmul.f32 %v2438, %v2410
        %v2447 = vmul.f32 %v2439, %v2412
        %v2448 = vmul.f32 %v2440, %v2414
        %v2449 = vmul.f32 %v2441, %v2416
        %v2450 = vadd.f32 %v2400, %v2442
        %v2451 = vadd.f32 %v2402, %v2443
        %v2452 = vadd.f32 %v2404, %v2444
        %v2453 = vadd.f32 %v2406, %v2445
        %v2454 = vadd.f32 %v2410, %v2446
        %v2455 = vadd.f32 %v2412, %v2447
        %v2456 = vadd.f32 %v2414, %v2448
        %v2457 = vadd.f32 %v2416, %v2449
        %v2458 = vmul.f32 %v2450, 0.7978846
        %v2459 = vmul.f32 %v2451, 0.7978846
        %v2460 = vmul.f32 %v2452, 0.7978846
        %v2461 = vmul.f32 %v2453, 0.7978846
        %v2462 = vmul.f32 %v2454, 0.7978846
        %v2463 = vmul.f32 %v2455, 0.7978846
        %v2464 = vmul.f32 %v2456, 0.7978846
        %v2465 = vmul.f32 %v2457, 0.7978846
        %v2466 = vtanh.pop %v2458
        %v2467 = vtanh.pop %v2459
        %v2468 = vtanh.pop %v2460
        %v2469 = vtanh.pop %v2461
        %v2470 = vtanh.pop %v2462
        %v2471 = vtanh.pop %v2463
        %v2472 = vtanh.pop %v2464
        %v2473 = vtanh.pop %v2465
        %v2474 = vadd.f32 %v2466, 1.0
        %v2475 = vadd.f32 %v2467, 1.0
        %v2476 = vadd.f32 %v2468, 1.0
        %v2477 = vadd.f32 %v2469, 1.0
        %v2478 = vadd.f32 %v2470, 1.0
        %v2479 = vadd.f32 %v2471, 1.0
        %v2480 = vadd.f32 %v2472, 1.0
        %v2481 = vadd.f32 %v2473, 1.0
        %v2482 = vmul.f32 %v2418, %v2474
        %v2483 = vmul.f32 %v2419, %v2475
        %v2484 = vmul.f32 %v2420, %v2476
        %v2485 = vmul.f32 %v2421, %v2477
        %v2486 = vmul.f32 %v2422, %v2478
        %v2487 = vmul.f32 %v2423, %v2479
        %v2488 = vmul.f32 %v2424, %v2480
        %v2489 = vmul.f32 %v2425, %v2481
        %v2490 = vld [vmem:[%s11] sm:$0xf]
        %v2491 = vld [vmem:[%s11 + $0x4] sm:$0xf]
        %v2492 = vld [vmem:[%s11 + $0x8] sm:$0xf]
        %v2493 = vld [vmem:[%s11 + $0xc] sm:$0xf]
        %v2494 = vld [vmem:[%s11 + $0x10] sm:$0xf]
        %v2495 = vld [vmem:[%s11 + $0x14] sm:$0xf]
        %v2496 = vld [vmem:[%s11 + $0x18] sm:$0xf]
        %v2497 = vld [vmem:[%s11 + $0x1c] sm:$0xf]
        %v2498 = vpack.c.bf16 %v2484, %v2482
        %v2499 = vpack.c.bf16 %v2485, %v2483
        %v2500 = vpack.c.bf16 %v2488, %v2486
        %v2501 = vpack.c.bf16 %v2489, %v2487
        %v2502 = vld [vmem:[%s12] sm:$0xff]
        %v2503 = vld [vmem:[%s12 + $0x8] sm:$0xff]
        %v2504 = vld [vmem:[%s12 + $0x10] sm:$0xff]
        %v2505 = vld [vmem:[%s12 + $0x18] sm:$0xff]
        %v2506 = vld [vmem:[%s12 + $0x20] sm:$0xff]
        %v2507 = vld [vmem:[%s12 + $0x28] sm:$0xff]
        %v2508 = vld [vmem:[%s12 + $0x30] sm:$0xff]
        %v2509 = vld [vmem:[%s12 + $0x38] sm:$0xff]
        %2511 = vset.pattern.permute.xlu0 0
        %2512 = vperm.xlu0 %2511, %v2502
        %v2513 = vpop.permute.xlu0 %2512
        %2516 = vset.pattern.permute.xlu0 0
        %2517 = vperm.xlu0 %2516, %v2503
        %v2518 = vpop.permute.xlu0 %2517
        %2521 = vset.pattern.permute.xlu0 0
        %2522 = vperm.xlu0 %2521, %v2504
        %v2523 = vpop.permute.xlu0 %2522
        %2526 = vset.pattern.permute.xlu0 0
        %2527 = vperm.xlu0 %2526, %v2505
        %v2528 = vpop.permute.xlu0 %2527
        %2531 = vset.pattern.permute.xlu0 0
        %2532 = vperm.xlu0 %2531, %v2506
        %v2533 = vpop.permute.xlu0 %2532
        %2536 = vset.pattern.permute.xlu0 0
        %2537 = vperm.xlu0 %2536, %v2507
        %v2538 = vpop.permute.xlu0 %2537
        %2541 = vset.pattern.permute.xlu0 0
        %2542 = vperm.xlu0 %2541, %v2508
        %v2543 = vpop.permute.xlu0 %2542
        %2546 = vset.pattern.permute.xlu0 0
        %2547 = vperm.xlu0 %2546, %v2509
        %v2548 = vpop.permute.xlu0 %2547
        %v2558 = vunpack.c.l.b16 %v2490
        %v2559 = vunpack.c.l.b16 %v2491
        %v2560 = vunpack.c.l.b16 %v2492
        %v2561 = vunpack.c.l.b16 %v2493
        %v2562 = vunpack.c.l.b16 %v2494
        %v2563 = vunpack.c.l.b16 %v2495
        %v2564 = vunpack.c.l.b16 %v2496
        %v2565 = vunpack.c.l.b16 %v2497
        %v2566 = vpack.c.b16 %v2559, %v2558
        %v2567 = vpack.c.b16 %v2561, %v2560
        %v2568 = vpack.c.b16 %v2563, %v2562
        %v2569 = vpack.c.b16 %v2565, %v2564
        %v2571 = vsel %vm1199, %v2566, 0
        %v2574 = vsel %vm1199, %v2567, 0
        %v2577 = vsel %vm1199, %v2568, 0
        %v2580 = vsel %vm1199, %v2569, 0
        %2582 = vmatprep.subr.bf16.mxu0 %v2499
        %2583 = vmatpush1.bf16.msra.mxu0 %v2498
        %2584 = vmatprep.subr.bf16.mxu0 %v2501
        %2585 = vmatpush1.bf16.msra.mxu0 %v2500
        %2586 = vmatprep.subr.bf16.mxu0 0
        %2587 = vmatpush1.bf16.msra.mxu0 0
        %2588 = vmatprep.subr.bf16.mxu0 0
        %2589 = vmatpush1.bf16.msra.mxu0 0
        %2590 = vmatprep.subr.bf16.mxu0 0
        %2591 = vmatpush1.bf16.msra.mxu0 0
        %2592 = vmatprep.subr.bf16.mxu0 0
        %2593 = vmatpush1.bf16.msra.mxu0 0
        %2594 = vmatprep.subr.bf16.mxu0 0
        %2595 = vmatpush1.bf16.msra.mxu0 0
        %2596 = vmatprep.subr.bf16.mxu0 0
        %2597 = vmatpush1.bf16.msra.mxu0 0
        %2598 = vmatprep.subr.bf16.mxu0 0
        %2599 = vmatpush1.bf16.msra.mxu0 0
        %2600 = vmatprep.subr.bf16.mxu0 0
        %2601 = vmatpush1.bf16.msra.mxu0 0
        %2602 = vmatprep.subr.bf16.mxu0 0
        %2603 = vmatpush1.bf16.msra.mxu0 0
        %2604 = vmatprep.subr.bf16.mxu0 0
        %2605 = vmatpush1.bf16.msra.mxu0 0
        %2606 = vmatprep.subr.bf16.mxu0 0
        %2607 = vmatpush1.bf16.msra.mxu0 0
        %2608 = vmatprep.subr.bf16.mxu0 0
        %2609 = vmatpush1.bf16.msra.mxu0 0
        %2610 = vmatprep.subr.bf16.mxu0 0
        %2611 = vmatpush1.bf16.msra.mxu0 0
        %2612 = vmatprep.subr.bf16.mxu0 0
        %2613 = vmatpush1.bf16.msra.mxu0 0
        %2614 = vmatprep.mubr.bf16.mxu0 0
        %2615 = vmatmul.mubr.bf16.gmra.mrb[0].mxu0 %v2571
        %v2616 = vpop.f32.mrb[0].mxu0
        %v2617 = vadd.f32 %v2513, %v2616
        %v2618 = vpop.f32.mrb[0].mxu0
        %v2619 = vadd.f32 %v2513, %v2618
        %v2620 = vpop.f32.mrb[0].mxu0
        %v2621 = vadd.f32 %v2518, %v2620
        %v2622 = vpop.f32.mrb[0].mxu0
        %v2623 = vadd.f32 %v2518, %v2622
        %2624 = vmatprep.mubr.bf16.mxu0 0
        %2625 = vmatmul.mubr.bf16.gmra.mrb[0].mxu0 %v2574
        %v2626 = vpop.f32.mrb[0].mxu0
        %v2627 = vadd.f32 %v2523, %v2626
        %v2628 = vpop.f32.mrb[0].mxu0
        %v2629 = vadd.f32 %v2523, %v2628
        %v2630 = vpop.f32.mrb[0].mxu0
        %v2631 = vadd.f32 %v2528, %v2630
        %v2632 = vpop.f32.mrb[0].mxu0
        %v2633 = vadd.f32 %v2528, %v2632
        %2634 = vmatprep.mubr.bf16.mxu0 0
        %2635 = vmatmul.mubr.bf16.gmra.mrb[0].mxu0 %v2577
        %v2636 = vpop.f32.mrb[0].mxu0
        %v2637 = vadd.f32 %v2533, %v2636
        %v2638 = vpop.f32.mrb[0].mxu0
        %v2639 = vadd.f32 %v2533, %v2638
        %v2640 = vpop.f32.mrb[0].mxu0
        %v2641 = vadd.f32 %v2538, %v2640
        %v2642 = vpop.f32.mrb[0].mxu0
        %v2643 = vadd.f32 %v2538, %v2642
        %2644 = vmatprep.mubr.bf16.mxu0 0
        %2645 = vmatmul.mubr.bf16.gmra.mrb[0].mxu0 %v2580
        %v2646 = vpop.f32.mrb[0].mxu0
        %v2647 = vadd.f32 %v2543, %v2646
        %v2648 = vpop.f32.mrb[0].mxu0
        %v2649 = vadd.f32 %v2543, %v2648
        %v2650 = vpop.f32.mrb[0].mxu0
        %v2651 = vadd.f32 %v2548, %v2650
        %v2652 = vpop.f32.mrb[0].mxu0
        %v2653 = vadd.f32 %v2548, %v2652
        %2654 = vdwg.mxu0
        %v2655 = vld [vmem:[%s13] sm:$0xff]
        %v2656 = vld [vmem:[%s13 + $0x8] sm:$0xff]
        %v2657 = vld [vmem:[%s13 + $0x10] sm:$0xff]
        %v2658 = vld [vmem:[%s13 + $0x18] sm:$0xff]
        %v2659 = vld [vmem:[%s13 + $0x20] sm:$0xff]
        %v2660 = vld [vmem:[%s13 + $0x28] sm:$0xff]
        %v2661 = vld [vmem:[%s13 + $0x30] sm:$0xff]
        %v2662 = vld [vmem:[%s13 + $0x38] sm:$0xff]
        %v2663 = vld [vmem:[%s14] sm:$0xff]
        %v2664 = vld [vmem:[%s14 + $0x8] sm:$0xff]
        %v2665 = vld [vmem:[%s14 + $0x10] sm:$0xff]
        %v2666 = vld [vmem:[%s14 + $0x18] sm:$0xff]
        %v2667 = vld [vmem:[%s14 + $0x20] sm:$0xff]
        %v2668 = vld [vmem:[%s14 + $0x28] sm:$0xff]
        %v2669 = vld [vmem:[%s14 + $0x30] sm:$0xff]
        %v2670 = vld [vmem:[%s14 + $0x38] sm:$0xff]
        %v2671 = vld [vmem:[%s16] sm:$0xff]
        %v2672 = vld [vmem:[%s16 + $0x8] sm:$0xff]
        %v2673 = vld [vmem:[%s16 + $0x10] sm:$0xff]
        %v2674 = vld [vmem:[%s16 + $0x18] sm:$0xff]
        %v2675 = vld [vmem:[%s16 + $0x20] sm:$0xff]
        %v2676 = vld [vmem:[%s16 + $0x28] sm:$0xff]
        %v2677 = vld [vmem:[%s16 + $0x30] sm:$0xff]
        %v2678 = vld [vmem:[%s16 + $0x38] sm:$0xff]
        %v2679 = vld [vmem:[#allocation16] sm:$0xff]
        %v2680 = vld [vmem:[#allocation16 + $0x8] sm:$0xff]
        %vm2681 = vcmask 523264
        %v2683 = vsel %vm2681, %v2679, 0
        %v2686 = vsel %vm2681, %v2680, 0
        %2688 = vmatprep.subr.mxu0 %v2619
        %2689 = vmatpush1.msra.mxu0 %v2617
        %2690 = vmatprep.subr.mxu0 %v2623
        %2691 = vmatpush1.msra.mxu0 %v2621
        %2692 = vmatprep.subr.mxu0 %v2629
        %2693 = vmatpush1.msra.mxu0 %v2627
        %2694 = vmatprep.subr.mxu0 %v2633
        %2695 = vmatpush1.msra.mxu0 %v2631
        %2696 = vmatprep.subr.mxu0 %v2639
        %2697 = vmatpush1.msra.mxu0 %v2637
        %2698 = vmatprep.subr.mxu0 %v2643
        %2699 = vmatpush1.msra.mxu0 %v2641
        %2700 = vmatprep.subr.mxu0 %v2649
        %2701 = vmatpush1.msra.mxu0 %v2647
        %2702 = vmatprep.subr.mxu0 %v2653
        %2703 = vmatpush1.msra.mxu0 %v2651
        %2704 = vmatprep.subr.mxu0 0.0
        %2705 = vmatpush1.msra.mxu0 0.0
        %2706 = vmatprep.subr.mxu0 0.0
        %2707 = vmatpush1.msra.mxu0 0.0
        %2708 = vmatprep.subr.mxu0 0.0
        %2709 = vmatpush1.msra.mxu0 0.0
        %2710 = vmatprep.subr.mxu0 0.0
        %2711 = vmatpush1.msra.mxu0 0.0
        %2712 = vmatprep.subr.mxu0 0.0
        %2713 = vmatpush1.msra.mxu0 0.0
        %2714 = vmatprep.subr.mxu0 0.0
        %2715 = vmatpush1.msra.mxu0 0.0
        %2716 = vmatprep.subr.mxu0 0.0
        %2717 = vmatpush1.msra.mxu0 0.0
        %2718 = vmatprep.subr.mxu0 0.0
        %2719 = vmatpush1.msra.mxu0 0.0
        %2720 = vmatprep.subr.mxu0 0.0
        %2721 = vmatpush1.msra.mxu0 0.0
        %2722 = vmatprep.subr.mxu0 0.0
        %2723 = vmatpush1.msra.mxu0 0.0
        %2724 = vmatprep.subr.mxu0 0.0
        %2725 = vmatpush1.msra.mxu0 0.0
        %2726 = vmatprep.subr.mxu0 0.0
        %2727 = vmatpush1.msra.mxu0 0.0
        %2728 = vmatprep.subr.mxu0 0.0
        %2729 = vmatpush1.msra.mxu0 0.0
        %2730 = vmatprep.subr.mxu0 0.0
        %2731 = vmatpush1.msra.mxu0 0.0
        %2732 = vmatprep.subr.mxu0 0.0
        %2733 = vmatpush1.msra.mxu0 0.0
        %2734 = vmatprep.subr.mxu0 0.0
        %2735 = vmatpush1.msra.mxu0 0.0
        %2736 = vmatprep.subr.mxu0 0.0
        %2737 = vmatpush1.msra.mxu0 0.0
        %2738 = vmatprep.subr.mxu0 0.0
        %2739 = vmatpush1.msra.mxu0 0.0
        %2740 = vmatprep.subr.mxu0 0.0
        %2741 = vmatpush1.msra.mxu0 0.0
        %2742 = vmatprep.subr.mxu0 0.0
        %2743 = vmatpush1.msra.mxu0 0.0
        %2744 = vmatprep.subr.mxu0 0.0
        %2745 = vmatpush1.msra.mxu0 0.0
        %2746 = vmatprep.subr.mxu0 0.0
        %2747 = vmatpush1.msra.mxu0 0.0
        %2748 = vmatprep.subr.mxu0 0.0
        %2749 = vmatpush1.msra.mxu0 0.0
        %2750 = vmatprep.subr.mxu0 0.0
        %2751 = vmatpush1.msra.mxu0 0.0
        %2752 = vmatprep.mubr.f32.mxu0 0.0
        %2753 = vmatmul.mubr.f32.gmra.mrb[0].mxu0 %v2683
        %v2754 = vpop.f32.mrb[0].mxu0
        %v2755 = vadd.f32 0.0, %v2754
        %v2756 = vpop.f32.mrb[0].mxu0
        %v2757 = vadd.f32 0.0, %v2756
        %2758 = vmatprep.mubr.f32.mxu0 0.0
        %2759 = vmatmul.mubr.f32.gmra.mrb[0].mxu0 %v2686
        %v2760 = vpop.f32.mrb[0].mxu0
        %v2761 = vadd.f32 0.0, %v2760
        %v2762 = vpop.f32.mrb[0].mxu0
        %v2763 = vadd.f32 0.0, %v2762
        %2764 = vdwg.mxu0
        %vm2765 = vcmask 130048
        %v2767 = vsel %vm2765, %v2671, 0
        %v2770 = vsel %vm2765, %v2672, 0
        %v2773 = vsel %vm2765, %v2673, 0
        %v2776 = vsel %vm2765, %v2674, 0
        %v2779 = vsel %vm2765, %v2675, 0
        %v2782 = vsel %vm2765, %v2676, 0
        %v2785 = vsel %vm2765, %v2677, 0
        %v2788 = vsel %vm2765, %v2678, 0
        %2790 = vmatprep.subr.mxu0 %v2757
        %2791 = vmatpush1.msra.mxu0 %v2755
        %2792 = vmatprep.subr.mxu0 %v2763
        %2793 = vmatpush1.msra.mxu0 %v2761
        %2794 = vmatprep.subr.mxu0 0.0
        %2795 = vmatpush1.msra.mxu0 0.0
        %2796 = vmatprep.subr.mxu0 0.0
        %2797 = vmatpush1.msra.mxu0 0.0
        %2798 = vmatprep.subr.mxu0 0.0
        %2799 = vmatpush1.msra.mxu0 0.0
        %2800 = vmatprep.subr.mxu0 0.0
        %2801 = vmatpush1.msra.mxu0 0.0
        %2802 = vmatprep.subr.mxu0 0.0
        %2803 = vmatpush1.msra.mxu0 0.0
        %2804 = vmatprep.subr.mxu0 0.0
        %2805 = vmatpush1.msra.mxu0 0.0
        %2806 = vmatprep.subr.mxu0 0.0
        %2807 = vmatpush1.msra.mxu0 0.0
        %2808 = vmatprep.subr.mxu0 0.0
        %2809 = vmatpush1.msra.mxu0 0.0
        %2810 = vmatprep.subr.mxu0 0.0
        %2811 = vmatpush1.msra.mxu0 0.0
        %2812 = vmatprep.subr.mxu0 0.0
        %2813 = vmatpush1.msra.mxu0 0.0
        %2814 = vmatprep.subr.mxu0 0.0
        %2815 = vmatpush1.msra.mxu0 0.0
        %2816 = vmatprep.subr.mxu0 0.0
        %2817 = vmatpush1.msra.mxu0 0.0
        %2818 = vmatprep.subr.mxu0 0.0
        %2819 = vmatpush1.msra.mxu0 0.0
        %2820 = vmatprep.subr.mxu0 0.0
        %2821 = vmatpush1.msra.mxu0 0.0
        %2822 = vmatprep.subr.mxu0 0.0
        %2823 = vmatpush1.msra.mxu0 0.0
        %2824 = vmatprep.subr.mxu0 0.0
        %2825 = vmatpush1.msra.mxu0 0.0
        %2826 = vmatprep.subr.mxu0 0.0
        %2827 = vmatpush1.msra.mxu0 0.0
        %2828 = vmatprep.subr.mxu0 0.0
        %2829 = vmatpush1.msra.mxu0 0.0
        %2830 = vmatprep.subr.mxu0 0.0
        %2831 = vmatpush1.msra.mxu0 0.0
        %2832 = vmatprep.subr.mxu0 0.0
        %2833 = vmatpush1.msra.mxu0 0.0
        %2834 = vmatprep.subr.mxu0 0.0
        %2835 = vmatpush1.msra.mxu0 0.0
        %2836 = vmatprep.subr.mxu0 0.0
        %2837 = vmatpush1.msra.mxu0 0.0
        %2838 = vmatprep.subr.mxu0 0.0
        %2839 = vmatpush1.msra.mxu0 0.0
        %2840 = vmatprep.subr.mxu0 0.0
        %2841 = vmatpush1.msra.mxu0 0.0
        %2842 = vmatprep.subr.mxu0 0.0
        %2843 = vmatpush1.msra.mxu0 0.0
        %2844 = vmatprep.subr.mxu0 0.0
        %2845 = vmatpush1.msra.mxu0 0.0
        %2846 = vmatprep.subr.mxu0 0.0
        %2847 = vmatpush1.msra.mxu0 0.0
        %2848 = vmatprep.subr.mxu0 0.0
        %2849 = vmatpush1.msra.mxu0 0.0
        %2850 = vmatprep.subr.mxu0 0.0
        %2851 = vmatpush1.msra.mxu0 0.0
        %2852 = vmatprep.subr.mxu0 0.0
        %2853 = vmatpush1.msra.mxu0 0.0
        %2854 = vmatprep.mubr.f32.mxu0 0.0
        %2855 = vmatmul.mubr.f32.gmra.mrb[0].mxu0 %v2767
        %v2856 = vpop.f32.mrb[0].mxu0
        %v2857 = vadd.f32 0.0, %v2856
        %v2858 = vpop.f32.mrb[0].mxu0
        %v2859 = vadd.f32 0.0, %v2858
        %2860 = vmatprep.mubr.f32.mxu0 0.0
        %2861 = vmatmul.mubr.f32.gmra.mrb[0].mxu0 %v2770
        %v2862 = vpop.f32.mrb[0].mxu0
        %v2863 = vadd.f32 0.0, %v2862
        %v2864 = vpop.f32.mrb[0].mxu0
        %v2865 = vadd.f32 0.0, %v2864
        %2866 = vmatprep.mubr.f32.mxu0 0.0
        %2867 = vmatmul.mubr.f32.gmra.mrb[0].mxu0 %v2773
        %v2868 = vpop.f32.mrb[0].mxu0
        %v2869 = vadd.f32 0.0, %v2868
        %v2870 = vpop.f32.mrb[0].mxu0
        %v2871 = vadd.f32 0.0, %v2870
        %2872 = vmatprep.mubr.f32.mxu0 0.0
        %2873 = vmatmul.mubr.f32.gmra.mrb[0].mxu0 %v2776
        %v2874 = vpop.f32.mrb[0].mxu0
        %v2875 = vadd.f32 0.0, %v2874
        %v2876 = vpop.f32.mrb[0].mxu0
        %v2877 = vadd.f32 0.0, %v2876
        %2878 = vmatprep.mubr.f32.mxu0 0.0
        %2879 = vmatmul.mubr.f32.gmra.mrb[0].mxu0 %v2779
        %v2880 = vpop.f32.mrb[0].mxu0
        %v2881 = vadd.f32 0.0, %v2880
        %v2882 = vpop.f32.mrb[0].mxu0
        %v2883 = vadd.f32 0.0, %v2882
        %2884 = vmatprep.mubr.f32.mxu0 0.0
        %2885 = vmatmul.mubr.f32.gmra.mrb[0].mxu0 %v2782
        %v2886 = vpop.f32.mrb[0].mxu0
        %v2887 = vadd.f32 0.0, %v2886
        %v2888 = vpop.f32.mrb[0].mxu0
        %v2889 = vadd.f32 0.0, %v2888
        %2890 = vmatprep.mubr.f32.mxu0 0.0
        %2891 = vmatmul.mubr.f32.gmra.mrb[0].mxu0 %v2785
        %v2892 = vpop.f32.mrb[0].mxu0
        %v2893 = vadd.f32 0.0, %v2892
        %v2894 = vpop.f32.mrb[0].mxu0
        %v2895 = vadd.f32 0.0, %v2894
        %2896 = vmatprep.mubr.f32.mxu0 0.0
        %2897 = vmatmul.mubr.f32.gmra.mrb[0].mxu0 %v2788
        %v2898 = vpop.f32.mrb[0].mxu0
        %v2899 = vadd.f32 0.0, %v2898
        %v2900 = vpop.f32.mrb[0].mxu0
        %v2901 = vadd.f32 0.0, %v2900
        %2902 = vdwg.mxu0
        %v2903 = vsub.f32 %v2617, %v2857
        %v2904 = vsub.f32 %v2619, %v2859
        %v2905 = vsub.f32 %v2621, %v2863
        %v2906 = vsub.f32 %v2623, %v2865
        %v2907 = vsub.f32 %v2627, %v2869
        %v2908 = vsub.f32 %v2629, %v2871
        %v2909 = vsub.f32 %v2631, %v2875
        %v2910 = vsub.f32 %v2633, %v2877
        %v2911 = vsub.f32 %v2637, %v2881
        %v2912 = vsub.f32 %v2639, %v2883
        %v2913 = vsub.f32 %v2641, %v2887
        %v2914 = vsub.f32 %v2643, %v2889
        %v2915 = vsub.f32 %v2647, %v2893
        %v2916 = vsub.f32 %v2649, %v2895
        %v2917 = vsub.f32 %v2651, %v2899
        %v2918 = vsub.f32 %v2653, %v2901
        %v2919 = vmul.f32 %v2903, %v2903
        %v2920 = vmul.f32 %v2904, %v2904
        %v2921 = vmul.f32 %v2905, %v2905
        %v2922 = vmul.f32 %v2906, %v2906
        %v2923 = vmul.f32 %v2907, %v2907
        %v2924 = vmul.f32 %v2908, %v2908
        %v2925 = vmul.f32 %v2909, %v2909
        %v2926 = vmul.f32 %v2910, %v2910
        %v2927 = vmul.f32 %v2911, %v2911
        %v2928 = vmul.f32 %v2912, %v2912
        %v2929 = vmul.f32 %v2913, %v2913
        %v2930 = vmul.f32 %v2914, %v2914
        %v2931 = vmul.f32 %v2915, %v2915
        %v2932 = vmul.f32 %v2916, %v2916
        %v2933 = vmul.f32 %v2917, %v2917
        %v2934 = vmul.f32 %v2918, %v2918
        %2935 = vmatprep.subr.mxu0 %v2920
        %2936 = vmatpush1.msra.mxu0 %v2919
        %2937 = vmatprep.subr.mxu0 %v2922
        %2938 = vmatpush1.msra.mxu0 %v2921
        %2939 = vmatprep.subr.mxu0 %v2924
        %2940 = vmatpush1.msra.mxu0 %v2923
        %2941 = vmatprep.subr.mxu0 %v2926
        %2942 = vmatpush1.msra.mxu0 %v2925
        %2943 = vmatprep.subr.mxu0 %v2928
        %2944 = vmatpush1.msra.mxu0 %v2927
        %2945 = vmatprep.subr.mxu0 %v2930
        %2946 = vmatpush1.msra.mxu0 %v2929
        %2947 = vmatprep.subr.mxu0 %v2932
        %2948 = vmatpush1.msra.mxu0 %v2931
        %2949 = vmatprep.subr.mxu0 %v2934
        %2950 = vmatpush1.msra.mxu0 %v2933
        %2951 = vmatprep.subr.mxu0 0.0
        %2952 = vmatpush1.msra.mxu0 0.0
        %2953 = vmatprep.subr.mxu0 0.0
        %2954 = vmatpush1.msra.mxu0 0.0
        %2955 = vmatprep.subr.mxu0 0.0
        %2956 = vmatpush1.msra.mxu0 0.0
        %2957 = vmatprep.subr.mxu0 0.0
        %2958 = vmatpush1.msra.mxu0 0.0
        %2959 = vmatprep.subr.mxu0 0.0
        %2960 = vmatpush1.msra.mxu0 0.0
        %2961 = vmatprep.subr.mxu0 0.0
        %2962 = vmatpush1.msra.mxu0 0.0
        %2963 = vmatprep.subr.mxu0 0.0
        %2964 = vmatpush1.msra.mxu0 0.0
        %2965 = vmatprep.subr.mxu0 0.0
        %2966 = vmatpush1.msra.mxu0 0.0
        %2967 = vmatprep.subr.mxu0 0.0
        %2968 = vmatpush1.msra.mxu0 0.0
        %2969 = vmatprep.subr.mxu0 0.0
        %2970 = vmatpush1.msra.mxu0 0.0
        %2971 = vmatprep.subr.mxu0 0.0
        %2972 = vmatpush1.msra.mxu0 0.0
        %2973 = vmatprep.subr.mxu0 0.0
        %2974 = vmatpush1.msra.mxu0 0.0
        %2975 = vmatprep.subr.mxu0 0.0
        %2976 = vmatpush1.msra.mxu0 0.0
        %2977 = vmatprep.subr.mxu0 0.0
        %2978 = vmatpush1.msra.mxu0 0.0
        %2979 = vmatprep.subr.mxu0 0.0
        %2980 = vmatpush1.msra.mxu0 0.0
        %2981 = vmatprep.subr.mxu0 0.0
        %2982 = vmatpush1.msra.mxu0 0.0
        %2983 = vmatprep.subr.mxu0 0.0
        %2984 = vmatpush1.msra.mxu0 0.0
        %2985 = vmatprep.subr.mxu0 0.0
        %2986 = vmatpush1.msra.mxu0 0.0
        %2987 = vmatprep.subr.mxu0 0.0
        %2988 = vmatpush1.msra.mxu0 0.0
        %2989 = vmatprep.subr.mxu0 0.0
        %2990 = vmatpush1.msra.mxu0 0.0
        %2991 = vmatprep.subr.mxu0 0.0
        %2992 = vmatpush1.msra.mxu0 0.0
        %2993 = vmatprep.subr.mxu0 0.0
        %2994 = vmatpush1.msra.mxu0 0.0
        %2995 = vmatprep.subr.mxu0 0.0
        %2996 = vmatpush1.msra.mxu0 0.0
        %2997 = vmatprep.subr.mxu0 0.0
        %2998 = vmatpush1.msra.mxu0 0.0
        %2999 = vmatprep.mubr.f32.mxu0 0.0
        %3000 = vmatmul.mubr.f32.gmra.mrb[0].mxu0 %v2683
        %v3001 = vpop.f32.mrb[0].mxu0
        %v3002 = vadd.f32 0.0, %v3001
        %v3003 = vpop.f32.mrb[0].mxu0
        %v3004 = vadd.f32 0.0, %v3003
        %3005 = vmatprep.mubr.f32.mxu0 0.0
        %3006 = vmatmul.mubr.f32.gmra.mrb[0].mxu0 %v2686
        %v3007 = vpop.f32.mrb[0].mxu0
        %v3008 = vadd.f32 0.0, %v3007
        %v3009 = vpop.f32.mrb[0].mxu0
        %v3010 = vadd.f32 0.0, %v3009
        %3011 = vdwg.mxu0
        %3012 = vmatprep.subr.mxu0 %v3004
        %3013 = vmatpush1.msra.mxu0 %v3002
        %3014 = vmatprep.subr.mxu0 %v3010
        %3015 = vmatpush1.msra.mxu0 %v3008
        %3016 = vmatprep.subr.mxu0 0.0
        %3017 = vmatpush1.msra.mxu0 0.0
        %3018 = vmatprep.subr.mxu0 0.0
        %3019 = vmatpush1.msra.mxu0 0.0
        %3020 = vmatprep.subr.mxu0 0.0
        %3021 = vmatpush1.msra.mxu0 0.0
        %3022 = vmatprep.subr.mxu0 0.0
        %3023 = vmatpush1.msra.mxu0 0.0
        %3024 = vmatprep.subr.mxu0 0.0
        %3025 = vmatpush1.msra.mxu0 0.0
        %3026 = vmatprep.subr.mxu0 0.0
        %3027 = vmatpush1.msra.mxu0 0.0
        %3028 = vmatprep.subr.mxu0 0.0
        %3029 = vmatpush1.msra.mxu0 0.0
        %3030 = vmatprep.subr.mxu0 0.0
        %3031 = vmatpush1.msra.mxu0 0.0
        %3032 = vmatprep.subr.mxu0 0.0
        %3033 = vmatpush1.msra.mxu0 0.0
        %3034 = vmatprep.subr.mxu0 0.0
        %3035 = vmatpush1.msra.mxu0 0.0
        %3036 = vmatprep.subr.mxu0 0.0
        %3037 = vmatpush1.msra.mxu0 0.0
        %3038 = vmatprep.subr.mxu0 0.0
        %3039 = vmatpush1.msra.mxu0 0.0
        %3040 = vmatprep.subr.mxu0 0.0
        %3041 = vmatpush1.msra.mxu0 0.0
        %3042 = vmatprep.subr.mxu0 0.0
        %3043 = vmatpush1.msra.mxu0 0.0
        %3044 = vmatprep.subr.mxu0 0.0
        %3045 = vmatpush1.msra.mxu0 0.0
        %3046 = vmatprep.subr.mxu0 0.0
        %3047 = vmatpush1.msra.mxu0 0.0
        %3048 = vmatprep.subr.mxu0 0.0
        %3049 = vmatpush1.msra.mxu0 0.0
        %3050 = vmatprep.subr.mxu0 0.0
        %3051 = vmatpush1.msra.mxu0 0.0
        %3052 = vmatprep.subr.mxu0 0.0
        %3053 = vmatpush1.msra.mxu0 0.0
        %3054 = vmatprep.subr.mxu0 0.0
        %3055 = vmatpush1.msra.mxu0 0.0
        %3056 = vmatprep.subr.mxu0 0.0
        %3057 = vmatpush1.msra.mxu0 0.0
        %3058 = vmatprep.subr.mxu0 0.0
        %3059 = vmatpush1.msra.mxu0 0.0
        %3060 = vmatprep.subr.mxu0 0.0
        %3061 = vmatpush1.msra.mxu0 0.0
        %3062 = vmatprep.subr.mxu0 0.0
        %3063 = vmatpush1.msra.mxu0 0.0
        %3064 = vmatprep.subr.mxu0 0.0
        %3065 = vmatpush1.msra.mxu0 0.0
        %3066 = vmatprep.subr.mxu0 0.0
        %3067 = vmatpush1.msra.mxu0 0.0
        %3068 = vmatprep.subr.mxu0 0.0
        %3069 = vmatpush1.msra.mxu0 0.0
        %3070 = vmatprep.subr.mxu0 0.0
        %3071 = vmatpush1.msra.mxu0 0.0
        %3072 = vmatprep.subr.mxu0 0.0
        %3073 = vmatpush1.msra.mxu0 0.0
        %3074 = vmatprep.subr.mxu0 0.0
        %3075 = vmatpush1.msra.mxu0 0.0
        %3076 = vmatprep.mubr.f32.mxu0 0.0
        %3077 = vmatmul.mubr.f32.gmra.mrb[0].mxu0 %v2767
        %v3078 = vpop.f32.mrb[0].mxu0
        %v3079 = vadd.f32 1e-06, %v3078
        %v3080 = vpop.f32.mrb[0].mxu0
        %v3081 = vadd.f32 1e-06, %v3080
        %3082 = vmatprep.mubr.f32.mxu0 0.0
        %3083 = vmatmul.mubr.f32.gmra.mrb[0].mxu0 %v2770
        %v3084 = vpop.f32.mrb[0].mxu0
        %v3085 = vadd.f32 1e-06, %v3084
        %v3086 = vpop.f32.mrb[0].mxu0
        %v3087 = vadd.f32 1e-06, %v3086
        %3088 = vmatprep.mubr.f32.mxu0 0.0
        %3089 = vmatmul.mubr.f32.gmra.mrb[0].mxu0 %v2773
        %v3090 = vpop.f32.mrb[0].mxu0
        %v3091 = vadd.f32 1e-06, %v3090
        %v3092 = vpop.f32.mrb[0].mxu0
        %v3093 = vadd.f32 1e-06, %v3092
        %3094 = vmatprep.mubr.f32.mxu0 0.0
        %3095 = vmatmul.mubr.f32.gmra.mrb[0].mxu0 %v2776
        %v3096 = vpop.f32.mrb[0].mxu0
        %v3097 = vadd.f32 1e-06, %v3096
        %v3098 = vpop.f32.mrb[0].mxu0
        %v3099 = vadd.f32 1e-06, %v3098
        %3100 = vmatprep.mubr.f32.mxu0 0.0
        %3101 = vmatmul.mubr.f32.gmra.mrb[0].mxu0 %v2779
        %v3102 = vpop.f32.mrb[0].mxu0
        %v3103 = vadd.f32 1e-06, %v3102
        %v3104 = vpop.f32.mrb[0].mxu0
        %v3105 = vadd.f32 1e-06, %v3104
        %3106 = vmatprep.mubr.f32.mxu0 0.0
        %3107 = vmatmul.mubr.f32.gmra.mrb[0].mxu0 %v2782
        %v3108 = vpop.f32.mrb[0].mxu0
        %v3109 = vadd.f32 1e-06, %v3108
        %v3110 = vpop.f32.mrb[0].mxu0
        %v3111 = vadd.f32 1e-06, %v3110
        %3112 = vmatprep.mubr.f32.mxu0 0.0
        %3113 = vmatmul.mubr.f32.gmra.mrb[0].mxu0 %v2785
        %v3114 = vpop.f32.mrb[0].mxu0
        %v3115 = vadd.f32 1e-06, %v3114
        %v3116 = vpop.f32.mrb[0].mxu0
        %v3117 = vadd.f32 1e-06, %v3116
        %3118 = vmatprep.mubr.f32.mxu0 0.0
        %3119 = vmatmul.mubr.f32.gmra.mrb[0].mxu0 %v2788
        %v3120 = vpop.f32.mrb[0].mxu0
        %v3121 = vadd.f32 1e-06, %v3120
        %v3122 = vpop.f32.mrb[0].mxu0
        %v3123 = vadd.f32 1e-06, %v3122
        %3124 = vdwg.mxu0
        %v3125 = vrsqrt.pop %v3079
        %v3126 = vrsqrt.pop %v3081
        %v3127 = vrsqrt.pop %v3085
        %v3128 = vrsqrt.pop %v3087
        %v3129 = vrsqrt.pop %v3091
        %v3130 = vrsqrt.pop %v3093
        %v3131 = vrsqrt.pop %v3097
        %v3132 = vrsqrt.pop %v3099
        %v3133 = vrsqrt.pop %v3103
        %v3134 = vrsqrt.pop %v3105
        %v3135 = vrsqrt.pop %v3109
        %v3136 = vrsqrt.pop %v3111
        %v3137 = vrsqrt.pop %v3115
        %v3138 = vrsqrt.pop %v3117
        %v3139 = vrsqrt.pop %v3121
        %v3140 = vrsqrt.pop %v3123
        %v3141 = vmul.f32 %v2903, %v3125
        %v3142 = vmul.f32 %v2904, %v3126
        %v3143 = vmul.f32 %v2905, %v3127
        %v3144 = vmul.f32 %v2906, %v3128
        %v3145 = vmul.f32 %v2907, %v3129
        %v3146 = vmul.f32 %v2908, %v3130
        %v3147 = vmul.f32 %v2909, %v3131
        %v3148 = vmul.f32 %v2910, %v3132
        %v3149 = vmul.f32 %v2911, %v3133
        %v3150 = vmul.f32 %v2912, %v3134
        %v3151 = vmul.f32 %v2913, %v3135
        %v3152 = vmul.f32 %v2914, %v3136
        %v3153 = vmul.f32 %v2915, %v3137
        %v3154 = vmul.f32 %v2916, %v3138
        %v3155 = vmul.f32 %v2917, %v3139
        %v3156 = vmul.f32 %v2918, %v3140
        %3158 = vset.pattern.permute.xlu0 0
        %3159 = vperm.xlu0 %3158, %v2655
        %v3160 = vpop.permute.xlu0 %3159
        %3163 = vset.pattern.permute.xlu0 0
        %3164 = vperm.xlu0 %3163, %v2656
        %v3165 = vpop.permute.xlu0 %3164
        %3168 = vset.pattern.permute.xlu0 0
        %3169 = vperm.xlu0 %3168, %v2657
        %v3170 = vpop.permute.xlu0 %3169
        %3173 = vset.pattern.permute.xlu0 0
        %3174 = vperm.xlu0 %3173, %v2658
        %v3175 = vpop.permute.xlu0 %3174
        %3178 = vset.pattern.permute.xlu0 0
        %3179 = vperm.xlu0 %3178, %v2659
        %v3180 = vpop.permute.xlu0 %3179
        %3183 = vset.pattern.permute.xlu0 0
        %3184 = vperm.xlu0 %3183, %v2660
        %v3185 = vpop.permute.xlu0 %3184
        %3188 = vset.pattern.permute.xlu0 0
        %3189 = vperm.xlu0 %3188, %v2661
        %v3190 = vpop.permute.xlu0 %3189
        %3193 = vset.pattern.permute.xlu0 0
        %3194 = vperm.xlu0 %3193, %v2662
        %v3195 = vpop.permute.xlu0 %3194
        %v3197 = vmul.f32 %v3160, %v3141
        %v3198 = vmul.f32 %v3160, %v3142
        %v3199 = vmul.f32 %v3165, %v3143
        %v3200 = vmul.f32 %v3165, %v3144
        %v3201 = vmul.f32 %v3170, %v3145
        %v3202 = vmul.f32 %v3170, %v3146
        %v3203 = vmul.f32 %v3175, %v3147
        %v3204 = vmul.f32 %v3175, %v3148
        %v3205 = vmul.f32 %v3180, %v3149
        %v3206 = vmul.f32 %v3180, %v3150
        %v3207 = vmul.f32 %v3185, %v3151
        %v3208 = vmul.f32 %v3185, %v3152
        %v3209 = vmul.f32 %v3190, %v3153
        %v3210 = vmul.f32 %v3190, %v3154
        %v3211 = vmul.f32 %v3195, %v3155
        %v3212 = vmul.f32 %v3195, %v3156
        %3214 = vset.pattern.permute.xlu0 0
        %3215 = vperm.xlu0 %3214, %v2663
        %v3216 = vpop.permute.xlu0 %3215
        %3219 = vset.pattern.permute.xlu0 0
        %3220 = vperm.xlu0 %3219, %v2664
        %v3221 = vpop.permute.xlu0 %3220
        %3224 = vset.pattern.permute.xlu0 0
        %3225 = vperm.xlu0 %3224, %v2665
        %v3226 = vpop.permute.xlu0 %3225
        %3229 = vset.pattern.permute.xlu0 0
        %3230 = vperm.xlu0 %3229, %v2666
        %v3231 = vpop.permute.xlu0 %3230
        %3234 = vset.pattern.permute.xlu0 0
        %3235 = vperm.xlu0 %3234, %v2667
        %v3236 = vpop.permute.xlu0 %3235
        %3239 = vset.pattern.permute.xlu0 0
        %3240 = vperm.xlu0 %3239, %v2668
        %v3241 = vpop.permute.xlu0 %3240
        %3244 = vset.pattern.permute.xlu0 0
        %3245 = vperm.xlu0 %3244, %v2669
        %v3246 = vpop.permute.xlu0 %3245
        %3249 = vset.pattern.permute.xlu0 0
        %3250 = vperm.xlu0 %3249, %v2670
        %v3251 = vpop.permute.xlu0 %3250
        %v3253 = vadd.f32 %v3197, %v3216
        %v3254 = vadd.f32 %v3198, %v3216
        %v3255 = vadd.f32 %v3199, %v3221
        %v3256 = vadd.f32 %v3200, %v3221
        %v3257 = vadd.f32 %v3201, %v3226
        %v3258 = vadd.f32 %v3202, %v3226
        %v3259 = vadd.f32 %v3203, %v3231
        %v3260 = vadd.f32 %v3204, %v3231
        %v3261 = vadd.f32 %v3205, %v3236
        %v3262 = vadd.f32 %v3206, %v3236
        %v3263 = vadd.f32 %v3207, %v3241
        %v3264 = vadd.f32 %v3208, %v3241
        %v3265 = vadd.f32 %v3209, %v3246
        %v3266 = vadd.f32 %v3210, %v3246
        %v3267 = vadd.f32 %v3211, %v3251
        %v3268 = vadd.f32 %v3212, %v3251
        %v3269 = vmul.f32 %v3253, 0.5
        %v3270 = vmul.f32 %v3254, 0.5
        %v3271 = vmul.f32 %v3255, 0.5
        %v3272 = vmul.f32 %v3256, 0.5
        %v3273 = vmul.f32 %v3257, 0.5
        %v3274 = vmul.f32 %v3258, 0.5
        %v3275 = vmul.f32 %v3259, 0.5
        %v3276 = vmul.f32 %v3260, 0.5
        %v3277 = vmul.f32 %v3261, 0.5
        %v3278 = vmul.f32 %v3262, 0.5
        %v3279 = vmul.f32 %v3263, 0.5
        %v3280 = vmul.f32 %v3264, 0.5
        %v3281 = vmul.f32 %v3265, 0.5
        %v3282 = vmul.f32 %v3266, 0.5
        %v3283 = vmul.f32 %v3267, 0.5
        %v3284 = vmul.f32 %v3268, 0.5
        %v3285 = vmul.f32 %v3253, 0.044715
        %v3286 = vmul.f32 %v3254, 0.044715
        %v3287 = vmul.f32 %v3255, 0.044715
        %v3288 = vmul.f32 %v3256, 0.044715
        %v3289 = vmul.f32 %v3257, 0.044715
        %v3290 = vmul.f32 %v3258, 0.044715
        %v3291 = vmul.f32 %v3259, 0.044715
        %v3292 = vmul.f32 %v3260, 0.044715
        %v3293 = vmul.f32 %v3261, 0.044715
        %v3294 = vmul.f32 %v3262, 0.044715
        %v3295 = vmul.f32 %v3263, 0.044715
        %v3296 = vmul.f32 %v3264, 0.044715
        %v3297 = vmul.f32 %v3265, 0.044715
        %v3298 = vmul.f32 %v3266, 0.044715
        %v3299 = vmul.f32 %v3267, 0.044715
        %v3300 = vmul.f32 %v3268, 0.044715
        %v3301 = vmul.f32 %v3285, %v3253
        %v3302 = vmul.f32 %v3286, %v3254
        %v3303 = vmul.f32 %v3287, %v3255
        %v3304 = vmul.f32 %v3288, %v3256
        %v3305 = vmul.f32 %v3289, %v3257
        %v3306 = vmul.f32 %v3290, %v3258
        %v3307 = vmul.f32 %v3291, %v3259
        %v3308 = vmul.f32 %v3292, %v3260
        %v3309 = vmul.f32 %v3293, %v3261
        %v3310 = vmul.f32 %v3294, %v3262
        %v3311 = vmul.f32 %v3295, %v3263
        %v3312 = vmul.f32 %v3296, %v3264
        %v3313 = vmul.f32 %v3297, %v3265
        %v3314 = vmul.f32 %v3298, %v3266
        %v3315 = vmul.f32 %v3299, %v3267
        %v3316 = vmul.f32 %v3300, %v3268
        %v3317 = vmul.f32 %v3301, %v3253
        %v3318 = vmul.f32 %v3302, %v3254
        %v3319 = vmul.f32 %v3303, %v3255
        %v3320 = vmul.f32 %v3304, %v3256
        %v3321 = vmul.f32 %v3305, %v3257
        %v3322 = vmul.f32 %v3306, %v3258
        %v3323 = vmul.f32 %v3307, %v3259
        %v3324 = vmul.f32 %v3308, %v3260
        %v3325 = vmul.f32 %v3309, %v3261
        %v3326 = vmul.f32 %v3310, %v3262
        %v3327 = vmul.f32 %v3311, %v3263
        %v3328 = vmul.f32 %v3312, %v3264
        %v3329 = vmul.f32 %v3313, %v3265
        %v3330 = vmul.f32 %v3314, %v3266
        %v3331 = vmul.f32 %v3315, %v3267
        %v3332 = vmul.f32 %v3316, %v3268
        %v3333 = vadd.f32 %v3253, %v3317
        %v3334 = vadd.f32 %v3254, %v3318
        %v3335 = vadd.f32 %v3255, %v3319
        %v3336 = vadd.f32 %v3256, %v3320
        %v3337 = vadd.f32 %v3257, %v3321
        %v3338 = vadd.f32 %v3258, %v3322
        %v3339 = vadd.f32 %v3259, %v3323
        %v3340 = vadd.f32 %v3260, %v3324
        %v3341 = vadd.f32 %v3261, %v3325
        %v3342 = vadd.f32 %v3262, %v3326
        %v3343 = vadd.f32 %v3263, %v3327
        %v3344 = vadd.f32 %v3264, %v3328
        %v3345 = vadd.f32 %v3265, %v3329
        %v3346 = vadd.f32 %v3266, %v3330
        %v3347 = vadd.f32 %v3267, %v3331
        %v3348 = vadd.f32 %v3268, %v3332
        %v3349 = vmul.f32 %v3333, 0.7978846
        %v3350 = vmul.f32 %v3334, 0.7978846
        %v3351 = vmul.f32 %v3335, 0.7978846
        %v3352 = vmul.f32 %v3336, 0.7978846
        %v3353 = vmul.f32 %v3337, 0.7978846
        %v3354 = vmul.f32 %v3338, 0.7978846
        %v3355 = vmul.f32 %v3339, 0.7978846
        %v3356 = vmul.f32 %v3340, 0.7978846
        %v3357 = vmul.f32 %v3341, 0.7978846
        %v3358 = vmul.f32 %v3342, 0.7978846
        %v3359 = vmul.f32 %v3343, 0.7978846
        %v3360 = vmul.f32 %v3344, 0.7978846
        %v3361 = vmul.f32 %v3345, 0.7978846
        %v3362 = vmul.f32 %v3346, 0.7978846
        %v3363 = vmul.f32 %v3347, 0.7978846
        %v3364 = vmul.f32 %v3348, 0.7978846
        %v3365 = vtanh.pop %v3349
        %v3366 = vtanh.pop %v3350
        %v3367 = vtanh.pop %v3351
        %v3368 = vtanh.pop %v3352
        %v3369 = vtanh.pop %v3353
        %v3370 = vtanh.pop %v3354
        %v3371 = vtanh.pop %v3355
        %v3372 = vtanh.pop %v3356
        %v3373 = vtanh.pop %v3357
        %v3374 = vtanh.pop %v3358
        %v3375 = vtanh.pop %v3359
        %v3376 = vtanh.pop %v3360
        %v3377 = vtanh.pop %v3361
        %v3378 = vtanh.pop %v3362
        %v3379 = vtanh.pop %v3363
        %v3380 = vtanh.pop %v3364
        %v3381 = vadd.f32 %v3365, 1.0
        %v3382 = vadd.f32 %v3366, 1.0
        %v3383 = vadd.f32 %v3367, 1.0
        %v3384 = vadd.f32 %v3368, 1.0
        %v3385 = vadd.f32 %v3369, 1.0
        %v3386 = vadd.f32 %v3370, 1.0
        %v3387 = vadd.f32 %v3371, 1.0
        %v3388 = vadd.f32 %v3372, 1.0
        %v3389 = vadd.f32 %v3373, 1.0
        %v3390 = vadd.f32 %v3374, 1.0
        %v3391 = vadd.f32 %v3375, 1.0
        %v3392 = vadd.f32 %v3376, 1.0
        %v3393 = vadd.f32 %v3377, 1.0
        %v3394 = vadd.f32 %v3378, 1.0
        %v3395 = vadd.f32 %v3379, 1.0
        %v3396 = vadd.f32 %v3380, 1.0
        %v3397 = vmul.f32 %v3269, %v3381
        %v3398 = vmul.f32 %v3270, %v3382
        %v3399 = vmul.f32 %v3271, %v3383
        %v3400 = vmul.f32 %v3272, %v3384
        %v3401 = vmul.f32 %v3273, %v3385
        %v3402 = vmul.f32 %v3274, %v3386
        %v3403 = vmul.f32 %v3275, %v3387
        %v3404 = vmul.f32 %v3276, %v3388
        %v3405 = vmul.f32 %v3277, %v3389
        %v3406 = vmul.f32 %v3278, %v3390
        %v3407 = vmul.f32 %v3279, %v3391
        %v3408 = vmul.f32 %v3280, %v3392
        %v3409 = vmul.f32 %v3281, %v3393
        %v3410 = vmul.f32 %v3282, %v3394
        %v3411 = vmul.f32 %v3283, %v3395
        %v3412 = vmul.f32 %v3284, %v3396
        %v3413 = vld [vmem:[%s18] sm:$0xff]
        %v3414 = vld [vmem:[%s18 + $0x8] sm:$0xff]
        %v3415 = vld [vmem:[%s18 + $0x10] sm:$0xff]
        %v3416 = vld [vmem:[%s18 + $0x18] sm:$0xff]
        %v3417 = vld [vmem:[%s18 + $0x20] sm:$0xff]
        %v3418 = vld [vmem:[%s18 + $0x28] sm:$0xff]
        %v3419 = vld [vmem:[%s18 + $0x30] sm:$0xff]
        %v3420 = vld [vmem:[%s18 + $0x38] sm:$0xff]
        %3421 = vst [vmem:[#allocation4] sm:$0xff] 0
        %3422 = vst [vmem:[#allocation4 + $0x8] sm:$0xff] 0
        %3423 = vst.msk [vmem:[#allocation4 + $0x10] sm:$0xff] %vm1787, 0
        %3424 = vst [vmem:[#allocation4 + $0x18] sm:$0xff] 0
        %3425 = vst [vmem:[#allocation4 + $0x20] sm:$0xff] 0
        %3426 = vst.msk [vmem:[#allocation4 + $0x28] sm:$0xff] %vm1787, 0
        %3427 = vst [vmem:[#allocation4 + $0x30] sm:$0xff] 0
        %3428 = vst [vmem:[#allocation4 + $0x38] sm:$0xff] 0
        %3429 = vst.msk [vmem:[#allocation4 + $0x40] sm:$0xff] %vm1787, 0
        %3430 = vst [vmem:[#allocation4 + $0x48] sm:$0xff] 0
        %3431 = vst [vmem:[#allocation4 + $0x50] sm:$0xff] 0
        %3432 = vst.msk [vmem:[#allocation4 + $0x58] sm:$0xff] %vm1787, 0
        %v3433 = vpack.c.bf16 %v3399, %v3397
        %v3434 = vpack.c.bf16 %v3400, %v3398
        %v3435 = vpack.c.bf16 %v3403, %v3401
        %v3436 = vpack.c.bf16 %v3404, %v3402
        %v3437 = vpack.c.bf16 %v3407, %v3405
        %v3438 = vpack.c.bf16 %v3408, %v3406
        %v3439 = vpack.c.bf16 %v3411, %v3409
        %v3440 = vpack.c.bf16 %v3412, %v3410
        %3449 = vrot.lane.b32.xlu0 %v3433, 17
        %v3450 = vpop.permute.xlu0 %3449
        %3451 = vrot.lane.b32.xlu0 %v3434, 17
        %v3452 = vpop.permute.xlu0 %3451
        %3453 = vrot.lane.b32.xlu0 %v3435, 17
        %v3454 = vpop.permute.xlu0 %3453
        %3455 = vrot.lane.b32.xlu0 %v3436, 17
        %v3456 = vpop.permute.xlu0 %3455
        %3457 = vrot.lane.b32.xlu0 %v3437, 17
        %v3458 = vpop.permute.xlu0 %3457
        %3459 = vrot.lane.b32.xlu0 %v3438, 17
        %v3460 = vpop.permute.xlu0 %3459
        %3461 = vrot.lane.b32.xlu0 %v3439, 17
        %v3462 = vpop.permute.xlu0 %3461
        %3463 = vrot.lane.b32.xlu0 %v3440, 17
        %v3464 = vpop.permute.xlu0 %3463
        %v3465 = vsel %vm1808, %v3450, %v3452
        %v3466 = vsel %vm1808, %v3454, %v3456
        %v3467 = vsel %vm1808, %v3458, %v3460
        %v3468 = vsel %vm1808, %v3462, %v3464
        %3481 = vst.msk [vmem:[#allocation4] sm:$0xff] %vm1817, %v3450
        %3482 = vst [vmem:[#allocation4 + $0x8] sm:$0xff] %v3465
        %3483 = vst.msk [vmem:[#allocation4 + $0x10] sm:$0xff] %vm1820, %v3452
        %3484 = vst.msk [vmem:[#allocation4 + $0x18] sm:$0xff] %vm1817, %v3454
        %3485 = vst [vmem:[#allocation4 + $0x20] sm:$0xff] %v3466
        %3486 = vst.msk [vmem:[#allocation4 + $0x28] sm:$0xff] %vm1820, %v3456
        %3487 = vst.msk [vmem:[#allocation4 + $0x30] sm:$0xff] %vm1817, %v3458
        %3488 = vst [vmem:[#allocation4 + $0x38] sm:$0xff] %v3467
        %3489 = vst.msk [vmem:[#allocation4 + $0x40] sm:$0xff] %vm1820, %v3460
        %3490 = vst.msk [vmem:[#allocation4 + $0x48] sm:$0xff] %vm1817, %v3462
        %3491 = vst [vmem:[#allocation4 + $0x50] sm:$0xff] %v3468
        %3492 = vst.msk [vmem:[#allocation4 + $0x58] sm:$0xff] %vm1820, %v3464
        %v3493 = vld [vmem:[#allocation4] sm:$0xff]
        %v3494 = vld [vmem:[#allocation4 + $0x8] sm:$0xff]
        %v3495 = vld [vmem:[#allocation4 + $0x18] sm:$0xff]
        %v3496 = vld [vmem:[#allocation4 + $0x20] sm:$0xff]
        %v3497 = vld [vmem:[#allocation4 + $0x30] sm:$0xff]
        %v3498 = vld [vmem:[#allocation4 + $0x38] sm:$0xff]
        %v3499 = vld [vmem:[#allocation4 + $0x48] sm:$0xff]
        %v3500 = vld [vmem:[#allocation4 + $0x50] sm:$0xff]
        %v3501 = vmul.bf16 %v3493, %v799
        %v3502 = vmul.bf16 %v3494, %v800
        %v3503 = vmul.bf16 %v3495, %v799
        %v3504 = vmul.bf16 %v3496, %v800
        %v3505 = vmul.bf16 %v3497, %v799
        %v3506 = vmul.bf16 %v3498, %v800
        %v3507 = vmul.bf16 %v3499, %v799
        %v3508 = vmul.bf16 %v3500, %v800
        %3509 = vst [vmem:[#allocation5] sm:$0xff] %v3501
        %3510 = vst [vmem:[#allocation5 + $0x8] sm:$0xff] %v3502
        %3511 = vst [vmem:[#allocation5 + $0x10] sm:$0xff] %v3503
        %3512 = vst [vmem:[#allocation5 + $0x18] sm:$0xff] %v3504
        %3513 = vst [vmem:[#allocation5 + $0x20] sm:$0xff] %v3505
        %3514 = vst [vmem:[#allocation5 + $0x28] sm:$0xff] %v3506
        %3515 = vst [vmem:[#allocation5 + $0x30] sm:$0xff] %v3507
        %3516 = vst [vmem:[#allocation5 + $0x38] sm:$0xff] %v3508
        %v3517 = vld [vmem:[#allocation4] sm:$0xff]
        %v3518 = vld [vmem:[#allocation4 + $0x8] sm:$0xff]
        %v3519 = vld [vmem:[#allocation4 + $0x10] sm:$0xff]
        %v3520 = vld [vmem:[#allocation4 + $0x18] sm:$0xff]
        %v3521 = vld [vmem:[#allocation4 + $0x20] sm:$0xff]
        %v3522 = vld [vmem:[#allocation4 + $0x28] sm:$0xff]
        %v3523 = vld [vmem:[#allocation4 + $0x30] sm:$0xff]
        %v3524 = vld [vmem:[#allocation4 + $0x38] sm:$0xff]
        %v3525 = vld [vmem:[#allocation4 + $0x40] sm:$0xff]
        %v3526 = vld [vmem:[#allocation4 + $0x48] sm:$0xff]
        %v3527 = vld [vmem:[#allocation4 + $0x50] sm:$0xff]
        %v3528 = vld [vmem:[#allocation4 + $0x58] sm:$0xff]
        %3541 = vrot.lane.b32.xlu0 %v3517, 127
        %v3542 = vpop.permute.xlu0 %3541
        %3543 = vrot.lane.b32.xlu0 %v3518, 127
        %v3544 = vpop.permute.xlu0 %3543
        %3545 = vrot.lane.b32.xlu0 %v3519, 127
        %v3546 = vpop.permute.xlu0 %3545
        %3547 = vrot.lane.b32.xlu0 %v3520, 127
        %v3548 = vpop.permute.xlu0 %3547
        %3549 = vrot.lane.b32.xlu0 %v3521, 127
        %v3550 = vpop.permute.xlu0 %3549
        %3551 = vrot.lane.b32.xlu0 %v3522, 127
        %v3552 = vpop.permute.xlu0 %3551
        %3553 = vrot.lane.b32.xlu0 %v3523, 127
        %v3554 = vpop.permute.xlu0 %3553
        %3555 = vrot.lane.b32.xlu0 %v3524, 127
        %v3556 = vpop.permute.xlu0 %3555
        %3557 = vrot.lane.b32.xlu0 %v3525, 127
        %v3558 = vpop.permute.xlu0 %3557
        %3559 = vrot.lane.b32.xlu0 %v3526, 127
        %v3560 = vpop.permute.xlu0 %3559
        %3561 = vrot.lane.b32.xlu0 %v3527, 127
        %v3562 = vpop.permute.xlu0 %3561
        %3563 = vrot.lane.b32.xlu0 %v3528, 127
        %v3564 = vpop.permute.xlu0 %3563
        %v3565 = vsel %vm1861, %v3542, %v3544
        %v3566 = vsel %vm1861, %v3544, %v3546
        %v3567 = vsel %vm1861, %v3548, %v3550
        %v3568 = vsel %vm1861, %v3550, %v3552
        %v3569 = vsel %vm1861, %v3554, %v3556
        %v3570 = vsel %vm1861, %v3556, %v3558
        %v3571 = vsel %vm1861, %v3560, %v3562
        %v3572 = vsel %vm1861, %v3562, %v3564
        %3581 = vst [vmem:[#allocation5 + $0x40] sm:$0xff] %v3565
        %3582 = vst [vmem:[#allocation5 + $0x48] sm:$0xff] %v3566
        %3583 = vst [vmem:[#allocation5 + $0x50] sm:$0xff] %v3567
        %3584 = vst [vmem:[#allocation5 + $0x58] sm:$0xff] %v3568
        %3585 = vst [vmem:[#allocation5 + $0x60] sm:$0xff] %v3569
        %3586 = vst [vmem:[#allocation5 + $0x68] sm:$0xff] %v3570
        %3587 = vst [vmem:[#allocation5 + $0x70] sm:$0xff] %v3571
        %3588 = vst [vmem:[#allocation5 + $0x78] sm:$0xff] %v3572
        %v3589 = vld [vmem:[#allocation4] sm:$0xff]
        %v3590 = vld [vmem:[#allocation4 + $0x8] sm:$0xff]
        %v3591 = vld [vmem:[#allocation4 + $0x10] sm:$0xff]
        %v3592 = vld [vmem:[#allocation4 + $0x18] sm:$0xff]
        %v3593 = vld [vmem:[#allocation4 + $0x20] sm:$0xff]
        %v3594 = vld [vmem:[#allocation4 + $0x28] sm:$0xff]
        %v3595 = vld [vmem:[#allocation4 + $0x30] sm:$0xff]
        %v3596 = vld [vmem:[#allocation4 + $0x38] sm:$0xff]
        %v3597 = vld [vmem:[#allocation4 + $0x40] sm:$0xff]
        %v3598 = vld [vmem:[#allocation4 + $0x48] sm:$0xff]
        %v3599 = vld [vmem:[#allocation4 + $0x50] sm:$0xff]
        %v3600 = vld [vmem:[#allocation4 + $0x58] sm:$0xff]
        %v3601 = vmul.bf16 %v3589, %v1883
        %v3602 = vmul.bf16 %v3590, %v1887
        %v3603 = vmul.bf16 %v3591, %v1885
        %v3604 = vmul.bf16 %v3592, %v1883
        %v3605 = vmul.bf16 %v3593, %v1887
        %v3606 = vmul.bf16 %v3594, %v1885
        %v3607 = vmul.bf16 %v3595, %v1883
        %v3608 = vmul.bf16 %v3596, %v1887
        %v3609 = vmul.bf16 %v3597, %v1885
        %v3610 = vmul.bf16 %v3598, %v1883
        %v3611 = vmul.bf16 %v3599, %v1887
        %v3612 = vmul.bf16 %v3600, %v1885
        %3625 = vrot.lane.b32.xlu0 %v3601, 126
        %v3626 = vpop.permute.xlu0 %3625
        %3627 = vrot.lane.b32.xlu0 %v3602, 126
        %v3628 = vpop.permute.xlu0 %3627
        %3629 = vrot.lane.b32.xlu0 %v3603, 126
        %v3630 = vpop.permute.xlu0 %3629
        %3631 = vrot.lane.b32.xlu0 %v3604, 126
        %v3632 = vpop.permute.xlu0 %3631
        %3633 = vrot.lane.b32.xlu0 %v3605, 126
        %v3634 = vpop.permute.xlu0 %3633
        %3635 = vrot.lane.b32.xlu0 %v3606, 126
        %v3636 = vpop.permute.xlu0 %3635
        %3637 = vrot.lane.b32.xlu0 %v3607, 126
        %v3638 = vpop.permute.xlu0 %3637
        %3639 = vrot.lane.b32.xlu0 %v3608, 126
        %v3640 = vpop.permute.xlu0 %3639
        %3641 = vrot.lane.b32.xlu0 %v3609, 126
        %v3642 = vpop.permute.xlu0 %3641
        %3643 = vrot.lane.b32.xlu0 %v3610, 126
        %v3644 = vpop.permute.xlu0 %3643
        %3645 = vrot.lane.b32.xlu0 %v3611, 126
        %v3646 = vpop.permute.xlu0 %3645
        %3647 = vrot.lane.b32.xlu0 %v3612, 126
        %v3648 = vpop.permute.xlu0 %3647
        %v3649 = vsel %vm1915, %v3626, %v3628
        %v3650 = vsel %vm1915, %v3628, %v3630
        %v3651 = vsel %vm1915, %v3632, %v3634
        %v3652 = vsel %vm1915, %v3634, %v3636
        %v3653 = vsel %vm1915, %v3638, %v3640
        %v3654 = vsel %vm1915, %v3640, %v3642
        %v3655 = vsel %vm1915, %v3644, %v3646
        %v3656 = vsel %vm1915, %v3646, %v3648
        %3665 = vst [vmem:[#allocation5 + $0x80] sm:$0xff] %v3649
        %3666 = vst [vmem:[#allocation5 + $0x88] sm:$0xff] %v3650
        %3667 = vst [vmem:[#allocation5 + $0x90] sm:$0xff] %v3651
        %3668 = vst [vmem:[#allocation5 + $0x98] sm:$0xff] %v3652
        %3669 = vst [vmem:[#allocation5 + $0xa0] sm:$0xff] %v3653
        %3670 = vst [vmem:[#allocation5 + $0xa8] sm:$0xff] %v3654
        %3671 = vst [vmem:[#allocation5 + $0xb0] sm:$0xff] %v3655
        %3672 = vst [vmem:[#allocation5 + $0xb8] sm:$0xff] %v3656
        %v3673 = vld [vmem:[#allocation4] sm:$0xff]
        %v3674 = vld [vmem:[#allocation4 + $0x8] sm:$0xff]
        %v3675 = vld [vmem:[#allocation4 + $0x10] sm:$0xff]
        %v3676 = vld [vmem:[#allocation4 + $0x18] sm:$0xff]
        %v3677 = vld [vmem:[#allocation4 + $0x20] sm:$0xff]
        %v3678 = vld [vmem:[#allocation4 + $0x28] sm:$0xff]
        %v3679 = vld [vmem:[#allocation4 + $0x30] sm:$0xff]
        %v3680 = vld [vmem:[#allocation4 + $0x38] sm:$0xff]
        %v3681 = vld [vmem:[#allocation4 + $0x40] sm:$0xff]
        %v3682 = vld [vmem:[#allocation4 + $0x48] sm:$0xff]
        %v3683 = vld [vmem:[#allocation4 + $0x50] sm:$0xff]
        %v3684 = vld [vmem:[#allocation4 + $0x58] sm:$0xff]
        %v3685 = vmul.bf16 %v3673, %v1937
        %v3686 = vmul.bf16 %v3674, %v1941
        %v3687 = vmul.bf16 %v3675, %v1939
        %v3688 = vmul.bf16 %v3676, %v1937
        %v3689 = vmul.bf16 %v3677, %v1941
        %v3690 = vmul.bf16 %v3678, %v1939
        %v3691 = vmul.bf16 %v3679, %v1937
        %v3692 = vmul.bf16 %v3680, %v1941
        %v3693 = vmul.bf16 %v3681, %v1939
        %v3694 = vmul.bf16 %v3682, %v1937
        %v3695 = vmul.bf16 %v3683, %v1941
        %v3696 = vmul.bf16 %v3684, %v1939
        %3709 = vrot.lane.b32.xlu0 %v3685, 112
        %v3710 = vpop.permute.xlu0 %3709
        %3711 = vrot.lane.b32.xlu0 %v3686, 112
        %v3712 = vpop.permute.xlu0 %3711
        %3713 = vrot.lane.b32.xlu0 %v3687, 112
        %v3714 = vpop.permute.xlu0 %3713
        %3715 = vrot.lane.b32.xlu0 %v3688, 112
        %v3716 = vpop.permute.xlu0 %3715
        %3717 = vrot.lane.b32.xlu0 %v3689, 112
        %v3718 = vpop.permute.xlu0 %3717
        %3719 = vrot.lane.b32.xlu0 %v3690, 112
        %v3720 = vpop.permute.xlu0 %3719
        %3721 = vrot.lane.b32.xlu0 %v3691, 112
        %v3722 = vpop.permute.xlu0 %3721
        %3723 = vrot.lane.b32.xlu0 %v3692, 112
        %v3724 = vpop.permute.xlu0 %3723
        %3725 = vrot.lane.b32.xlu0 %v3693, 112
        %v3726 = vpop.permute.xlu0 %3725
        %3727 = vrot.lane.b32.xlu0 %v3694, 112
        %v3728 = vpop.permute.xlu0 %3727
        %3729 = vrot.lane.b32.xlu0 %v3695, 112
        %v3730 = vpop.permute.xlu0 %3729
        %3731 = vrot.lane.b32.xlu0 %v3696, 112
        %v3732 = vpop.permute.xlu0 %3731
        %v3733 = vsel %vm1969, %v3710, %v3712
        %v3734 = vsel %vm1969, %v3712, %v3714
        %v3735 = vsel %vm1969, %v3716, %v3718
        %v3736 = vsel %vm1969, %v3718, %v3720
        %v3737 = vsel %vm1969, %v3722, %v3724
        %v3738 = vsel %vm1969, %v3724, %v3726
        %v3739 = vsel %vm1969, %v3728, %v3730
        %v3740 = vsel %vm1969, %v3730, %v3732
        %3749 = vst [vmem:[#allocation5 + $0xc0] sm:$0xff] %v3733
        %3750 = vst [vmem:[#allocation5 + $0xc8] sm:$0xff] %v3734
        %3751 = vst [vmem:[#allocation5 + $0xd0] sm:$0xff] %v3735
        %3752 = vst [vmem:[#allocation5 + $0xd8] sm:$0xff] %v3736
        %3753 = vst [vmem:[#allocation5 + $0xe0] sm:$0xff] %v3737
        %3754 = vst [vmem:[#allocation5 + $0xe8] sm:$0xff] %v3738
        %3755 = vst [vmem:[#allocation5 + $0xf0] sm:$0xff] %v3739
        %3756 = vst [vmem:[#allocation5 + $0xf8] sm:$0xff] %v3740
        %v3757 = vld [vmem:[#allocation4] sm:$0xff]
        %v3758 = vld [vmem:[#allocation4 + $0x8] sm:$0xff]
        %v3759 = vld [vmem:[#allocation4 + $0x10] sm:$0xff]
        %v3760 = vld [vmem:[#allocation4 + $0x18] sm:$0xff]
        %v3761 = vld [vmem:[#allocation4 + $0x20] sm:$0xff]
        %v3762 = vld [vmem:[#allocation4 + $0x28] sm:$0xff]
        %v3763 = vld [vmem:[#allocation4 + $0x30] sm:$0xff]
        %v3764 = vld [vmem:[#allocation4 + $0x38] sm:$0xff]
        %v3765 = vld [vmem:[#allocation4 + $0x40] sm:$0xff]
        %v3766 = vld [vmem:[#allocation4 + $0x48] sm:$0xff]
        %v3767 = vld [vmem:[#allocation4 + $0x50] sm:$0xff]
        %v3768 = vld [vmem:[#allocation4 + $0x58] sm:$0xff]
        %3781 = vrot.lane.b32.xlu0 %v3757, 111
        %v3782 = vpop.permute.xlu0 %3781
        %3783 = vrot.lane.b32.xlu0 %v3758, 111
        %v3784 = vpop.permute.xlu0 %3783
        %3785 = vrot.lane.b32.xlu0 %v3759, 111
        %v3786 = vpop.permute.xlu0 %3785
        %3787 = vrot.lane.b32.xlu0 %v3760, 111
        %v3788 = vpop.permute.xlu0 %3787
        %3789 = vrot.lane.b32.xlu0 %v3761, 111
        %v3790 = vpop.permute.xlu0 %3789
        %3791 = vrot.lane.b32.xlu0 %v3762, 111
        %v3792 = vpop.permute.xlu0 %3791
        %3793 = vrot.lane.b32.xlu0 %v3763, 111
        %v3794 = vpop.permute.xlu0 %3793
        %3795 = vrot.lane.b32.xlu0 %v3764, 111
        %v3796 = vpop.permute.xlu0 %3795
        %3797 = vrot.lane.b32.xlu0 %v3765, 111
        %v3798 = vpop.permute.xlu0 %3797
        %3799 = vrot.lane.b32.xlu0 %v3766, 111
        %v3800 = vpop.permute.xlu0 %3799
        %3801 = vrot.lane.b32.xlu0 %v3767, 111
        %v3802 = vpop.permute.xlu0 %3801
        %3803 = vrot.lane.b32.xlu0 %v3768, 111
        %v3804 = vpop.permute.xlu0 %3803
        %v3805 = vsel %vm2006, %v3782, %v3784
        %v3806 = vsel %vm2006, %v3784, %v3786
        %v3807 = vsel %vm2006, %v3788, %v3790
        %v3808 = vsel %vm2006, %v3790, %v3792
        %v3809 = vsel %vm2006, %v3794, %v3796
        %v3810 = vsel %vm2006, %v3796, %v3798
        %v3811 = vsel %vm2006, %v3800, %v3802
        %v3812 = vsel %vm2006, %v3802, %v3804
        %3821 = vst [vmem:[#allocation5 + $0x100] sm:$0xff] %v3805
        %3822 = vst [vmem:[#allocation5 + $0x108] sm:$0xff] %v3806
        %3823 = vst [vmem:[#allocation5 + $0x110] sm:$0xff] %v3807
        %3824 = vst [vmem:[#allocation5 + $0x118] sm:$0xff] %v3808
        %3825 = vst [vmem:[#allocation5 + $0x120] sm:$0xff] %v3809
        %3826 = vst [vmem:[#allocation5 + $0x128] sm:$0xff] %v3810
        %3827 = vst [vmem:[#allocation5 + $0x130] sm:$0xff] %v3811
        %3828 = vst [vmem:[#allocation5 + $0x138] sm:$0xff] %v3812
        %v3829 = vld [vmem:[#allocation4] sm:$0xff]
        %v3830 = vld [vmem:[#allocation4 + $0x8] sm:$0xff]
        %v3831 = vld [vmem:[#allocation4 + $0x10] sm:$0xff]
        %v3832 = vld [vmem:[#allocation4 + $0x18] sm:$0xff]
        %v3833 = vld [vmem:[#allocation4 + $0x20] sm:$0xff]
        %v3834 = vld [vmem:[#allocation4 + $0x28] sm:$0xff]
        %v3835 = vld [vmem:[#allocation4 + $0x30] sm:$0xff]
        %v3836 = vld [vmem:[#allocation4 + $0x38] sm:$0xff]
        %v3837 = vld [vmem:[#allocation4 + $0x40] sm:$0xff]
        %v3838 = vld [vmem:[#allocation4 + $0x48] sm:$0xff]
        %v3839 = vld [vmem:[#allocation4 + $0x50] sm:$0xff]
        %v3840 = vld [vmem:[#allocation4 + $0x58] sm:$0xff]
        %v3841 = vmul.bf16 %v3829, %v2026
        %v3842 = vmul.bf16 %v3830, %v2030
        %v3843 = vmul.bf16 %v3831, %v2028
        %v3844 = vmul.bf16 %v3832, %v2026
        %v3845 = vmul.bf16 %v3833, %v2030
        %v3846 = vmul.bf16 %v3834, %v2028
        %v3847 = vmul.bf16 %v3835, %v2026
        %v3848 = vmul.bf16 %v3836, %v2030
        %v3849 = vmul.bf16 %v3837, %v2028
        %v3850 = vmul.bf16 %v3838, %v2026
        %v3851 = vmul.bf16 %v3839, %v2030
        %v3852 = vmul.bf16 %v3840, %v2028
        %3865 = vrot.lane.b32.xlu0 %v3841, 110
        %v3866 = vpop.permute.xlu0 %3865
        %3867 = vrot.lane.b32.xlu0 %v3842, 110
        %v3868 = vpop.permute.xlu0 %3867
        %3869 = vrot.lane.b32.xlu0 %v3843, 110
        %v3870 = vpop.permute.xlu0 %3869
        %3871 = vrot.lane.b32.xlu0 %v3844, 110
        %v3872 = vpop.permute.xlu0 %3871
        %3873 = vrot.lane.b32.xlu0 %v3845, 110
        %v3874 = vpop.permute.xlu0 %3873
        %3875 = vrot.lane.b32.xlu0 %v3846, 110
        %v3876 = vpop.permute.xlu0 %3875
        %3877 = vrot.lane.b32.xlu0 %v3847, 110
        %v3878 = vpop.permute.xlu0 %3877
        %3879 = vrot.lane.b32.xlu0 %v3848, 110
        %v3880 = vpop.permute.xlu0 %3879
        %3881 = vrot.lane.b32.xlu0 %v3849, 110
        %v3882 = vpop.permute.xlu0 %3881
        %3883 = vrot.lane.b32.xlu0 %v3850, 110
        %v3884 = vpop.permute.xlu0 %3883
        %3885 = vrot.lane.b32.xlu0 %v3851, 110
        %v3886 = vpop.permute.xlu0 %3885
        %3887 = vrot.lane.b32.xlu0 %v3852, 110
        %v3888 = vpop.permute.xlu0 %3887
        %v3889 = vsel %vm2058, %v3866, %v3868
        %v3890 = vsel %vm2058, %v3868, %v3870
        %v3891 = vsel %vm2058, %v3872, %v3874
        %v3892 = vsel %vm2058, %v3874, %v3876
        %v3893 = vsel %vm2058, %v3878, %v3880
        %v3894 = vsel %vm2058, %v3880, %v3882
        %v3895 = vsel %vm2058, %v3884, %v3886
        %v3896 = vsel %vm2058, %v3886, %v3888
        %3905 = vst [vmem:[#allocation5 + $0x140] sm:$0xff] %v3889
        %3906 = vst [vmem:[#allocation5 + $0x148] sm:$0xff] %v3890
        %3907 = vst [vmem:[#allocation5 + $0x150] sm:$0xff] %v3891
        %3908 = vst [vmem:[#allocation5 + $0x158] sm:$0xff] %v3892
        %3909 = vst [vmem:[#allocation5 + $0x160] sm:$0xff] %v3893
        %3910 = vst [vmem:[#allocation5 + $0x168] sm:$0xff] %v3894
        %3911 = vst [vmem:[#allocation5 + $0x170] sm:$0xff] %v3895
        %3912 = vst [vmem:[#allocation5 + $0x178] sm:$0xff] %v3896
        %v3913 = vld [vmem:[#allocation4] sm:$0xff]
        %v3914 = vld [vmem:[#allocation4 + $0x8] sm:$0xff]
        %v3915 = vld [vmem:[#allocation4 + $0x10] sm:$0xff]
        %v3916 = vld [vmem:[#allocation4 + $0x18] sm:$0xff]
        %v3917 = vld [vmem:[#allocation4 + $0x20] sm:$0xff]
        %v3918 = vld [vmem:[#allocation4 + $0x28] sm:$0xff]
        %v3919 = vld [vmem:[#allocation4 + $0x30] sm:$0xff]
        %v3920 = vld [vmem:[#allocation4 + $0x38] sm:$0xff]
        %v3921 = vld [vmem:[#allocation4 + $0x40] sm:$0xff]
        %v3922 = vld [vmem:[#allocation4 + $0x48] sm:$0xff]
        %v3923 = vld [vmem:[#allocation4 + $0x50] sm:$0xff]
        %v3924 = vld [vmem:[#allocation4 + $0x58] sm:$0xff]
        %v3925 = vmul.bf16 %v3913, %v2078
        %v3926 = vmul.bf16 %v3914, %v2082
        %v3927 = vmul.bf16 %v3915, %v2080
        %v3928 = vmul.bf16 %v3916, %v2078
        %v3929 = vmul.bf16 %v3917, %v2082
        %v3930 = vmul.bf16 %v3918, %v2080
        %v3931 = vmul.bf16 %v3919, %v2078
        %v3932 = vmul.bf16 %v3920, %v2082
        %v3933 = vmul.bf16 %v3921, %v2080
        %v3934 = vmul.bf16 %v3922, %v2078
        %v3935 = vmul.bf16 %v3923, %v2082
        %v3936 = vmul.bf16 %v3924, %v2080
        %3949 = vrot.lane.b32.xlu0 %v3925, 96
        %v3950 = vpop.permute.xlu0 %3949
        %3951 = vrot.lane.b32.xlu0 %v3926, 96
        %v3952 = vpop.permute.xlu0 %3951
        %3953 = vrot.lane.b32.xlu0 %v3927, 96
        %v3954 = vpop.permute.xlu0 %3953
        %3955 = vrot.lane.b32.xlu0 %v3928, 96
        %v3956 = vpop.permute.xlu0 %3955
        %3957 = vrot.lane.b32.xlu0 %v3929, 96
        %v3958 = vpop.permute.xlu0 %3957
        %3959 = vrot.lane.b32.xlu0 %v3930, 96
        %v3960 = vpop.permute.xlu0 %3959
        %3961 = vrot.lane.b32.xlu0 %v3931, 96
        %v3962 = vpop.permute.xlu0 %3961
        %3963 = vrot.lane.b32.xlu0 %v3932, 96
        %v3964 = vpop.permute.xlu0 %3963
        %3965 = vrot.lane.b32.xlu0 %v3933, 96
        %v3966 = vpop.permute.xlu0 %3965
        %3967 = vrot.lane.b32.xlu0 %v3934, 96
        %v3968 = vpop.permute.xlu0 %3967
        %3969 = vrot.lane.b32.xlu0 %v3935, 96
        %v3970 = vpop.permute.xlu0 %3969
        %3971 = vrot.lane.b32.xlu0 %v3936, 96
        %v3972 = vpop.permute.xlu0 %3971
        %v3973 = vsel %vm2110, %v3950, %v3952
        %v3974 = vsel %vm2110, %v3952, %v3954
        %v3975 = vsel %vm2110, %v3956, %v3958
        %v3976 = vsel %vm2110, %v3958, %v3960
        %v3977 = vsel %vm2110, %v3962, %v3964
        %v3978 = vsel %vm2110, %v3964, %v3966
        %v3979 = vsel %vm2110, %v3968, %v3970
        %v3980 = vsel %vm2110, %v3970, %v3972
        %3989 = vst [vmem:[#allocation5 + $0x180] sm:$0xff] %v3973
        %3990 = vst [vmem:[#allocation5 + $0x188] sm:$0xff] %v3974
        %3991 = vst [vmem:[#allocation5 + $0x190] sm:$0xff] %v3975
        %3992 = vst [vmem:[#allocation5 + $0x198] sm:$0xff] %v3976
        %3993 = vst [vmem:[#allocation5 + $0x1a0] sm:$0xff] %v3977
        %3994 = vst [vmem:[#allocation5 + $0x1a8] sm:$0xff] %v3978
        %3995 = vst [vmem:[#allocation5 + $0x1b0] sm:$0xff] %v3979
        %3996 = vst [vmem:[#allocation5 + $0x1b8] sm:$0xff] %v3980
        %v3997 = vld [vmem:[#allocation4] sm:$0xff]
        %v3998 = vld [vmem:[#allocation4 + $0x8] sm:$0xff]
        %v3999 = vld [vmem:[#allocation4 + $0x10] sm:$0xff]
        %v4000 = vld [vmem:[#allocation4 + $0x18] sm:$0xff]
        %v4001 = vld [vmem:[#allocation4 + $0x20] sm:$0xff]
        %v4002 = vld [vmem:[#allocation4 + $0x28] sm:$0xff]
        %v4003 = vld [vmem:[#allocation4 + $0x30] sm:$0xff]
        %v4004 = vld [vmem:[#allocation4 + $0x38] sm:$0xff]
        %v4005 = vld [vmem:[#allocation4 + $0x40] sm:$0xff]
        %v4006 = vld [vmem:[#allocation4 + $0x48] sm:$0xff]
        %v4007 = vld [vmem:[#allocation4 + $0x50] sm:$0xff]
        %v4008 = vld [vmem:[#allocation4 + $0x58] sm:$0xff]
        %4021 = vrot.lane.b32.xlu0 %v3997, 95
        %v4022 = vpop.permute.xlu0 %4021
        %4023 = vrot.lane.b32.xlu0 %v3998, 95
        %v4024 = vpop.permute.xlu0 %4023
        %4025 = vrot.lane.b32.xlu0 %v3999, 95
        %v4026 = vpop.permute.xlu0 %4025
        %4027 = vrot.lane.b32.xlu0 %v4000, 95
        %v4028 = vpop.permute.xlu0 %4027
        %4029 = vrot.lane.b32.xlu0 %v4001, 95
        %v4030 = vpop.permute.xlu0 %4029
        %4031 = vrot.lane.b32.xlu0 %v4002, 95
        %v4032 = vpop.permute.xlu0 %4031
        %4033 = vrot.lane.b32.xlu0 %v4003, 95
        %v4034 = vpop.permute.xlu0 %4033
        %4035 = vrot.lane.b32.xlu0 %v4004, 95
        %v4036 = vpop.permute.xlu0 %4035
        %4037 = vrot.lane.b32.xlu0 %v4005, 95
        %v4038 = vpop.permute.xlu0 %4037
        %4039 = vrot.lane.b32.xlu0 %v4006, 95
        %v4040 = vpop.permute.xlu0 %4039
        %4041 = vrot.lane.b32.xlu0 %v4007, 95
        %v4042 = vpop.permute.xlu0 %4041
        %4043 = vrot.lane.b32.xlu0 %v4008, 95
        %v4044 = vpop.permute.xlu0 %4043
        %v4045 = vsel %vm2147, %v4022, %v4024
        %v4046 = vsel %vm2147, %v4024, %v4026
        %v4047 = vsel %vm2147, %v4028, %v4030
        %v4048 = vsel %vm2147, %v4030, %v4032
        %v4049 = vsel %vm2147, %v4034, %v4036
        %v4050 = vsel %vm2147, %v4036, %v4038
        %v4051 = vsel %vm2147, %v4040, %v4042
        %v4052 = vsel %vm2147, %v4042, %v4044
        %4061 = vst [vmem:[#allocation5 + $0x1c0] sm:$0xff] %v4045
        %4062 = vst [vmem:[#allocation5 + $0x1c8] sm:$0xff] %v4046
        %4063 = vst [vmem:[#allocation5 + $0x1d0] sm:$0xff] %v4047
        %4064 = vst [vmem:[#allocation5 + $0x1d8] sm:$0xff] %v4048
        %4065 = vst [vmem:[#allocation5 + $0x1e0] sm:$0xff] %v4049
        %4066 = vst [vmem:[#allocation5 + $0x1e8] sm:$0xff] %v4050
        %4067 = vst [vmem:[#allocation5 + $0x1f0] sm:$0xff] %v4051
        %4068 = vst [vmem:[#allocation5 + $0x1f8] sm:$0xff] %v4052
        %v4069 = vld [vmem:[#allocation4] sm:$0xff]
        %v4070 = vld [vmem:[#allocation4 + $0x8] sm:$0xff]
        %v4071 = vld [vmem:[#allocation4 + $0x10] sm:$0xff]
        %v4072 = vld [vmem:[#allocation4 + $0x18] sm:$0xff]
        %v4073 = vld [vmem:[#allocation4 + $0x20] sm:$0xff]
        %v4074 = vld [vmem:[#allocation4 + $0x28] sm:$0xff]
        %v4075 = vld [vmem:[#allocation4 + $0x30] sm:$0xff]
        %v4076 = vld [vmem:[#allocation4 + $0x38] sm:$0xff]
        %v4077 = vld [vmem:[#allocation4 + $0x40] sm:$0xff]
        %v4078 = vld [vmem:[#allocation4 + $0x48] sm:$0xff]
        %v4079 = vld [vmem:[#allocation4 + $0x50] sm:$0xff]
        %v4080 = vld [vmem:[#allocation4 + $0x58] sm:$0xff]
        %v4081 = vmul.bf16 %v4069, %v2167
        %v4082 = vmul.bf16 %v4070, %v2171
        %v4083 = vmul.bf16 %v4071, %v2169
        %v4084 = vmul.bf16 %v4072, %v2167
        %v4085 = vmul.bf16 %v4073, %v2171
        %v4086 = vmul.bf16 %v4074, %v2169
        %v4087 = vmul.bf16 %v4075, %v2167
        %v4088 = vmul.bf16 %v4076, %v2171
        %v4089 = vmul.bf16 %v4077, %v2169
        %v4090 = vmul.bf16 %v4078, %v2167
        %v4091 = vmul.bf16 %v4079, %v2171
        %v4092 = vmul.bf16 %v4080, %v2169
        %4105 = vrot.lane.b32.xlu0 %v4081, 94
        %v4106 = vpop.permute.xlu0 %4105
        %4107 = vrot.lane.b32.xlu0 %v4082, 94
        %v4108 = vpop.permute.xlu0 %4107
        %4109 = vrot.lane.b32.xlu0 %v4083, 94
        %v4110 = vpop.permute.xlu0 %4109
        %4111 = vrot.lane.b32.xlu0 %v4084, 94
        %v4112 = vpop.permute.xlu0 %4111
        %4113 = vrot.lane.b32.xlu0 %v4085, 94
        %v4114 = vpop.permute.xlu0 %4113
        %4115 = vrot.lane.b32.xlu0 %v4086, 94
        %v4116 = vpop.permute.xlu0 %4115
        %4117 = vrot.lane.b32.xlu0 %v4087, 94
        %v4118 = vpop.permute.xlu0 %4117
        %4119 = vrot.lane.b32.xlu0 %v4088, 94
        %v4120 = vpop.permute.xlu0 %4119
        %4121 = vrot.lane.b32.xlu0 %v4089, 94
        %v4122 = vpop.permute.xlu0 %4121
        %4123 = vrot.lane.b32.xlu0 %v4090, 94
        %v4124 = vpop.permute.xlu0 %4123
        %4125 = vrot.lane.b32.xlu0 %v4091, 94
        %v4126 = vpop.permute.xlu0 %4125
        %4127 = vrot.lane.b32.xlu0 %v4092, 94
        %v4128 = vpop.permute.xlu0 %4127
        %v4129 = vsel %vm2199, %v4106, %v4108
        %v4130 = vsel %vm2199, %v4108, %v4110
        %v4131 = vsel %vm2199, %v4112, %v4114
        %v4132 = vsel %vm2199, %v4114, %v4116
        %v4133 = vsel %vm2199, %v4118, %v4120
        %v4134 = vsel %vm2199, %v4120, %v4122
        %v4135 = vsel %vm2199, %v4124, %v4126
        %v4136 = vsel %vm2199, %v4126, %v4128
        %4145 = vst [vmem:[#allocation5 + $0x200] sm:$0xff] %v4129
        %4146 = vst [vmem:[#allocation5 + $0x208] sm:$0xff] %v4130
        %4147 = vst [vmem:[#allocation5 + $0x210] sm:$0xff] %v4131
        %4148 = vst [vmem:[#allocation5 + $0x218] sm:$0xff] %v4132
        %4149 = vst [vmem:[#allocation5 + $0x220] sm:$0xff] %v4133
        %4150 = vst [vmem:[#allocation5 + $0x228] sm:$0xff] %v4134
        %4151 = vst [vmem:[#allocation5 + $0x230] sm:$0xff] %v4135
        %4152 = vst [vmem:[#allocation5 + $0x238] sm:$0xff] %v4136
        %v4153 = vld [vmem:[#allocation17] sm:$0xff]
        %v4154 = vld [vmem:[#allocation17 + $0x8] sm:$0xff]
        %v4155 = vld [vmem:[#allocation17 + $0x10] sm:$0xf]
        %v4156 = vld [vmem:[#allocation17 + $0x14] sm:$0xff]
        %v4157 = vld [vmem:[#allocation17 + $0x1c] sm:$0xff]
        %v4158 = vld [vmem:[#allocation17 + $0x24] sm:$0xf]
        %v4159 = vld [vmem:[#allocation17 + $0x28] sm:$0xff]
        %v4160 = vld [vmem:[#allocation17 + $0x30] sm:$0xff]
        %v4161 = vld [vmem:[#allocation17 + $0x38] sm:$0xf]
        %v4162 = vld [vmem:[#allocation17 + $0x3c] sm:$0xff]
        %v4163 = vld [vmem:[#allocation17 + $0x44] sm:$0xff]
        %v4164 = vld [vmem:[#allocation17 + $0x4c] sm:$0xf]
        %v4165 = vld [vmem:[#allocation17 + $0x50] sm:$0xff]
        %v4166 = vld [vmem:[#allocation17 + $0x58] sm:$0xff]
        %v4167 = vld [vmem:[#allocation17 + $0x60] sm:$0xf]
        %v4168 = vld [vmem:[#allocation17 + $0x64] sm:$0xff]
        %v4169 = vld [vmem:[#allocation17 + $0x6c] sm:$0xff]
        %v4170 = vld [vmem:[#allocation17 + $0x74] sm:$0xf]
        %v4171 = vld [vmem:[#allocation17 + $0x78] sm:$0xff]
        %v4172 = vld [vmem:[#allocation17 + $0x80] sm:$0xff]
        %v4173 = vld [vmem:[#allocation17 + $0x88] sm:$0xf]
        %v4174 = vld [vmem:[#allocation17 + $0x8c] sm:$0xff]
        %v4175 = vld [vmem:[#allocation17 + $0x94] sm:$0xff]
        %v4176 = vld [vmem:[#allocation17 + $0x9c] sm:$0xf]
        %v4177 = vld [vmem:[#allocation5] sm:$0xff]
        %v4178 = vld [vmem:[#allocation5 + $0x8] sm:$0xff]
        %v4179 = vld [vmem:[#allocation5 + $0x10] sm:$0xff]
        %v4180 = vld [vmem:[#allocation5 + $0x18] sm:$0xff]
        %v4181 = vld [vmem:[#allocation5 + $0x20] sm:$0xff]
        %v4182 = vld [vmem:[#allocation5 + $0x28] sm:$0xff]
        %v4183 = vld [vmem:[#allocation5 + $0x30] sm:$0xff]
        %v4184 = vld [vmem:[#allocation5 + $0x38] sm:$0xff]
        %v4185 = vld [vmem:[#allocation5 + $0x40] sm:$0xff]
        %v4186 = vld [vmem:[#allocation5 + $0x48] sm:$0xff]
        %v4187 = vld [vmem:[#allocation5 + $0x50] sm:$0xff]
        %v4188 = vld [vmem:[#allocation5 + $0x58] sm:$0xff]
        %v4189 = vld [vmem:[#allocation5 + $0x60] sm:$0xff]
        %v4190 = vld [vmem:[#allocation5 + $0x68] sm:$0xff]
        %v4191 = vld [vmem:[#allocation5 + $0x70] sm:$0xff]
        %v4192 = vld [vmem:[#allocation5 + $0x78] sm:$0xff]
        %v4193 = vld [vmem:[#allocation5 + $0x80] sm:$0xff]
        %v4194 = vld [vmem:[#allocation5 + $0x88] sm:$0xff]
        %v4195 = vld [vmem:[#allocation5 + $0x90] sm:$0xff]
        %v4196 = vld [vmem:[#allocation5 + $0x98] sm:$0xff]
        %v4197 = vld [vmem:[#allocation5 + $0xa0] sm:$0xff]
        %v4198 = vld [vmem:[#allocation5 + $0xa8] sm:$0xff]
        %v4199 = vld [vmem:[#allocation5 + $0xb0] sm:$0xff]
        %v4200 = vld [vmem:[#allocation5 + $0xb8] sm:$0xff]
        %v4201 = vld [vmem:[#allocation5 + $0xc0] sm:$0xff]
        %v4202 = vld [vmem:[#allocation5 + $0xc8] sm:$0xff]
        %v4203 = vld [vmem:[#allocation5 + $0xd0] sm:$0xff]
        %v4204 = vld [vmem:[#allocation5 + $0xd8] sm:$0xff]
        %v4205 = vld [vmem:[#allocation5 + $0xe0] sm:$0xff]
        %v4206 = vld [vmem:[#allocation5 + $0xe8] sm:$0xff]
        %v4207 = vld [vmem:[#allocation5 + $0xf0] sm:$0xff]
        %v4208 = vld [vmem:[#allocation5 + $0xf8] sm:$0xff]
        %v4209 = vld [vmem:[#allocation5 + $0x100] sm:$0xff]
        %v4210 = vld [vmem:[#allocation5 + $0x108] sm:$0xff]
        %v4211 = vld [vmem:[#allocation5 + $0x110] sm:$0xff]
        %v4212 = vld [vmem:[#allocation5 + $0x118] sm:$0xff]
        %v4213 = vld [vmem:[#allocation5 + $0x120] sm:$0xff]
        %v4214 = vld [vmem:[#allocation5 + $0x128] sm:$0xff]
        %v4215 = vld [vmem:[#allocation5 + $0x130] sm:$0xff]
        %v4216 = vld [vmem:[#allocation5 + $0x138] sm:$0xff]
        %v4217 = vld [vmem:[#allocation5 + $0x140] sm:$0xff]
        %v4218 = vld [vmem:[#allocation5 + $0x148] sm:$0xff]
        %v4219 = vld [vmem:[#allocation5 + $0x150] sm:$0xff]
        %v4220 = vld [vmem:[#allocation5 + $0x158] sm:$0xff]
        %v4221 = vld [vmem:[#allocation5 + $0x160] sm:$0xff]
        %v4222 = vld [vmem:[#allocation5 + $0x168] sm:$0xff]
        %v4223 = vld [vmem:[#allocation5 + $0x170] sm:$0xff]
        %v4224 = vld [vmem:[#allocation5 + $0x178] sm:$0xff]
        %v4225 = vld [vmem:[#allocation5 + $0x180] sm:$0xff]
        %v4226 = vld [vmem:[#allocation5 + $0x188] sm:$0xff]
        %v4227 = vld [vmem:[#allocation5 + $0x190] sm:$0xff]
        %v4228 = vld [vmem:[#allocation5 + $0x198] sm:$0xff]
        %v4229 = vld [vmem:[#allocation5 + $0x1a0] sm:$0xff]
        %v4230 = vld [vmem:[#allocation5 + $0x1a8] sm:$0xff]
        %v4231 = vld [vmem:[#allocation5 + $0x1b0] sm:$0xff]
        %v4232 = vld [vmem:[#allocation5 + $0x1b8] sm:$0xff]
        %v4233 = vld [vmem:[#allocation5 + $0x1c0] sm:$0xff]
        %v4234 = vld [vmem:[#allocation5 + $0x1c8] sm:$0xff]
        %v4235 = vld [vmem:[#allocation5 + $0x1d0] sm:$0xff]
        %v4236 = vld [vmem:[#allocation5 + $0x1d8] sm:$0xff]
        %v4237 = vld [vmem:[#allocation5 + $0x1e0] sm:$0xff]
        %v4238 = vld [vmem:[#allocation5 + $0x1e8] sm:$0xff]
        %v4239 = vld [vmem:[#allocation5 + $0x1f0] sm:$0xff]
        %v4240 = vld [vmem:[#allocation5 + $0x1f8] sm:$0xff]
        %v4241 = vld [vmem:[#allocation5 + $0x200] sm:$0xff]
        %v4242 = vld [vmem:[#allocation5 + $0x208] sm:$0xff]
        %v4243 = vld [vmem:[#allocation5 + $0x210] sm:$0xff]
        %v4244 = vld [vmem:[#allocation5 + $0x218] sm:$0xff]
        %v4245 = vld [vmem:[#allocation5 + $0x220] sm:$0xff]
        %v4246 = vld [vmem:[#allocation5 + $0x228] sm:$0xff]
        %v4247 = vld [vmem:[#allocation5 + $0x230] sm:$0xff]
        %v4248 = vld [vmem:[#allocation5 + $0x238] sm:$0xff]
        %4250 = vset.pattern.permute.xlu0 0
        %4251 = vperm.xlu0 %4250, %v3413
        %v4252 = vpop.permute.xlu0 %4251
        %4255 = vset.pattern.permute.xlu0 0
        %4256 = vperm.xlu0 %4255, %v3414
        %v4257 = vpop.permute.xlu0 %4256
        %4260 = vset.pattern.permute.xlu0 0
        %4261 = vperm.xlu0 %4260, %v3415
        %v4262 = vpop.permute.xlu0 %4261
        %4265 = vset.pattern.permute.xlu0 0
        %4266 = vperm.xlu0 %4265, %v3416
        %v4267 = vpop.permute.xlu0 %4266
        %4270 = vset.pattern.permute.xlu0 0
        %4271 = vperm.xlu0 %4270, %v3417
        %v4272 = vpop.permute.xlu0 %4271
        %4275 = vset.pattern.permute.xlu0 0
        %4276 = vperm.xlu0 %4275, %v3418
        %v4277 = vpop.permute.xlu0 %4276
        %4280 = vset.pattern.permute.xlu0 0
        %4281 = vperm.xlu0 %4280, %v3419
        %v4282 = vpop.permute.xlu0 %4281
        %4285 = vset.pattern.permute.xlu0 0
        %4286 = vperm.xlu0 %4285, %v3420
        %v4287 = vpop.permute.xlu0 %4286
        %v4313 = vunpack.c.l.b16 %v4153
        %v4314 = vunpack.c.h.b16 %v4153
        %v4315 = vunpack.c.l.b16 %v4154
        %v4316 = vunpack.c.h.b16 %v4154
        %v4317 = vunpack.c.l.b16 %v4155
        %v4318 = vunpack.c.l.b16 %v4156
        %v4319 = vunpack.c.h.b16 %v4156
        %v4320 = vunpack.c.l.b16 %v4157
        %v4321 = vunpack.c.h.b16 %v4157
        %v4322 = vunpack.c.l.b16 %v4158
        %v4323 = vunpack.c.l.b16 %v4159
        %v4324 = vunpack.c.h.b16 %v4159
        %v4325 = vunpack.c.l.b16 %v4160
        %v4326 = vunpack.c.h.b16 %v4160
        %v4327 = vunpack.c.l.b16 %v4161
        %v4328 = vunpack.c.l.b16 %v4162
        %v4329 = vunpack.c.h.b16 %v4162
        %v4330 = vunpack.c.l.b16 %v4163
        %v4331 = vunpack.c.h.b16 %v4163
        %v4332 = vunpack.c.l.b16 %v4164
        %v4333 = vunpack.c.l.b16 %v4165
        %v4334 = vunpack.c.h.b16 %v4165
        %v4335 = vunpack.c.l.b16 %v4166
        %v4336 = vunpack.c.h.b16 %v4166
        %v4337 = vunpack.c.l.b16 %v4167
        %v4338 = vunpack.c.l.b16 %v4168
        %v4339 = vunpack.c.h.b16 %v4168
        %v4340 = vunpack.c.l.b16 %v4169
        %v4341 = vunpack.c.h.b16 %v4169
        %v4342 = vunpack.c.l.b16 %v4170
        %v4343 = vunpack.c.l.b16 %v4171
        %v4344 = vunpack.c.h.b16 %v4171
        %v4345 = vunpack.c.l.b16 %v4172
        %v4346 = vunpack.c.h.b16 %v4172
        %v4347 = vunpack.c.l.b16 %v4173
        %v4348 = vunpack.c.l.b16 %v4174
        %v4349 = vunpack.c.h.b16 %v4174
        %v4350 = vunpack.c.l.b16 %v4175
        %v4351 = vunpack.c.h.b16 %v4175
        %v4352 = vunpack.c.l.b16 %v4176
        %v4353 = vpack.c.b16 %v4318, %v4313
        %v4354 = vpack.c.b16 %v4319, %v4314
        %v4355 = vpack.c.b16 %v4320, %v4315
        %v4356 = vpack.c.b16 %v4321, %v4316
        %v4357 = vpack.c.b16 %v4322, %v4317
        %v4358 = vpack.c.b16 %v4328, %v4323
        %v4359 = vpack.c.b16 %v4329, %v4324
        %v4360 = vpack.c.b16 %v4330, %v4325
        %v4361 = vpack.c.b16 %v4331, %v4326
        %v4362 = vpack.c.b16 %v4332, %v4327
        %v4363 = vpack.c.b16 %v4338, %v4333
        %v4364 = vpack.c.b16 %v4339, %v4334
        %v4365 = vpack.c.b16 %v4340, %v4335
        %v4366 = vpack.c.b16 %v4341, %v4336
        %v4367 = vpack.c.b16 %v4342, %v4337
        %v4368 = vpack.c.b16 %v4348, %v4343
        %v4369 = vpack.c.b16 %v4349, %v4344
        %v4370 = vpack.c.b16 %v4350, %v4345
        %v4371 = vpack.c.b16 %v4351, %v4346
        %v4372 = vpack.c.b16 %v4352, %v4347
        %v4390 = vsel %vm2681, %v4357, 0
        %v4393 = vsel %vm2681, %v4362, 0
        %v4396 = vsel %vm2681, %v4367, 0
        %v4399 = vsel %vm2681, %v4372, 0
        %4401 = vmatprep.subr.bf16.mxu0 %v4178
        %4402 = vmatpush1.bf16.msra.mxu0 %v4177
        %4403 = vmatprep.subr.bf16.mxu0 %v4180
        %4404 = vmatpush1.bf16.msra.mxu0 %v4179
        %4405 = vmatprep.subr.bf16.mxu0 %v4182
        %4406 = vmatpush1.bf16.msra.mxu0 %v4181
        %4407 = vmatprep.subr.bf16.mxu0 %v4184
        %4408 = vmatpush1.bf16.msra.mxu0 %v4183
        %4409 = vmatprep.subr.bf16.mxu0 %v4186
        %4410 = vmatpush1.bf16.msra.mxu0 %v4185
        %4411 = vmatprep.subr.bf16.mxu0 %v4188
        %4412 = vmatpush1.bf16.msra.mxu0 %v4187
        %4413 = vmatprep.subr.bf16.mxu0 %v4190
        %4414 = vmatpush1.bf16.msra.mxu0 %v4189
        %4415 = vmatprep.subr.bf16.mxu0 %v4192
        %4416 = vmatpush1.bf16.msra.mxu0 %v4191
        %4417 = vmatprep.subr.bf16.mxu0 %v4194
        %4418 = vmatpush1.bf16.msra.mxu0 %v4193
        %4419 = vmatprep.subr.bf16.mxu0 %v4196
        %4420 = vmatpush1.bf16.msra.mxu0 %v4195
        %4421 = vmatprep.subr.bf16.mxu0 %v4198
        %4422 = vmatpush1.bf16.msra.mxu0 %v4197
        %4423 = vmatprep.subr.bf16.mxu0 %v4200
        %4424 = vmatpush1.bf16.msra.mxu0 %v4199
        %4425 = vmatprep.subr.bf16.mxu0 %v4202
        %4426 = vmatpush1.bf16.msra.mxu0 %v4201
        %4427 = vmatprep.subr.bf16.mxu0 %v4204
        %4428 = vmatpush1.bf16.msra.mxu0 %v4203
        %4429 = vmatprep.subr.bf16.mxu0 %v4206
        %4430 = vmatpush1.bf16.msra.mxu0 %v4205
        %4431 = vmatprep.subr.bf16.mxu0 %v4208
        %4432 = vmatpush1.bf16.msra.mxu0 %v4207
        %4433 = vmatprep.mubr.bf16.mxu0 %v4354
        %4434 = vmatmul.mubr.bf16.gmra.mrb[0].mxu0 %v4353
        %v4435 = vpop.f32.mrb[0].mxu0
        %v4436 = vadd.f32 %v4252, %v4435
        %v4437 = vpop.f32.mrb[0].mxu0
        %v4438 = vadd.f32 %v4252, %v4437
        %v4439 = vpop.f32.mrb[0].mxu0
        %v4440 = vadd.f32 %v4257, %v4439
        %v4441 = vpop.f32.mrb[0].mxu0
        %v4442 = vadd.f32 %v4257, %v4441
        %4443 = vmatprep.mubr.bf16.mxu0 %v4359
        %4444 = vmatmul.mubr.bf16.gmra.mrb[0].mxu0 %v4358
        %v4445 = vpop.f32.mrb[0].mxu0
        %v4446 = vadd.f32 %v4262, %v4445
        %v4447 = vpop.f32.mrb[0].mxu0
        %v4448 = vadd.f32 %v4262, %v4447
        %v4449 = vpop.f32.mrb[0].mxu0
        %v4450 = vadd.f32 %v4267, %v4449
        %v4451 = vpop.f32.mrb[0].mxu0
        %v4452 = vadd.f32 %v4267, %v4451
        %4453 = vmatprep.mubr.bf16.mxu0 %v4364
        %4454 = vmatmul.mubr.bf16.gmra.mrb[0].mxu0 %v4363
        %v4455 = vpop.f32.mrb[0].mxu0
        %v4456 = vadd.f32 %v4272, %v4455
        %v4457 = vpop.f32.mrb[0].mxu0
        %v4458 = vadd.f32 %v4272, %v4457
        %v4459 = vpop.f32.mrb[0].mxu0
        %v4460 = vadd.f32 %v4277, %v4459
        %v4461 = vpop.f32.mrb[0].mxu0
        %v4462 = vadd.f32 %v4277, %v4461
        %4463 = vmatprep.mubr.bf16.mxu0 %v4369
        %4464 = vmatmul.mubr.bf16.gmra.mrb[0].mxu0 %v4368
        %v4465 = vpop.f32.mrb[0].mxu0
        %v4466 = vadd.f32 %v4282, %v4465
        %v4467 = vpop.f32.mrb[0].mxu0
        %v4468 = vadd.f32 %v4282, %v4467
        %v4469 = vpop.f32.mrb[0].mxu0
        %v4470 = vadd.f32 %v4287, %v4469
        %v4471 = vpop.f32.mrb[0].mxu0
        %v4472 = vadd.f32 %v4287, %v4471
        %4473 = vdwg.mxu0
        %4474 = vmatprep.subr.bf16.mxu0 %v4210
        %4475 = vmatpush1.bf16.msra.mxu0 %v4209
        %4476 = vmatprep.subr.bf16.mxu0 %v4212
        %4477 = vmatpush1.bf16.msra.mxu0 %v4211
        %4478 = vmatprep.subr.bf16.mxu0 %v4214
        %4479 = vmatpush1.bf16.msra.mxu0 %v4213
        %4480 = vmatprep.subr.bf16.mxu0 %v4216
        %4481 = vmatpush1.bf16.msra.mxu0 %v4215
        %4482 = vmatprep.subr.bf16.mxu0 %v4218
        %4483 = vmatpush1.bf16.msra.mxu0 %v4217
        %4484 = vmatprep.subr.bf16.mxu0 %v4220
        %4485 = vmatpush1.bf16.msra.mxu0 %v4219
        %4486 = vmatprep.subr.bf16.mxu0 %v4222
        %4487 = vmatpush1.bf16.msra.mxu0 %v4221
        %4488 = vmatprep.subr.bf16.mxu0 %v4224
        %4489 = vmatpush1.bf16.msra.mxu0 %v4223
        %4490 = vmatprep.subr.bf16.mxu0 %v4226
        %4491 = vmatpush1.bf16.msra.mxu0 %v4225
        %4492 = vmatprep.subr.bf16.mxu0 %v4228
        %4493 = vmatpush1.bf16.msra.mxu0 %v4227
        %4494 = vmatprep.subr.bf16.mxu0 %v4230
        %4495 = vmatpush1.bf16.msra.mxu0 %v4229
        %4496 = vmatprep.subr.bf16.mxu0 %v4232
        %4497 = vmatpush1.bf16.msra.mxu0 %v4231
        %4498 = vmatprep.subr.bf16.mxu0 %v4234
        %4499 = vmatpush1.bf16.msra.mxu0 %v4233
        %4500 = vmatprep.subr.bf16.mxu0 %v4236
        %4501 = vmatpush1.bf16.msra.mxu0 %v4235
        %4502 = vmatprep.subr.bf16.mxu0 %v4238
        %4503 = vmatpush1.bf16.msra.mxu0 %v4237
        %4504 = vmatprep.subr.bf16.mxu0 %v4240
        %4505 = vmatpush1.bf16.msra.mxu0 %v4239
        %4506 = vmatprep.mubr.bf16.mxu0 %v4356
        %4507 = vmatmul.mubr.bf16.gmra.mrb[0].mxu0 %v4355
        %v4508 = vpop.f32.mrb[0].mxu0
        %v4509 = vadd.f32 %v4436, %v4508
        %v4510 = vpop.f32.mrb[0].mxu0
        %v4511 = vadd.f32 %v4438, %v4510
        %v4512 = vpop.f32.mrb[0].mxu0
        %v4513 = vadd.f32 %v4440, %v4512
        %v4514 = vpop.f32.mrb[0].mxu0
        %v4515 = vadd.f32 %v4442, %v4514
        %4516 = vmatprep.mubr.bf16.mxu0 %v4361
        %4517 = vmatmul.mubr.bf16.gmra.mrb[0].mxu0 %v4360
        %v4518 = vpop.f32.mrb[0].mxu0
        %v4519 = vadd.f32 %v4446, %v4518
        %v4520 = vpop.f32.mrb[0].mxu0
        %v4521 = vadd.f32 %v4448, %v4520
        %v4522 = vpop.f32.mrb[0].mxu0
        %v4523 = vadd.f32 %v4450, %v4522
        %v4524 = vpop.f32.mrb[0].mxu0
        %v4525 = vadd.f32 %v4452, %v4524
        %4526 = vmatprep.mubr.bf16.mxu0 %v4366
        %4527 = vmatmul.mubr.bf16.gmra.mrb[0].mxu0 %v4365
        %v4528 = vpop.f32.mrb[0].mxu0
        %v4529 = vadd.f32 %v4456, %v4528
        %v4530 = vpop.f32.mrb[0].mxu0
        %v4531 = vadd.f32 %v4458, %v4530
        %v4532 = vpop.f32.mrb[0].mxu0
        %v4533 = vadd.f32 %v4460, %v4532
        %v4534 = vpop.f32.mrb[0].mxu0
        %v4535 = vadd.f32 %v4462, %v4534
        %4536 = vmatprep.mubr.bf16.mxu0 %v4371
        %4537 = vmatmul.mubr.bf16.gmra.mrb[0].mxu0 %v4370
        %v4538 = vpop.f32.mrb[0].mxu0
        %v4539 = vadd.f32 %v4466, %v4538
        %v4540 = vpop.f32.mrb[0].mxu0
        %v4541 = vadd.f32 %v4468, %v4540
        %v4542 = vpop.f32.mrb[0].mxu0
        %v4543 = vadd.f32 %v4470, %v4542
        %v4544 = vpop.f32.mrb[0].mxu0
        %v4545 = vadd.f32 %v4472, %v4544
        %4546 = vdwg.mxu0
        %4547 = vmatprep.subr.bf16.mxu0 %v4242
        %4548 = vmatpush1.bf16.msra.mxu0 %v4241
        %4549 = vmatprep.subr.bf16.mxu0 %v4244
        %4550 = vmatpush1.bf16.msra.mxu0 %v4243
        %4551 = vmatprep.subr.bf16.mxu0 %v4246
        %4552 = vmatpush1.bf16.msra.mxu0 %v4245
        %4553 = vmatprep.subr.bf16.mxu0 %v4248
        %4554 = vmatpush1.bf16.msra.mxu0 %v4247
        %4555 = vmatprep.subr.bf16.mxu0 0
        %4556 = vmatpush1.bf16.msra.mxu0 0
        %4557 = vmatprep.subr.bf16.mxu0 0
        %4558 = vmatpush1.bf16.msra.mxu0 0
        %4559 = vmatprep.subr.bf16.mxu0 0
        %4560 = vmatpush1.bf16.msra.mxu0 0
        %4561 = vmatprep.subr.bf16.mxu0 0
        %4562 = vmatpush1.bf16.msra.mxu0 0
        %4563 = vmatprep.subr.bf16.mxu0 0
        %4564 = vmatpush1.bf16.msra.mxu0 0
        %4565 = vmatprep.subr.bf16.mxu0 0
        %4566 = vmatpush1.bf16.msra.mxu0 0
        %4567 = vmatprep.subr.bf16.mxu0 0
        %4568 = vmatpush1.bf16.msra.mxu0 0
        %4569 = vmatprep.subr.bf16.mxu0 0
        %4570 = vmatpush1.bf16.msra.mxu0 0
        %4571 = vmatprep.subr.bf16.mxu0 0
        %4572 = vmatpush1.bf16.msra.mxu0 0
        %4573 = vmatprep.subr.bf16.mxu0 0
        %4574 = vmatpush1.bf16.msra.mxu0 0
        %4575 = vmatprep.subr.bf16.mxu0 0
        %4576 = vmatpush1.bf16.msra.mxu0 0
        %4577 = vmatprep.subr.bf16.mxu0 0
        %4578 = vmatpush1.bf16.msra.mxu0 0
        %4579 = vmatprep.mubr.bf16.mxu0 0
        %4580 = vmatmul.mubr.bf16.gmra.mrb[0].mxu0 %v4390
        %v4581 = vpop.f32.mrb[0].mxu0
        %v4582 = vadd.f32 %v4509, %v4581
        %v4583 = vpop.f32.mrb[0].mxu0
        %v4584 = vadd.f32 %v4511, %v4583
        %v4585 = vpop.f32.mrb[0].mxu0
        %v4586 = vadd.f32 %v4513, %v4585
        %v4587 = vpop.f32.mrb[0].mxu0
        %v4588 = vadd.f32 %v4515, %v4587
        %4589 = vmatprep.mubr.bf16.mxu0 0
        %4590 = vmatmul.mubr.bf16.gmra.mrb[0].mxu0 %v4393
        %v4591 = vpop.f32.mrb[0].mxu0
        %v4592 = vadd.f32 %v4519, %v4591
        %v4593 = vpop.f32.mrb[0].mxu0
        %v4594 = vadd.f32 %v4521, %v4593
        %v4595 = vpop.f32.mrb[0].mxu0
        %v4596 = vadd.f32 %v4523, %v4595
        %v4597 = vpop.f32.mrb[0].mxu0
        %v4598 = vadd.f32 %v4525, %v4597
        %4599 = vmatprep.mubr.bf16.mxu0 0
        %4600 = vmatmul.mubr.bf16.gmra.mrb[0].mxu0 %v4396
        %v4601 = vpop.f32.mrb[0].mxu0
        %v4602 = vadd.f32 %v4529, %v4601
        %v4603 = vpop.f32.mrb[0].mxu0
        %v4604 = vadd.f32 %v4531, %v4603
        %v4605 = vpop.f32.mrb[0].mxu0
        %v4606 = vadd.f32 %v4533, %v4605
        %v4607 = vpop.f32.mrb[0].mxu0
        %v4608 = vadd.f32 %v4535, %v4607
        %4609 = vmatprep.mubr.bf16.mxu0 0
        %4610 = vmatmul.mubr.bf16.gmra.mrb[0].mxu0 %v4399
        %v4611 = vpop.f32.mrb[0].mxu0
        %v4612 = vadd.f32 %v4539, %v4611
        %v4613 = vpop.f32.mrb[0].mxu0
        %v4614 = vadd.f32 %v4541, %v4613
        %v4615 = vpop.f32.mrb[0].mxu0
        %v4616 = vadd.f32 %v4543, %v4615
        %v4617 = vpop.f32.mrb[0].mxu0
        %v4618 = vadd.f32 %v4545, %v4617
        %4619 = vdwg.mxu0
        %v4620 = vmul.f32 %v4582, 0.5
        %v4621 = vmul.f32 %v4584, 0.5
        %v4622 = vmul.f32 %v4586, 0.5
        %v4623 = vmul.f32 %v4588, 0.5
        %v4624 = vmul.f32 %v4592, 0.5
        %v4625 = vmul.f32 %v4594, 0.5
        %v4626 = vmul.f32 %v4596, 0.5
        %v4627 = vmul.f32 %v4598, 0.5
        %v4628 = vmul.f32 %v4602, 0.5
        %v4629 = vmul.f32 %v4604, 0.5
        %v4630 = vmul.f32 %v4606, 0.5
        %v4631 = vmul.f32 %v4608, 0.5
        %v4632 = vmul.f32 %v4612, 0.5
        %v4633 = vmul.f32 %v4614, 0.5
        %v4634 = vmul.f32 %v4616, 0.5
        %v4635 = vmul.f32 %v4618, 0.5
        %v4636 = vmul.f32 %v4582, 0.044715
        %v4637 = vmul.f32 %v4584, 0.044715
        %v4638 = vmul.f32 %v4586, 0.044715
        %v4639 = vmul.f32 %v4588, 0.044715
        %v4640 = vmul.f32 %v4592, 0.044715
        %v4641 = vmul.f32 %v4594, 0.044715
        %v4642 = vmul.f32 %v4596, 0.044715
        %v4643 = vmul.f32 %v4598, 0.044715
        %v4644 = vmul.f32 %v4602, 0.044715
        %v4645 = vmul.f32 %v4604, 0.044715
        %v4646 = vmul.f32 %v4606, 0.044715
        %v4647 = vmul.f32 %v4608, 0.044715
        %v4648 = vmul.f32 %v4612, 0.044715
        %v4649 = vmul.f32 %v4614, 0.044715
        %v4650 = vmul.f32 %v4616, 0.044715
        %v4651 = vmul.f32 %v4618, 0.044715
        %v4652 = vmul.f32 %v4636, %v4582
        %v4653 = vmul.f32 %v4637, %v4584
        %v4654 = vmul.f32 %v4638, %v4586
        %v4655 = vmul.f32 %v4639, %v4588
        %v4656 = vmul.f32 %v4640, %v4592
        %v4657 = vmul.f32 %v4641, %v4594
        %v4658 = vmul.f32 %v4642, %v4596
        %v4659 = vmul.f32 %v4643, %v4598
        %v4660 = vmul.f32 %v4644, %v4602
        %v4661 = vmul.f32 %v4645, %v4604
        %v4662 = vmul.f32 %v4646, %v4606
        %v4663 = vmul.f32 %v4647, %v4608
        %v4664 = vmul.f32 %v4648, %v4612
        %v4665 = vmul.f32 %v4649, %v4614
        %v4666 = vmul.f32 %v4650, %v4616
        %v4667 = vmul.f32 %v4651, %v4618
        %v4668 = vmul.f32 %v4652, %v4582
        %v4669 = vmul.f32 %v4653, %v4584
        %v4670 = vmul.f32 %v4654, %v4586
        %v4671 = vmul.f32 %v4655, %v4588
        %v4672 = vmul.f32 %v4656, %v4592
        %v4673 = vmul.f32 %v4657, %v4594
        %v4674 = vmul.f32 %v4658, %v4596
        %v4675 = vmul.f32 %v4659, %v4598
        %v4676 = vmul.f32 %v4660, %v4602
        %v4677 = vmul.f32 %v4661, %v4604
        %v4678 = vmul.f32 %v4662, %v4606
        %v4679 = vmul.f32 %v4663, %v4608
        %v4680 = vmul.f32 %v4664, %v4612
        %v4681 = vmul.f32 %v4665, %v4614
        %v4682 = vmul.f32 %v4666, %v4616
        %v4683 = vmul.f32 %v4667, %v4618
        %v4684 = vadd.f32 %v4582, %v4668
        %v4685 = vadd.f32 %v4584, %v4669
        %v4686 = vadd.f32 %v4586, %v4670
        %v4687 = vadd.f32 %v4588, %v4671
        %v4688 = vadd.f32 %v4592, %v4672
        %v4689 = vadd.f32 %v4594, %v4673
        %v4690 = vadd.f32 %v4596, %v4674
        %v4691 = vadd.f32 %v4598, %v4675
        %v4692 = vadd.f32 %v4602, %v4676
        %v4693 = vadd.f32 %v4604, %v4677
        %v4694 = vadd.f32 %v4606, %v4678
        %v4695 = vadd.f32 %v4608, %v4679
        %v4696 = vadd.f32 %v4612, %v4680
        %v4697 = vadd.f32 %v4614, %v4681
        %v4698 = vadd.f32 %v4616, %v4682
        %v4699 = vadd.f32 %v4618, %v4683
        %v4700 = vmul.f32 %v4684, 0.7978846
        %v4701 = vmul.f32 %v4685, 0.7978846
        %v4702 = vmul.f32 %v4686, 0.7978846
        %v4703 = vmul.f32 %v4687, 0.7978846
        %v4704 = vmul.f32 %v4688, 0.7978846
        %v4705 = vmul.f32 %v4689, 0.7978846
        %v4706 = vmul.f32 %v4690, 0.7978846
        %v4707 = vmul.f32 %v4691, 0.7978846
        %v4708 = vmul.f32 %v4692, 0.7978846
        %v4709 = vmul.f32 %v4693, 0.7978846
        %v4710 = vmul.f32 %v4694, 0.7978846
        %v4711 = vmul.f32 %v4695, 0.7978846
        %v4712 = vmul.f32 %v4696, 0.7978846
        %v4713 = vmul.f32 %v4697, 0.7978846
        %v4714 = vmul.f32 %v4698, 0.7978846
        %v4715 = vmul.f32 %v4699, 0.7978846
        %v4716 = vtanh.pop %v4700
        %v4717 = vtanh.pop %v4701
        %v4718 = vtanh.pop %v4702
        %v4719 = vtanh.pop %v4703
        %v4720 = vtanh.pop %v4704
        %v4721 = vtanh.pop %v4705
        %v4722 = vtanh.pop %v4706
        %v4723 = vtanh.pop %v4707
        %v4724 = vtanh.pop %v4708
        %v4725 = vtanh.pop %v4709
        %v4726 = vtanh.pop %v4710
        %v4727 = vtanh.pop %v4711
        %v4728 = vtanh.pop %v4712
        %v4729 = vtanh.pop %v4713
        %v4730 = vtanh.pop %v4714
        %v4731 = vtanh.pop %v4715
        %v4732 = vadd.f32 %v4716, 1.0
        %v4733 = vadd.f32 %v4717, 1.0
        %v4734 = vadd.f32 %v4718, 1.0
        %v4735 = vadd.f32 %v4719, 1.0
        %v4736 = vadd.f32 %v4720, 1.0
        %v4737 = vadd.f32 %v4721, 1.0
        %v4738 = vadd.f32 %v4722, 1.0
        %v4739 = vadd.f32 %v4723, 1.0
        %v4740 = vadd.f32 %v4724, 1.0
        %v4741 = vadd.f32 %v4725, 1.0
        %v4742 = vadd.f32 %v4726, 1.0
        %v4743 = vadd.f32 %v4727, 1.0
        %v4744 = vadd.f32 %v4728, 1.0
        %v4745 = vadd.f32 %v4729, 1.0
        %v4746 = vadd.f32 %v4730, 1.0
        %v4747 = vadd.f32 %v4731, 1.0
        %v4748 = vmul.f32 %v4620, %v4732
        %v4749 = vmul.f32 %v4621, %v4733
        %v4750 = vmul.f32 %v4622, %v4734
        %v4751 = vmul.f32 %v4623, %v4735
        %v4752 = vmul.f32 %v4624, %v4736
        %v4753 = vmul.f32 %v4625, %v4737
        %v4754 = vmul.f32 %v4626, %v4738
        %v4755 = vmul.f32 %v4627, %v4739
        %v4756 = vmul.f32 %v4628, %v4740
        %v4757 = vmul.f32 %v4629, %v4741
        %v4758 = vmul.f32 %v4630, %v4742
        %v4759 = vmul.f32 %v4631, %v4743
        %v4760 = vmul.f32 %v4632, %v4744
        %v4761 = vmul.f32 %v4633, %v4745
        %v4762 = vmul.f32 %v4634, %v4746
        %v4763 = vmul.f32 %v4635, %v4747
        %v4764 = vld [vmem:[#allocation19] sm:$0xf]
        %v4765 = vld [vmem:[#allocation19 + $0x4] sm:$0xf]
        %v4766 = vld [vmem:[#allocation19 + $0x8] sm:$0xf]
        %v4767 = vld [vmem:[#allocation19 + $0xc] sm:$0xf]
        %v4768 = vld [vmem:[#allocation19 + $0x10] sm:$0xf]
        %v4769 = vld [vmem:[#allocation19 + $0x14] sm:$0xf]
        %v4770 = vld [vmem:[#allocation19 + $0x18] sm:$0xf]
        %v4771 = vld [vmem:[#allocation19 + $0x1c] sm:$0xf]
        %v4772 = vpack.c.bf16 %v4750, %v4748
        %v4773 = vpack.c.bf16 %v4751, %v4749
        %v4774 = vpack.c.bf16 %v4754, %v4752
        %v4775 = vpack.c.bf16 %v4755, %v4753
        %v4776 = vpack.c.bf16 %v4758, %v4756
        %v4777 = vpack.c.bf16 %v4759, %v4757
        %v4778 = vpack.c.bf16 %v4762, %v4760
        %v4779 = vpack.c.bf16 %v4763, %v4761
        %v4780 = vld [vmem:[%s20] sm:$0xff]
        %v4781 = vld [vmem:[%s20 + $0x8] sm:$0xff]
        %v4782 = vld [vmem:[%s20 + $0x10] sm:$0xff]
        %v4783 = vld [vmem:[%s20 + $0x18] sm:$0xff]
        %v4784 = vld [vmem:[%s20 + $0x20] sm:$0xff]
        %v4785 = vld [vmem:[%s20 + $0x28] sm:$0xff]
        %v4786 = vld [vmem:[%s20 + $0x30] sm:$0xff]
        %v4787 = vld [vmem:[%s20 + $0x38] sm:$0xff]
        %4789 = vset.pattern.permute.xlu0 0
        %4790 = vperm.xlu0 %4789, %v4780
        %v4791 = vpop.permute.xlu0 %4790
        %4794 = vset.pattern.permute.xlu0 0
        %4795 = vperm.xlu0 %4794, %v4781
        %v4796 = vpop.permute.xlu0 %4795
        %4799 = vset.pattern.permute.xlu0 0
        %4800 = vperm.xlu0 %4799, %v4782
        %v4801 = vpop.permute.xlu0 %4800
        %4804 = vset.pattern.permute.xlu0 0
        %4805 = vperm.xlu0 %4804, %v4783
        %v4806 = vpop.permute.xlu0 %4805
        %4809 = vset.pattern.permute.xlu0 0
        %4810 = vperm.xlu0 %4809, %v4784
        %v4811 = vpop.permute.xlu0 %4810
        %4814 = vset.pattern.permute.xlu0 0
        %4815 = vperm.xlu0 %4814, %v4785
        %v4816 = vpop.permute.xlu0 %4815
        %4819 = vset.pattern.permute.xlu0 0
        %4820 = vperm.xlu0 %4819, %v4786
        %v4821 = vpop.permute.xlu0 %4820
        %4824 = vset.pattern.permute.xlu0 0
        %4825 = vperm.xlu0 %4824, %v4787
        %v4826 = vpop.permute.xlu0 %4825
        %v4836 = vunpack.c.l.b16 %v4764
        %v4837 = vunpack.c.l.b16 %v4765
        %v4838 = vunpack.c.l.b16 %v4766
        %v4839 = vunpack.c.l.b16 %v4767
        %v4840 = vunpack.c.l.b16 %v4768
        %v4841 = vunpack.c.l.b16 %v4769
        %v4842 = vunpack.c.l.b16 %v4770
        %v4843 = vunpack.c.l.b16 %v4771
        %v4844 = vpack.c.b16 %v4837, %v4836
        %v4845 = vpack.c.b16 %v4839, %v4838
        %v4846 = vpack.c.b16 %v4841, %v4840
        %v4847 = vpack.c.b16 %v4843, %v4842
        %v4849 = vsel %vm2681, %v4844, 0
        %v4852 = vsel %vm2681, %v4845, 0
        %v4855 = vsel %vm2681, %v4846, 0
        %v4858 = vsel %vm2681, %v4847, 0
        %4860 = vmatprep.subr.bf16.mxu0 %v4773
        %4861 = vmatpush1.bf16.msra.mxu0 %v4772
        %4862 = vmatprep.subr.bf16.mxu0 %v4775
        %4863 = vmatpush1.bf16.msra.mxu0 %v4774
        %4864 = vmatprep.subr.bf16.mxu0 %v4777
        %4865 = vmatpush1.bf16.msra.mxu0 %v4776
        %4866 = vmatprep.subr.bf16.mxu0 %v4779
        %4867 = vmatpush1.bf16.msra.mxu0 %v4778
        %4868 = vmatprep.subr.bf16.mxu0 0
        %4869 = vmatpush1.bf16.msra.mxu0 0
        %4870 = vmatprep.subr.bf16.mxu0 0
        %4871 = vmatpush1.bf16.msra.mxu0 0
        %4872 = vmatprep.subr.bf16.mxu0 0
        %4873 = vmatpush1.bf16.msra.mxu0 0
        %4874 = vmatprep.subr.bf16.mxu0 0
        %4875 = vmatpush1.bf16.msra.mxu0 0
        %4876 = vmatprep.subr.bf16.mxu0 0
        %4877 = vmatpush1.bf16.msra.mxu0 0
        %4878 = vmatprep.subr.bf16.mxu0 0
        %4879 = vmatpush1.bf16.msra.mxu0 0
        %4880 = vmatprep.subr.bf16.mxu0 0
        %4881 = vmatpush1.bf16.msra.mxu0 0
        %4882 = vmatprep.subr.bf16.mxu0 0
        %4883 = vmatpush1.bf16.msra.mxu0 0
        %4884 = vmatprep.subr.bf16.mxu0 0
        %4885 = vmatpush1.bf16.msra.mxu0 0
        %4886 = vmatprep.subr.bf16.mxu0 0
        %4887 = vmatpush1.bf16.msra.mxu0 0
        %4888 = vmatprep.subr.bf16.mxu0 0
        %4889 = vmatpush1.bf16.msra.mxu0 0
        %4890 = vmatprep.subr.bf16.mxu0 0
        %4891 = vmatpush1.bf16.msra.mxu0 0
        %4892 = vmatprep.mubr.bf16.mxu0 0
        %4893 = vmatmul.mubr.bf16.gmra.mrb[0].mxu0 %v4849
        %v4894 = vpop.f32.mrb[0].mxu0
        %v4895 = vadd.f32 %v4791, %v4894
        %v4896 = vpop.f32.mrb[0].mxu0
        %v4897 = vadd.f32 %v4791, %v4896
        %v4898 = vpop.f32.mrb[0].mxu0
        %v4899 = vadd.f32 %v4796, %v4898
        %v4900 = vpop.f32.mrb[0].mxu0
        %v4901 = vadd.f32 %v4796, %v4900
        %4902 = vmatprep.mubr.bf16.mxu0 0
        %4903 = vmatmul.mubr.bf16.gmra.mrb[0].mxu0 %v4852
        %v4904 = vpop.f32.mrb[0].mxu0
        %v4905 = vadd.f32 %v4801, %v4904
        %v4906 = vpop.f32.mrb[0].mxu0
        %v4907 = vadd.f32 %v4801, %v4906
        %v4908 = vpop.f32.mrb[0].mxu0
        %v4909 = vadd.f32 %v4806, %v4908
        %v4910 = vpop.f32.mrb[0].mxu0
        %v4911 = vadd.f32 %v4806, %v4910
        %4912 = vmatprep.mubr.bf16.mxu0 0
        %4913 = vmatmul.mubr.bf16.gmra.mrb[0].mxu0 %v4855
        %v4914 = vpop.f32.mrb[0].mxu0
        %v4915 = vadd.f32 %v4811, %v4914
        %v4916 = vpop.f32.mrb[0].mxu0
        %v4917 = vadd.f32 %v4811, %v4916
        %v4918 = vpop.f32.mrb[0].mxu0
        %v4919 = vadd.f32 %v4816, %v4918
        %v4920 = vpop.f32.mrb[0].mxu0
        %v4921 = vadd.f32 %v4816, %v4920
        %4922 = vmatprep.mubr.bf16.mxu0 0
        %4923 = vmatmul.mubr.bf16.gmra.mrb[0].mxu0 %v4858
        %v4924 = vpop.f32.mrb[0].mxu0
        %v4925 = vadd.f32 %v4821, %v4924
        %v4926 = vpop.f32.mrb[0].mxu0
        %v4927 = vadd.f32 %v4821, %v4926
        %v4928 = vpop.f32.mrb[0].mxu0
        %v4929 = vadd.f32 %v4826, %v4928
        %v4930 = vpop.f32.mrb[0].mxu0
        %v4931 = vadd.f32 %v4826, %v4930
        %4932 = vdwg.mxu0
        %v4933 = vmul.f32 %v4895, 0.5
        %v4934 = vmul.f32 %v4897, 0.5
        %v4935 = vmul.f32 %v4899, 0.5
        %v4936 = vmul.f32 %v4901, 0.5
        %v4937 = vmul.f32 %v4905, 0.5
        %v4938 = vmul.f32 %v4907, 0.5
        %v4939 = vmul.f32 %v4909, 0.5
        %v4940 = vmul.f32 %v4911, 0.5
        %v4941 = vmul.f32 %v4915, 0.5
        %v4942 = vmul.f32 %v4917, 0.5
        %v4943 = vmul.f32 %v4919, 0.5
        %v4944 = vmul.f32 %v4921, 0.5
        %v4945 = vmul.f32 %v4925, 0.5
        %v4946 = vmul.f32 %v4927, 0.5
        %v4947 = vmul.f32 %v4929, 0.5
        %v4948 = vmul.f32 %v4931, 0.5
        %v4949 = vtanh.pop %v4933
        %v4950 = vtanh.pop %v4934
        %v4951 = vtanh.pop %v4935
        %v4952 = vtanh.pop %v4936
        %v4953 = vtanh.pop %v4937
        %v4954 = vtanh.pop %v4938
        %v4955 = vtanh.pop %v4939
        %v4956 = vtanh.pop %v4940
        %v4957 = vtanh.pop %v4941
        %v4958 = vtanh.pop %v4942
        %v4959 = vtanh.pop %v4943
        %v4960 = vtanh.pop %v4944
        %v4961 = vtanh.pop %v4945
        %v4962 = vtanh.pop %v4946
        %v4963 = vtanh.pop %v4947
        %v4964 = vtanh.pop %v4948
        %v4965 = vadd.f32 %v4949, 1.0
        %v4966 = vadd.f32 %v4950, 1.0
        %v4967 = vadd.f32 %v4951, 1.0
        %v4968 = vadd.f32 %v4952, 1.0
        %v4969 = vadd.f32 %v4953, 1.0
        %v4970 = vadd.f32 %v4954, 1.0
        %v4971 = vadd.f32 %v4955, 1.0
        %v4972 = vadd.f32 %v4956, 1.0
        %v4973 = vadd.f32 %v4957, 1.0
        %v4974 = vadd.f32 %v4958, 1.0
        %v4975 = vadd.f32 %v4959, 1.0
        %v4976 = vadd.f32 %v4960, 1.0
        %v4977 = vadd.f32 %v4961, 1.0
        %v4978 = vadd.f32 %v4962, 1.0
        %v4979 = vadd.f32 %v4963, 1.0
        %v4980 = vadd.f32 %v4964, 1.0
        %v4981 = vmul.f32 %v4965, 0.5
        %v4982 = vmul.f32 %v4966, 0.5
        %v4983 = vmul.f32 %v4967, 0.5
        %v4984 = vmul.f32 %v4968, 0.5
        %v4985 = vmul.f32 %v4969, 0.5
        %v4986 = vmul.f32 %v4970, 0.5
        %v4987 = vmul.f32 %v4971, 0.5
        %v4988 = vmul.f32 %v4972, 0.5
        %v4989 = vmul.f32 %v4973, 0.5
        %v4990 = vmul.f32 %v4974, 0.5
        %v4991 = vmul.f32 %v4975, 0.5
        %v4992 = vmul.f32 %v4976, 0.5
        %v4993 = vmul.f32 %v4977, 0.5
        %v4994 = vmul.f32 %v4978, 0.5
        %v4995 = vmul.f32 %v4979, 0.5
        %v4996 = vmul.f32 %v4980, 0.5
        %4997 = vst [vmem:[%s788] sm:$0xff] %v4981
        %4998 = vst [vmem:[%s788 + $0x8] sm:$0xff] %v4982
        %4999 = vst [vmem:[%s788 + $0x10] sm:$0xff] %v4983
        %5000 = vst [vmem:[%s788 + $0x18] sm:$0xff] %v4984
        %5001 = vst [vmem:[%s788 + $0x20] sm:$0xff] %v4985
        %5002 = vst [vmem:[%s788 + $0x28] sm:$0xff] %v4986
        %5003 = vst [vmem:[%s788 + $0x30] sm:$0xff] %v4987
        %5004 = vst [vmem:[%s788 + $0x38] sm:$0xff] %v4988
        %5005 = vst [vmem:[%s788 + $0x40] sm:$0xff] %v4989
        %5006 = vst [vmem:[%s788 + $0x48] sm:$0xff] %v4990
        %5007 = vst [vmem:[%s788 + $0x50] sm:$0xff] %v4991
        %5008 = vst [vmem:[%s788 + $0x58] sm:$0xff] %v4992
        %5009 = vst [vmem:[%s788 + $0x60] sm:$0xff] %v4993
        %5010 = vst [vmem:[%s788 + $0x68] sm:$0xff] %v4994
        %5011 = vst [vmem:[%s788 + $0x70] sm:$0xff] %v4995
        %5012 = vst [vmem:[%s788 + $0x78] sm:$0xff] %v4996
        %p5013 = scmp.lt.s32.totalorder %s39, 1
        %s5014 = scalar_select %p5013, %s39, 1
        %s5015 = smul.addr %s5014, 16
        %s5016 = smul.addr %s5015, 8
        %s5017 = scalar_lea.vmem %s21, %s5016
        // Predicated region
        $region141: #{mask_decoder_forward.1} parent=103 // pred_check
          %p5018 = pneg %p503
        $region142: #{mask_decoder_forward.1} parent=103 // pred_check_branch
          %5020 = sbr.rel (%p5018) target = $region144
        $region143: #{mask_decoder_forward.1} parent=103 // pred_region
          _
        $region144: #{mask_decoder_forward.1} parent=103 // pred_fallthru
          _
      $region104: #{mask_decoder_forward.1} parent=5 // pred_fallthru
        _
      %p5021 = scmp.le.s32.totalorder 2, %s34
      // Predicated region
      $region145: #{mask_decoder_forward.1} parent=5 // pred_check
        %p5022 = pneg %p5021
      $region146: #{mask_decoder_forward.1} parent=5 // pred_check_branch
        %5024 = sbr.rel (%p5022) target = $region148
      $region147: #{mask_decoder_forward.1} parent=5 // pred_region
        %s5025 = ssub.s32 %s34, 2
        // Predicated region
        $region149: #{mask_decoder_forward.1} parent=147 // pred_check
          %p5026 = pneg %p509
        $region150: #{mask_decoder_forward.1} parent=147 // pred_check_branch
          %5028 = sbr.rel (%p5026) target = $region152
        $region151: #{mask_decoder_forward.1} parent=147 // pred_region
          %p5029 = scmp.lt.s32.totalorder %s40, 1
          %s5030 = scalar_select %p5029, %s40, 1
          %s5031 = smul.addr %s5030, 16
          %s5032 = smul.addr %s5031, 8
          %s5033 = scalar_lea.vmem %s21, %s5032
        $region152: #{mask_decoder_forward.1} parent=147 // pred_fallthru
          _
      $region148: #{mask_decoder_forward.1} parent=5 // pred_fallthru
        _
    $region6: #{mask_decoder_forward.1} parent=1 // loop_footer
      %s38 = sadd.s32 1, %s34
    $region7: #{mask_decoder_forward.1} parent=1 // loop_footer_branch
      %33 = sbr.rel target = $region3
    $region8: #{mask_decoder_forward.1} parent=1 // loop_exit
      _
    %5034 = vsyncpa [#allocation7], 1
    %s5035 = scalar_lea.sflag [#allocation7], 1
    %5036 = vsyncpa %s5035, 1
    %5037 = vsyncpa [#allocation9], 1
    %5038 = vsyncpa [#allocation12], 1
    %5039 = vsyncpa [#allocation15], 1
    %5040 = vsyncpa [#allocation18], 1

</llo_original>
